<compile_context>
chip_gen: v7x
topology: tpu7x:2x2x1
jax: 0.10.0
libtpu: 0.0.40
codegen_flags: <defaults>
</compile_context>

<pallas_src>
import functools

import jax
import jax.numpy as jnp
from jax.experimental import pallas as pl
from jax.experimental.pallas import tpu as pltpu


N_LAYER = 2  # MultiLayerLSTMCells depth used by this PtrScorer


# ---------------------------------------------------------------------------
# in-kernel helpers (traced inside the Pallas kernel body)
# ---------------------------------------------------------------------------
def _attn_weights(att_feat, query, v, w):
    """Softmax attention weights over the rows of att_feat.

    att_feat: (N, H), query: (1, H), v: (1, H), w: (H, H)  ->  (N, 1)
    """
    s = att_feat + jnp.dot(query, w, preferred_element_type=jnp.float32)   # (N, H)
    logits = jnp.sum(jnp.tanh(s) * v, axis=-1, keepdims=True)              # (N, 1)
    m = jnp.max(logits, axis=0, keepdims=True)                             # (1, 1) keepdims: stay in vregs
    p = jnp.exp(logits - m)                                                # (N, 1)
    denom = jnp.sum(p, axis=0, keepdims=True)                              # (1, 1)
    return p * pl.reciprocal(denom, approx=True)                           # EUP, off the VALU


def _attention(att, att_feat, query, v, w):
    """PtrScorer.attention: context vector over `att` rows.  Returns (1, Da)."""
    p = _attn_weights(att_feat, query, v, w)                               # (N, 1)
    # score @ att  ==  sum_n p[n] * att[n, :]
    return jnp.sum(p * att, axis=0, keepdims=True)                         # (1, Da)


def _lstm_cell(xh, c, w, b, hidden):
    """torch.nn.LSTMCell semantics (gate order i, f, g, o), fused [x,h] @ [w_ih;w_hh]."""
    gates = jnp.dot(xh, w, preferred_element_type=jnp.float32) + b         # (1, 4H) = one 128-lane row
    sig = jax.nn.sigmoid(gates)                                            # one EUP push for i,f,o
    th = jnp.tanh(gates)                                                   # one EUP push for g
    i = sig[:, 0 * hidden:1 * hidden]
    f = sig[:, 1 * hidden:2 * hidden]
    g = th[:, 2 * hidden:3 * hidden]
    o = sig[:, 3 * hidden:4 * hidden]
    c_new = f * c + i * g
    h_new = o * jnp.tanh(c_new)
    return h_new, c_new


# ---------------------------------------------------------------------------
# Pallas kernel: whole PtrScorer.forward
# ---------------------------------------------------------------------------
def ptr_scorer_kernel(attn_mem_ref, w_ref, v_ref, out_ref, *,
                      n_step, n_hop, hidden, in_dim):
    H, D = hidden, in_dim

    # --- unpack the two parameter slabs with static slices (one-time precompute) ---
    w_all = w_ref[...]                                   # (2D+5H, 4H)
    v_all = v_ref[...]                                   # (3+3*N_LAYER+3, 4H)

    r = 0
    w_mem = w_all[r:r + D, 0:2 * H];       r += D        # [attn_wm | hop_wm]  (D, 2H)
    attn_wq = w_all[r:r + H, 0:H];         r += H        # (H, H)
    hop_wq = w_all[r:r + H, 0:H];          r += H        # (H, H)
    w_lstm = []
    w_lstm.append(w_all[r:r + D + H, :]);  r += D + H    # [w_ih0; w_hh0]  (D+H, 4H)
    w_lstm.append(w_all[r:r + 2 * H, :]);  r += 2 * H    # [w_ih1; w_hh1]  (2H, 4H)

    attn_v = v_all[0:1, 0:H]
    hop_v = v_all[1:2, 0:H]
    lstm_in = v_all[2:3, 0:D]                                              # init_i
    hs = [v_all[3 + l:4 + l, 0:H] for l in range(N_LAYER)]                 # init_h per layer
    cs = [v_all[3 + N_LAYER + l:4 + N_LAYER + l, 0:H] for l in range(N_LAYER)]
    rb = 3 + 2 * N_LAYER
    biases = [v_all[rb + l:rb + l + 1, :] for l in range(N_LAYER)]         # (1, 4H), = b_ih + b_hh
    score_w = v_all[rb + N_LAYER:rb + N_LAYER + 1, 0:D]                    # (1, D)
    score_b = v_all[rb + N_LAYER + 1:rb + N_LAYER + 2, 0:1]                # (1, 1)

    # --- fused feature precompute: attn_feat / hop_feat with a single matmul ---
    attn_mem = attn_mem_ref[...]                                           # (N, D)
    feat = jnp.dot(attn_mem, w_mem, preferred_element_type=jnp.float32)    # (N, 2H)
    attn_feat = feat[:, 0:H]
    hop_feat = feat[:, H:2 * H]

    # Fuse the scoring linear into the final attention: augment attn_mem with a
    # precomputed column attn_mem @ score_w^T, so  p @ att_aug = [output | score - b].
    mem_score = jnp.sum(attn_mem * score_w, axis=-1, keepdims=True)        # (N, 1)
    att_aug = jnp.concatenate([attn_mem, mem_score], axis=-1)              # (N, D+1)

    # lane-major score accumulator; one dense store at the end
    lane_idx = jax.lax.broadcasted_iota(jnp.int32, (1, n_step), 1)
    scores_row = jnp.zeros((1, n_step), jnp.float32)

    # n_step / n_hop are static -> trace-time unrolled sequential recurrence.
    # TODO(synk): for large n_step switch to lax.fori_loop with h/c/lstm_in carried in VMEM scratch.
    for t in range(n_step):
        x = lstm_in
        for l in range(N_LAYER):
            xh = jnp.concatenate([x, hs[l]], axis=-1)                      # (1, D+H) / (1, 2H)
            h_new, c_new = _lstm_cell(xh, cs[l], w_lstm[l], biases[l], H)
            hs[l], cs[l] = h_new, c_new
            x = h_new                                                      # input to next layer

        query = hs[-1]                                                     # (1, H) = top-layer h
        for _ in range(n_hop):
            query = _attention(hop_feat, hop_feat, query, hop_v, hop_wq)   # (1, H)

        p = _attn_weights(attn_feat, query, attn_v, attn_wq)               # (N, 1)
        out_aug = jnp.sum(p * att_aug, axis=0, keepdims=True)              # (1, D+1)
        output = out_aug[:, 0:D]                                           # (1, D)
        score = out_aug[:, D:D + 1] + score_b                              # (1, 1)

        scores_row = jnp.where(lane_idx == t, score, scores_row)
        lstm_in = output

    out_ref[...] = scores_row                                              # single (1, n_step) store


# ---------------------------------------------------------------------------
# wrapper: pack 18 params into 2 slabs, call the kernel with 3 inputs
# ---------------------------------------------------------------------------
def _pack_params(params, *, in_dim, hidden):
    width = 4 * hidden
    assert in_dim <= width and 2 * hidden <= width

    def pad_w(a):
        return jnp.pad(a, ((0, 0), (0, width - a.shape[-1])))

    w_mem = jnp.concatenate([params["attn_wm"], params["hop_wm"]], axis=1)    # (D, 2H)
    w_lstm0 = jnp.concatenate([params["w_ih0"], params["w_hh0"]], axis=0)     # (D+H, 4H)
    w_lstm1 = jnp.concatenate([params["w_ih1"], params["w_hh1"]], axis=0)     # (2H, 4H)
    w_slab = jnp.concatenate(
        [pad_w(w_mem), pad_w(params["attn_wq"]), pad_w(params["hop_wq"]),
         w_lstm0, w_lstm1], axis=0)

    v_slab = jnp.concatenate(
        [pad_w(params["attn_v"]), pad_w(params["hop_v"]), pad_w(params["init_i"]),
         pad_w(params["init_h"]), pad_w(params["init_c"]),
         pad_w(params["b0"]), pad_w(params["b1"]),
         pad_w(params["score_w"]), pad_w(params["score_b"])], axis=0)
    return w_slab, v_slab


def ptr_scorer_forward(attn_mem, params, *, n_step, n_hop):
    hidden = params["attn_wq"].shape[0]
    in_dim = params["attn_wm"].shape[0]
    w_slab, v_slab = _pack_params(params, in_dim=in_dim, hidden=hidden)

    kernel = functools.partial(ptr_scorer_kernel, n_step=n_step, n_hop=n_hop,
                               hidden=hidden, in_dim=in_dim)
    out = pl.pallas_call(
        kernel,
        out_shape=jax.ShapeDtypeStruct((1, n_step), jnp.float32),
        in_specs=[pl.BlockSpec(memory_space=pltpu.MemorySpace.VMEM)] * 3,
        out_specs=pl.BlockSpec(memory_space=pltpu.MemorySpace.VMEM),
    )(attn_mem, w_slab, v_slab)
    # torch returns a list of (1,1) scores -> present as a (n_step, 1) column
    return out.reshape(n_step, 1)


# ---------------------------------------------------------------------------
# pure-JAX reference (same math, used only to validate the kernel)
# ---------------------------------------------------------------------------
def ptr_scorer_ref(attn_mem, params, *, n_step, n_hop):
    def attention(att, att_feat, q, v, w):
        s = att_feat + q @ w
        logits = jnp.sum(jnp.tanh(s) * v, axis=-1)                         # (N,)
        p = jax.nn.softmax(logits)[None, :]                                # (1, N)
        return p @ att

    def cell(x, h, c, w_ih, w_hh, b):
        g = x @ w_ih + h @ w_hh + b
        i, f, gg, o = jnp.split(g, 4, axis=-1)
        c_new = jax.nn.sigmoid(f) * c + jax.nn.sigmoid(i) * jnp.tanh(gg)
        return jax.nn.sigmoid(o) * jnp.tanh(c_new), c_new

    layers = [(params["w_ih0"], params["w_hh0"], params["b0"]),
              (params["w_ih1"], params["w_hh1"], params["b1"])]
    attn_feat = attn_mem @ params["attn_wm"]
    hop_feat = attn_mem @ params["hop_wm"]
    lstm_in = params["init_i"]
    hs = [params["init_h"][l:l + 1] for l in range(len(layers))]
    cs = [params["init_c"][l:l + 1] for l in range(len(layers))]
    scores = []
    for _ in range(n_step):
        x = lstm_in
        nh, nc = [], []
        for l, (w_ih, w_hh, b) in enumerate(layers):
            h, c = cell(x, hs[l], cs[l], w_ih, w_hh, b)
            nh.append(h)
            nc.append(c)
            x = h
        hs, cs = nh, nc
        q = hs[-1]
        for _ in range(n_hop):
            q = attention(hop_feat, hop_feat, q, params["hop_v"], params["hop_wq"])
        out = attention(attn_mem, attn_feat, q, params["attn_v"], params["attn_wq"])
        scores.append(jnp.sum(out * params["score_w"], axis=-1, keepdims=True)
                      + params["score_b"])
        lstm_in = out
    return jnp.concatenate(scores, axis=0)


# ---------------------------------------------------------------------------
# main
# ---------------------------------------------------------------------------
if __name__ == "__main__":
    N, D, H, L = 8, 32, 32, 2          # num_sents, input_dim, hidden, n_layer
    N_STEP, N_HOP = 4, 2

    key = jax.random.PRNGKey(0)
    ks = jax.random.split(key, 18)

    def nrm(k, shape, scale=0.1):
        return scale * jax.random.normal(k, shape, dtype=jnp.float32)

    params = {
        "attn_wm": nrm(ks[0], (D, H)),
        "attn_wq": nrm(ks[1], (H, H)),
        "attn_v":  nrm(ks[2], (1, H)),
        "hop_wm":  nrm(ks[3], (D, H)),
        "hop_wq":  nrm(ks[4], (H, H)),
        "hop_v":   nrm(ks[5], (1, H)),
        "init_i":  nrm(ks[6], (1, D)),
        "init_h":  nrm(ks[7], (L, H)),
        "init_c":  nrm(ks[8], (L, H)),
        # layer 0: LSTMCell(input_dim=D, hidden=H); layer 1: LSTMCell(H, H)
        "w_ih0":   nrm(ks[9], (D, 4 * H)),
        "w_hh0":   nrm(ks[10], (H, 4 * H)),
        "b0":      nrm(ks[11], (1, 4 * H)),
        "w_ih1":   nrm(ks[12], (H, 4 * H)),
        "w_hh1":   nrm(ks[13], (H, 4 * H)),
        "b1":      nrm(ks[14], (1, 4 * H)),
        # nn.Linear(input_dim, 1): weight (1, D), bias (1,)
        "score_w": nrm(ks[15], (1, D)),
        "score_b": nrm(ks[16], (1, 1)),
    }
    attn_mem = nrm(ks[17], (N, D), scale=1.0)

    scores = ptr_scorer_forward(attn_mem, params, n_step=N_STEP, n_hop=N_HOP)
    scores = jax.block_until_ready(scores)

    ref = ptr_scorer_ref(attn_mem, params, n_step=N_STEP, n_hop=N_HOP)
    assert scores.shape == (N_STEP, 1)
    # tolerance 1e-3: kernel uses the EUP approximate reciprocal for the softmax denominator
    assert jnp.allclose(scores, ref, atol=1e-3, rtol=1e-3), (scores, ref)

    print("KERNEL_OK")
</pallas_src>

<mosaic_0001>
module attributes {stable_mosaic.version = 11 : i64} {
  func.func @ptr_scorer_kernel(%arg0: memref<8x32xf32, #tpu.memory_space<vmem>>, %arg1: memref<224x128xf32, #tpu.memory_space<vmem>>, %arg2: memref<11x128xf32, #tpu.memory_space<vmem>>, %arg3: memref<1x4xf32, #tpu.memory_space<vmem>>) attributes {dimension_semantics = [], scalar_prefetch = 0 : i64, scratch_operands = 0 : i64, tpu.core_type = #tpu.core_type<tc>} {
    %c0 = arith.constant 0 : index
    %c0_0 = arith.constant 0 : index
    %0 = vector.load %arg1[%c0, %c0_0] : memref<224x128xf32, #tpu.memory_space<vmem>>, vector<224x128xf32>
    %c0_1 = arith.constant 0 : index
    %c0_2 = arith.constant 0 : index
    %1 = vector.load %arg2[%c0_1, %c0_2] : memref<11x128xf32, #tpu.memory_space<vmem>>, vector<11x128xf32>
    %2 = vector.extract_strided_slice %0 {offsets = [0, 0], sizes = [32, 64], strides = [1, 1]} : vector<224x128xf32> to vector<32x64xf32>
    %3 = vector.extract_strided_slice %0 {offsets = [32, 0], sizes = [32, 32], strides = [1, 1]} : vector<224x128xf32> to vector<32x32xf32>
    %4 = vector.extract_strided_slice %0 {offsets = [64, 0], sizes = [32, 32], strides = [1, 1]} : vector<224x128xf32> to vector<32x32xf32>
    %5 = vector.extract_strided_slice %0 {offsets = [96, 0], sizes = [64, 128], strides = [1, 1]} : vector<224x128xf32> to vector<64x128xf32>
    %6 = vector.extract_strided_slice %0 {offsets = [160, 0], sizes = [64, 128], strides = [1, 1]} : vector<224x128xf32> to vector<64x128xf32>
    %7 = vector.extract_strided_slice %1 {offsets = [0, 0], sizes = [1, 32], strides = [1, 1]} : vector<11x128xf32> to vector<1x32xf32>
    %8 = vector.extract_strided_slice %1 {offsets = [1, 0], sizes = [1, 32], strides = [1, 1]} : vector<11x128xf32> to vector<1x32xf32>
    %9 = vector.extract_strided_slice %1 {offsets = [2, 0], sizes = [1, 32], strides = [1, 1]} : vector<11x128xf32> to vector<1x32xf32>
    %10 = vector.extract_strided_slice %1 {offsets = [3, 0], sizes = [1, 32], strides = [1, 1]} : vector<11x128xf32> to vector<1x32xf32>
    %11 = vector.extract_strided_slice %1 {offsets = [4, 0], sizes = [1, 32], strides = [1, 1]} : vector<11x128xf32> to vector<1x32xf32>
    %12 = vector.extract_strided_slice %1 {offsets = [5, 0], sizes = [1, 32], strides = [1, 1]} : vector<11x128xf32> to vector<1x32xf32>
    %13 = vector.extract_strided_slice %1 {offsets = [6, 0], sizes = [1, 32], strides = [1, 1]} : vector<11x128xf32> to vector<1x32xf32>
    %14 = vector.extract_strided_slice %1 {offsets = [7, 0], sizes = [1, 128], strides = [1, 1]} : vector<11x128xf32> to vector<1x128xf32>
    %15 = vector.extract_strided_slice %1 {offsets = [8, 0], sizes = [1, 128], strides = [1, 1]} : vector<11x128xf32> to vector<1x128xf32>
    %16 = vector.extract_strided_slice %1 {offsets = [9, 0], sizes = [1, 32], strides = [1, 1]} : vector<11x128xf32> to vector<1x32xf32>
    %17 = vector.extract_strided_slice %1 {offsets = [10, 0], sizes = [1, 1], strides = [1, 1]} : vector<11x128xf32> to vector<1x1xf32>
    %c0_3 = arith.constant 0 : index
    %c0_4 = arith.constant 0 : index
    %18 = vector.load %arg0[%c0_3, %c0_4] : memref<8x32xf32, #tpu.memory_space<vmem>>, vector<8x32xf32>
    %cst = arith.constant dense<0.000000e+00> : vector<8x64xf32>
    %19 = tpu.matmul %18, %2, %cst {dimension_numbers = #tpu.dot_dimension_numbers<[1], [0], [0], [1], [0, 0, 1, 1], [], []>} : vector<8x32xf32>, vector<32x64xf32>, vector<8x64xf32> -> vector<8x64xf32>
    %20 = vector.extract_strided_slice %19 {offsets = [0, 0], sizes = [8, 32], strides = [1, 1]} : vector<8x64xf32> to vector<8x32xf32>
    %21 = vector.extract_strided_slice %19 {offsets = [0, 32], sizes = [8, 32], strides = [1, 1]} : vector<8x64xf32> to vector<8x32xf32>
    %22 = vector.broadcast %16 : vector<1x32xf32> to vector<8x32xf32>
    %23 = arith.mulf %18, %22 : vector<8x32xf32>
    %cst_5 = arith.constant dense<0.000000e+00> : vector<8xf32>
    %24 = vector.multi_reduction <add>, %23, %cst_5 [1] : vector<8x32xf32> to vector<8xf32>
    %25 = vector.shape_cast %24 : vector<8xf32> to vector<8x1xf32>
    %26 = tpu.concatenate %18, %25 in 1 : vector<8x32xf32>, vector<8x1xf32> -> vector<8x33xf32>
    %27 = tpu.iota {dimensions = array<i32: 1>} : vector<1x4xi32>
    %cst_6 = arith.constant 0.000000e+00 : f32
    %28 = vector.broadcast %cst_6 : f32 to vector<1x4xf32>
    %29 = tpu.concatenate %9, %10 in 1 : vector<1x32xf32>, vector<1x32xf32> -> vector<1x64xf32>
    %cst_7 = arith.constant dense<0.000000e+00> : vector<1x128xf32>
    %30 = tpu.matmul %29, %5, %cst_7 {dimension_numbers = #tpu.dot_dimension_numbers<[1], [0], [0], [1], [0, 0, 1, 1], [], []>} : vector<1x64xf32>, vector<64x128xf32>, vector<1x128xf32> -> vector<1x128xf32>
    %31 = arith.addf %30, %14 : vector<1x128xf32>
    %32 = arith.negf %31 : vector<1x128xf32>
    %33 = math.exp %32 : vector<1x128xf32>
    %cst_8 = arith.constant 1.000000e+00 : f32
    %34 = vector.broadcast %cst_8 : f32 to vector<1x128xf32>
    %35 = arith.addf %34, %33 : vector<1x128xf32>
    %36 = arith.divf %34, %35 : vector<1x128xf32>
    %37 = math.tanh %31 : vector<1x128xf32>
    %38 = vector.extract_strided_slice %36 {offsets = [0, 0], sizes = [1, 32], strides = [1, 1]} : vector<1x128xf32> to vector<1x32xf32>
    %39 = vector.extract_strided_slice %36 {offsets = [0, 32], sizes = [1, 32], strides = [1, 1]} : vector<1x128xf32> to vector<1x32xf32>
    %40 = vector.extract_strided_slice %37 {offsets = [0, 64], sizes = [1, 32], strides = [1, 1]} : vector<1x128xf32> to vector<1x32xf32>
    %41 = vector.extract_strided_slice %36 {offsets = [0, 96], sizes = [1, 32], strides = [1, 1]} : vector<1x128xf32> to vector<1x32xf32>
    %42 = arith.mulf %39, %12 : vector<1x32xf32>
    %43 = arith.mulf %38, %40 : vector<1x32xf32>
    %44 = arith.addf %42, %43 : vector<1x32xf32>
    %45 = math.tanh %44 : vector<1x32xf32>
    %46 = arith.mulf %41, %45 : vector<1x32xf32>
    %47 = tpu.concatenate %46, %11 in 1 : vector<1x32xf32>, vector<1x32xf32> -> vector<1x64xf32>
    %cst_9 = arith.constant dense<0.000000e+00> : vector<1x128xf32>
    %48 = tpu.matmul %47, %6, %cst_9 {dimension_numbers = #tpu.dot_dimension_numbers<[1], [0], [0], [1], [0, 0, 1, 1], [], []>} : vector<1x64xf32>, vector<64x128xf32>, vector<1x128xf32> -> vector<1x128xf32>
    %49 = arith.addf %48, %15 : vector<1x128xf32>
    %50 = arith.negf %49 : vector<1x128xf32>
    %51 = math.exp %50 : vector<1x128xf32>
    %cst_10 = arith.constant 1.000000e+00 : f32
    %52 = vector.broadcast %cst_10 : f32 to vector<1x128xf32>
    %53 = arith.addf %52, %51 : vector<1x128xf32>
    %54 = arith.divf %52, %53 : vector<1x128xf32>
    %55 = math.tanh %49 : vector<1x128xf32>
    %56 = vector.extract_strided_slice %54 {offsets = [0, 0], sizes = [1, 32], strides = [1, 1]} : vector<1x128xf32> to vector<1x32xf32>
    %57 = vector.extract_strided_slice %54 {offsets = [0, 32], sizes = [1, 32], strides = [1, 1]} : vector<1x128xf32> to vector<1x32xf32>
    %58 = vector.extract_strided_slice %55 {offsets = [0, 64], sizes = [1, 32], strides = [1, 1]} : vector<1x128xf32> to vector<1x32xf32>
    %59 = vector.extract_strided_slice %54 {offsets = [0, 96], sizes = [1, 32], strides = [1, 1]} : vector<1x128xf32> to vector<1x32xf32>
    %60 = arith.mulf %57, %13 : vector<1x32xf32>
    %61 = arith.mulf %56, %58 : vector<1x32xf32>
    %62 = arith.addf %60, %61 : vector<1x32xf32>
    %63 = math.tanh %62 : vector<1x32xf32>
    %64 = arith.mulf %59, %63 : vector<1x32xf32>
    %cst_11 = arith.constant dense<0.000000e+00> : vector<1x32xf32>
    %65 = tpu.matmul %64, %4, %cst_11 {dimension_numbers = #tpu.dot_dimension_numbers<[1], [0], [0], [1], [0, 0, 1, 1], [], []>} : vector<1x32xf32>, vector<32x32xf32>, vector<1x32xf32> -> vector<1x32xf32>
    %66 = vector.broadcast %65 : vector<1x32xf32> to vector<8x32xf32>
    %67 = arith.addf %21, %66 : vector<8x32xf32>
    %68 = math.tanh %67 : vector<8x32xf32>
    %69 = vector.broadcast %8 : vector<1x32xf32> to vector<8x32xf32>
    %70 = arith.mulf %68, %69 : vector<8x32xf32>
    %cst_12 = arith.constant dense<0.000000e+00> : vector<8xf32>
    %71 = vector.multi_reduction <add>, %70, %cst_12 [1] : vector<8x32xf32> to vector<8xf32>
    %72 = vector.shape_cast %71 : vector<8xf32> to vector<8x1xf32>
    %cst_13 = arith.constant dense<0xFF800000> : vector<1xf32>
    %73 = vector.multi_reduction <maximumf>, %72, %cst_13 [0] : vector<8x1xf32> to vector<1xf32>
    %74 = vector.shape_cast %73 : vector<1xf32> to vector<1x1xf32>
    %75 = vector.broadcast %74 : vector<1x1xf32> to vector<8x1xf32>
    %76 = arith.subf %72, %75 : vector<8x1xf32>
    %77 = math.exp %76 : vector<8x1xf32>
    %cst_14 = arith.constant dense<0.000000e+00> : vector<1xf32>
    %78 = vector.multi_reduction <add>, %77, %cst_14 [0] : vector<8x1xf32> to vector<1xf32>
    %79 = vector.shape_cast %78 : vector<1xf32> to vector<1x1xf32>
    %80 = tpu.reciprocal %79 {approx = true} : vector<1x1xf32> -> vector<1x1xf32>
    %81 = vector.broadcast %80 : vector<1x1xf32> to vector<8x1xf32>
    %82 = arith.mulf %77, %81 : vector<8x1xf32>
    %83 = vector.broadcast %82 : vector<8x1xf32> to vector<8x32xf32>
    %84 = arith.mulf %83, %21 : vector<8x32xf32>
    %cst_15 = arith.constant dense<0.000000e+00> : vector<32xf32>
    %85 = vector.multi_reduction <add>, %84, %cst_15 [0] : vector<8x32xf32> to vector<32xf32>
    %86 = vector.shape_cast %85 : vector<32xf32> to vector<1x32xf32>
    %cst_16 = arith.constant dense<0.000000e+00> : vector<1x32xf32>
    %87 = tpu.matmul %86, %4, %cst_16 {dimension_numbers = #tpu.dot_dimension_numbers<[1], [0], [0], [1], [0, 0, 1, 1], [], []>} : vector<1x32xf32>, vector<32x32xf32>, vector<1x32xf32> -> vector<1x32xf32>
    %88 = vector.broadcast %87 : vector<1x32xf32> to vector<8x32xf32>
    %89 = arith.addf %21, %88 : vector<8x32xf32>
    %90 = math.tanh %89 : vector<8x32xf32>
    %91 = vector.broadcast %8 : vector<1x32xf32> to vector<8x32xf32>
    %92 = arith.mulf %90, %91 : vector<8x32xf32>
    %cst_17 = arith.constant dense<0.000000e+00> : vector<8xf32>
    %93 = vector.multi_reduction <add>, %92, %cst_17 [1] : vector<8x32xf32> to vector<8xf32>
    %94 = vector.shape_cast %93 : vector<8xf32> to vector<8x1xf32>
    %cst_18 = arith.constant dense<0xFF800000> : vector<1xf32>
    %95 = vector.multi_reduction <maximumf>, %94, %cst_18 [0] : vector<8x1xf32> to vector<1xf32>
    %96 = vector.shape_cast %95 : vector<1xf32> to vector<1x1xf32>
    %97 = vector.broadcast %96 : vector<1x1xf32> to vector<8x1xf32>
    %98 = arith.subf %94, %97 : vector<8x1xf32>
    %99 = math.exp %98 : vector<8x1xf32>
    %cst_19 = arith.constant dense<0.000000e+00> : vector<1xf32>
    %100 = vector.multi_reduction <add>, %99, %cst_19 [0] : vector<8x1xf32> to vector<1xf32>
    %101 = vector.shape_cast %100 : vector<1xf32> to vector<1x1xf32>
    %102 = tpu.reciprocal %101 {approx = true} : vector<1x1xf32> -> vector<1x1xf32>
    %103 = vector.broadcast %102 : vector<1x1xf32> to vector<8x1xf32>
    %104 = arith.mulf %99, %103 : vector<8x1xf32>
    %105 = vector.broadcast %104 : vector<8x1xf32> to vector<8x32xf32>
    %106 = arith.mulf %105, %21 : vector<8x32xf32>
    %cst_20 = arith.constant dense<0.000000e+00> : vector<32xf32>
    %107 = vector.multi_reduction <add>, %106, %cst_20 [0] : vector<8x32xf32> to vector<32xf32>
    %108 = vector.shape_cast %107 : vector<32xf32> to vector<1x32xf32>
    %cst_21 = arith.constant dense<0.000000e+00> : vector<1x32xf32>
    %109 = tpu.matmul %108, %3, %cst_21 {dimension_numbers = #tpu.dot_dimension_numbers<[1], [0], [0], [1], [0, 0, 1, 1], [], []>} : vector<1x32xf32>, vector<32x32xf32>, vector<1x32xf32> -> vector<1x32xf32>
    %110 = vector.broadcast %109 : vector<1x32xf32> to vector<8x32xf32>
    %111 = arith.addf %20, %110 : vector<8x32xf32>
    %112 = math.tanh %111 : vector<8x32xf32>
    %113 = vector.broadcast %7 : vector<1x32xf32> to vector<8x32xf32>
    %114 = arith.mulf %112, %113 : vector<8x32xf32>
    %cst_22 = arith.constant dense<0.000000e+00> : vector<8xf32>
    %115 = vector.multi_reduction <add>, %114, %cst_22 [1] : vector<8x32xf32> to vector<8xf32>
    %116 = vector.shape_cast %115 : vector<8xf32> to vector<8x1xf32>
    %cst_23 = arith.constant dense<0xFF800000> : vector<1xf32>
    %117 = vector.multi_reduction <maximumf>, %116, %cst_23 [0] : vector<8x1xf32> to vector<1xf32>
    %118 = vector.shape_cast %117 : vector<1xf32> to vector<1x1xf32>
    %119 = vector.broadcast %118 : vector<1x1xf32> to vector<8x1xf32>
    %120 = arith.subf %116, %119 : vector<8x1xf32>
    %121 = math.exp %120 : vector<8x1xf32>
    %cst_24 = arith.constant dense<0.000000e+00> : vector<1xf32>
    %122 = vector.multi_reduction <add>, %121, %cst_24 [0] : vector<8x1xf32> to vector<1xf32>
    %123 = vector.shape_cast %122 : vector<1xf32> to vector<1x1xf32>
    %124 = tpu.reciprocal %123 {approx = true} : vector<1x1xf32> -> vector<1x1xf32>
    %125 = vector.broadcast %124 : vector<1x1xf32> to vector<8x1xf32>
    %126 = arith.mulf %121, %125 : vector<8x1xf32>
    %127 = vector.broadcast %126 : vector<8x1xf32> to vector<8x33xf32>
    %128 = arith.mulf %127, %26 : vector<8x33xf32>
    %cst_25 = arith.constant dense<0.000000e+00> : vector<33xf32>
    %129 = vector.multi_reduction <add>, %128, %cst_25 [0] : vector<8x33xf32> to vector<33xf32>
    %130 = vector.shape_cast %129 : vector<33xf32> to vector<1x33xf32>
    %131 = vector.extract_strided_slice %130 {offsets = [0, 0], sizes = [1, 32], strides = [1, 1]} : vector<1x33xf32> to vector<1x32xf32>
    %132 = vector.extract_strided_slice %130 {offsets = [0, 32], sizes = [1, 1], strides = [1, 1]} : vector<1x33xf32> to vector<1x1xf32>
    %133 = arith.addf %132, %17 : vector<1x1xf32>
    %c0_i32 = arith.constant 0 : i32
    %134 = vector.broadcast %c0_i32 : i32 to vector<1x4xi32>
    %135 = arith.cmpi eq, %27, %134 : vector<1x4xi32>
    %136 = vector.shape_cast %133 : vector<1x1xf32> to vector<1x1xf32>
    %137 = vector.broadcast %136 : vector<1x1xf32> to vector<1x4xf32>
    %138 = arith.select %135, %137, %28 : vector<1x4xi1>, vector<1x4xf32>
    %139 = tpu.concatenate %131, %46 in 1 : vector<1x32xf32>, vector<1x32xf32> -> vector<1x64xf32>
    %cst_26 = arith.constant dense<0.000000e+00> : vector<1x128xf32>
    %140 = tpu.matmul %139, %5, %cst_26 {dimension_numbers = #tpu.dot_dimension_numbers<[1], [0], [0], [1], [0, 0, 1, 1], [], []>} : vector<1x64xf32>, vector<64x128xf32>, vector<1x128xf32> -> vector<1x128xf32>
    %141 = arith.addf %140, %14 : vector<1x128xf32>
    %142 = arith.negf %141 : vector<1x128xf32>
    %143 = math.exp %142 : vector<1x128xf32>
    %cst_27 = arith.constant 1.000000e+00 : f32
    %144 = vector.broadcast %cst_27 : f32 to vector<1x128xf32>
    %145 = arith.addf %144, %143 : vector<1x128xf32>
    %146 = arith.divf %144, %145 : vector<1x128xf32>
    %147 = math.tanh %141 : vector<1x128xf32>
    %148 = vector.extract_strided_slice %146 {offsets = [0, 0], sizes = [1, 32], strides = [1, 1]} : vector<1x128xf32> to vector<1x32xf32>
    %149 = vector.extract_strided_slice %146 {offsets = [0, 32], sizes = [1, 32], strides = [1, 1]} : vector<1x128xf32> to vector<1x32xf32>
    %150 = vector.extract_strided_slice %147 {offsets = [0, 64], sizes = [1, 32], strides = [1, 1]} : vector<1x128xf32> to vector<1x32xf32>
    %151 = vector.extract_strided_slice %146 {offsets = [0, 96], sizes = [1, 32], strides = [1, 1]} : vector<1x128xf32> to vector<1x32xf32>
    %152 = arith.mulf %149, %44 : vector<1x32xf32>
    %153 = arith.mulf %148, %150 : vector<1x32xf32>
    %154 = arith.addf %152, %153 : vector<1x32xf32>
    %155 = math.tanh %154 : vector<1x32xf32>
    %156 = arith.mulf %151, %155 : vector<1x32xf32>
    %157 = tpu.concatenate %156, %64 in 1 : vector<1x32xf32>, vector<1x32xf32> -> vector<1x64xf32>
    %cst_28 = arith.constant dense<0.000000e+00> : vector<1x128xf32>
    %158 = tpu.matmul %157, %6, %cst_28 {dimension_numbers = #tpu.dot_dimension_numbers<[1], [0], [0], [1], [0, 0, 1, 1], [], []>} : vector<1x64xf32>, vector<64x128xf32>, vector<1x128xf32> -> vector<1x128xf32>
    %159 = arith.addf %158, %15 : vector<1x128xf32>
    %160 = arith.negf %159 : vector<1x128xf32>
    %161 = math.exp %160 : vector<1x128xf32>
    %cst_29 = arith.constant 1.000000e+00 : f32
    %162 = vector.broadcast %cst_29 : f32 to vector<1x128xf32>
    %163 = arith.addf %162, %161 : vector<1x128xf32>
    %164 = arith.divf %162, %163 : vector<1x128xf32>
    %165 = math.tanh %159 : vector<1x128xf32>
    %166 = vector.extract_strided_slice %164 {offsets = [0, 0], sizes = [1, 32], strides = [1, 1]} : vector<1x128xf32> to vector<1x32xf32>
    %167 = vector.extract_strided_slice %164 {offsets = [0, 32], sizes = [1, 32], strides = [1, 1]} : vector<1x128xf32> to vector<1x32xf32>
    %168 = vector.extract_strided_slice %165 {offsets = [0, 64], sizes = [1, 32], strides = [1, 1]} : vector<1x128xf32> to vector<1x32xf32>
    %169 = vector.extract_strided_slice %164 {offsets = [0, 96], sizes = [1, 32], strides = [1, 1]} : vector<1x128xf32> to vector<1x32xf32>
    %170 = arith.mulf %167, %62 : vector<1x32xf32>
    %171 = arith.mulf %166, %168 : vector<1x32xf32>
    %172 = arith.addf %170, %171 : vector<1x32xf32>
    %173 = math.tanh %172 : vector<1x32xf32>
    %174 = arith.mulf %169, %173 : vector<1x32xf32>
    %cst_30 = arith.constant dense<0.000000e+00> : vector<1x32xf32>
    %175 = tpu.matmul %174, %4, %cst_30 {dimension_numbers = #tpu.dot_dimension_numbers<[1], [0], [0], [1], [0, 0, 1, 1], [], []>} : vector<1x32xf32>, vector<32x32xf32>, vector<1x32xf32> -> vector<1x32xf32>
    %176 = vector.broadcast %175 : vector<1x32xf32> to vector<8x32xf32>
    %177 = arith.addf %21, %176 : vector<8x32xf32>
    %178 = math.tanh %177 : vector<8x32xf32>
    %179 = vector.broadcast %8 : vector<1x32xf32> to vector<8x32xf32>
    %180 = arith.mulf %178, %179 : vector<8x32xf32>
    %cst_31 = arith.constant dense<0.000000e+00> : vector<8xf32>
    %181 = vector.multi_reduction <add>, %180, %cst_31 [1] : vector<8x32xf32> to vector<8xf32>
    %182 = vector.shape_cast %181 : vector<8xf32> to vector<8x1xf32>
    %cst_32 = arith.constant dense<0xFF800000> : vector<1xf32>
    %183 = vector.multi_reduction <maximumf>, %182, %cst_32 [0] : vector<8x1xf32> to vector<1xf32>
    %184 = vector.shape_cast %183 : vector<1xf32> to vector<1x1xf32>
    %185 = vector.broadcast %184 : vector<1x1xf32> to vector<8x1xf32>
    %186 = arith.subf %182, %185 : vector<8x1xf32>
    %187 = math.exp %186 : vector<8x1xf32>
    %cst_33 = arith.constant dense<0.000000e+00> : vector<1xf32>
    %188 = vector.multi_reduction <add>, %187, %cst_33 [0] : vector<8x1xf32> to vector<1xf32>
    %189 = vector.shape_cast %188 : vector<1xf32> to vector<1x1xf32>
    %190 = tpu.reciprocal %189 {approx = true} : vector<1x1xf32> -> vector<1x1xf32>
    %191 = vector.broadcast %190 : vector<1x1xf32> to vector<8x1xf32>
    %192 = arith.mulf %187, %191 : vector<8x1xf32>
    %193 = vector.broadcast %192 : vector<8x1xf32> to vector<8x32xf32>
    %194 = arith.mulf %193, %21 : vector<8x32xf32>
    %cst_34 = arith.constant dense<0.000000e+00> : vector<32xf32>
    %195 = vector.multi_reduction <add>, %194, %cst_34 [0] : vector<8x32xf32> to vector<32xf32>
    %196 = vector.shape_cast %195 : vector<32xf32> to vector<1x32xf32>
    %cst_35 = arith.constant dense<0.000000e+00> : vector<1x32xf32>
    %197 = tpu.matmul %196, %4, %cst_35 {dimension_numbers = #tpu.dot_dimension_numbers<[1], [0], [0], [1], [0, 0, 1, 1], [], []>} : vector<1x32xf32>, vector<32x32xf32>, vector<1x32xf32> -> vector<1x32xf32>
    %198 = vector.broadcast %197 : vector<1x32xf32> to vector<8x32xf32>
    %199 = arith.addf %21, %198 : vector<8x32xf32>
    %200 = math.tanh %199 : vector<8x32xf32>
    %201 = vector.broadcast %8 : vector<1x32xf32> to vector<8x32xf32>
    %202 = arith.mulf %200, %201 : vector<8x32xf32>
    %cst_36 = arith.constant dense<0.000000e+00> : vector<8xf32>
    %203 = vector.multi_reduction <add>, %202, %cst_36 [1] : vector<8x32xf32> to vector<8xf32>
    %204 = vector.shape_cast %203 : vector<8xf32> to vector<8x1xf32>
    %cst_37 = arith.constant dense<0xFF800000> : vector<1xf32>
    %205 = vector.multi_reduction <maximumf>, %204, %cst_37 [0] : vector<8x1xf32> to vector<1xf32>
    %206 = vector.shape_cast %205 : vector<1xf32> to vector<1x1xf32>
    %207 = vector.broadcast %206 : vector<1x1xf32> to vector<8x1xf32>
    %208 = arith.subf %204, %207 : vector<8x1xf32>
    %209 = math.exp %208 : vector<8x1xf32>
    %cst_38 = arith.constant dense<0.000000e+00> : vector<1xf32>
    %210 = vector.multi_reduction <add>, %209, %cst_38 [0] : vector<8x1xf32> to vector<1xf32>
    %211 = vector.shape_cast %210 : vector<1xf32> to vector<1x1xf32>
    %212 = tpu.reciprocal %211 {approx = true} : vector<1x1xf32> -> vector<1x1xf32>
    %213 = vector.broadcast %212 : vector<1x1xf32> to vector<8x1xf32>
    %214 = arith.mulf %209, %213 : vector<8x1xf32>
    %215 = vector.broadcast %214 : vector<8x1xf32> to vector<8x32xf32>
    %216 = arith.mulf %215, %21 : vector<8x32xf32>
    %cst_39 = arith.constant dense<0.000000e+00> : vector<32xf32>
    %217 = vector.multi_reduction <add>, %216, %cst_39 [0] : vector<8x32xf32> to vector<32xf32>
    %218 = vector.shape_cast %217 : vector<32xf32> to vector<1x32xf32>
    %cst_40 = arith.constant dense<0.000000e+00> : vector<1x32xf32>
    %219 = tpu.matmul %218, %3, %cst_40 {dimension_numbers = #tpu.dot_dimension_numbers<[1], [0], [0], [1], [0, 0, 1, 1], [], []>} : vector<1x32xf32>, vector<32x32xf32>, vector<1x32xf32> -> vector<1x32xf32>
    %220 = vector.broadcast %219 : vector<1x32xf32> to vector<8x32xf32>
    %221 = arith.addf %20, %220 : vector<8x32xf32>
    %222 = math.tanh %221 : vector<8x32xf32>
    %223 = vector.broadcast %7 : vector<1x32xf32> to vector<8x32xf32>
    %224 = arith.mulf %222, %223 : vector<8x32xf32>
    %cst_41 = arith.constant dense<0.000000e+00> : vector<8xf32>
    %225 = vector.multi_reduction <add>, %224, %cst_41 [1] : vector<8x32xf32> to vector<8xf32>
    %226 = vector.shape_cast %225 : vector<8xf32> to vector<8x1xf32>
    %cst_42 = arith.constant dense<0xFF800000> : vector<1xf32>
    %227 = vector.multi_reduction <maximumf>, %226, %cst_42 [0] : vector<8x1xf32> to vector<1xf32>
    %228 = vector.shape_cast %227 : vector<1xf32> to vector<1x1xf32>
    %229 = vector.broadcast %228 : vector<1x1xf32> to vector<8x1xf32>
    %230 = arith.subf %226, %229 : vector<8x1xf32>
    %231 = math.exp %230 : vector<8x1xf32>
    %cst_43 = arith.constant dense<0.000000e+00> : vector<1xf32>
    %232 = vector.multi_reduction <add>, %231, %cst_43 [0] : vector<8x1xf32> to vector<1xf32>
    %233 = vector.shape_cast %232 : vector<1xf32> to vector<1x1xf32>
    %234 = tpu.reciprocal %233 {approx = true} : vector<1x1xf32> -> vector<1x1xf32>
    %235 = vector.broadcast %234 : vector<1x1xf32> to vector<8x1xf32>
    %236 = arith.mulf %231, %235 : vector<8x1xf32>
    %237 = vector.broadcast %236 : vector<8x1xf32> to vector<8x33xf32>
    %238 = arith.mulf %237, %26 : vector<8x33xf32>
    %cst_44 = arith.constant dense<0.000000e+00> : vector<33xf32>
    %239 = vector.multi_reduction <add>, %238, %cst_44 [0] : vector<8x33xf32> to vector<33xf32>
    %240 = vector.shape_cast %239 : vector<33xf32> to vector<1x33xf32>
    %241 = vector.extract_strided_slice %240 {offsets = [0, 0], sizes = [1, 32], strides = [1, 1]} : vector<1x33xf32> to vector<1x32xf32>
    %242 = vector.extract_strided_slice %240 {offsets = [0, 32], sizes = [1, 1], strides = [1, 1]} : vector<1x33xf32> to vector<1x1xf32>
    %243 = arith.addf %242, %17 : vector<1x1xf32>
    %c1_i32 = arith.constant 1 : i32
    %244 = vector.broadcast %c1_i32 : i32 to vector<1x4xi32>
    %245 = arith.cmpi eq, %27, %244 : vector<1x4xi32>
    %246 = vector.shape_cast %243 : vector<1x1xf32> to vector<1x1xf32>
    %247 = vector.broadcast %246 : vector<1x1xf32> to vector<1x4xf32>
    %248 = arith.select %245, %247, %138 : vector<1x4xi1>, vector<1x4xf32>
    %249 = tpu.concatenate %241, %156 in 1 : vector<1x32xf32>, vector<1x32xf32> -> vector<1x64xf32>
    %cst_45 = arith.constant dense<0.000000e+00> : vector<1x128xf32>
    %250 = tpu.matmul %249, %5, %cst_45 {dimension_numbers = #tpu.dot_dimension_numbers<[1], [0], [0], [1], [0, 0, 1, 1], [], []>} : vector<1x64xf32>, vector<64x128xf32>, vector<1x128xf32> -> vector<1x128xf32>
    %251 = arith.addf %250, %14 : vector<1x128xf32>
    %252 = arith.negf %251 : vector<1x128xf32>
    %253 = math.exp %252 : vector<1x128xf32>
    %cst_46 = arith.constant 1.000000e+00 : f32
    %254 = vector.broadcast %cst_46 : f32 to vector<1x128xf32>
    %255 = arith.addf %254, %253 : vector<1x128xf32>
    %256 = arith.divf %254, %255 : vector<1x128xf32>
    %257 = math.tanh %251 : vector<1x128xf32>
    %258 = vector.extract_strided_slice %256 {offsets = [0, 0], sizes = [1, 32], strides = [1, 1]} : vector<1x128xf32> to vector<1x32xf32>
    %259 = vector.extract_strided_slice %256 {offsets = [0, 32], sizes = [1, 32], strides = [1, 1]} : vector<1x128xf32> to vector<1x32xf32>
    %260 = vector.extract_strided_slice %257 {offsets = [0, 64], sizes = [1, 32], strides = [1, 1]} : vector<1x128xf32> to vector<1x32xf32>
    %261 = vector.extract_strided_slice %256 {offsets = [0, 96], sizes = [1, 32], strides = [1, 1]} : vector<1x128xf32> to vector<1x32xf32>
    %262 = arith.mulf %259, %154 : vector<1x32xf32>
    %263 = arith.mulf %258, %260 : vector<1x32xf32>
    %264 = arith.addf %262, %263 : vector<1x32xf32>
    %265 = math.tanh %264 : vector<1x32xf32>
    %266 = arith.mulf %261, %265 : vector<1x32xf32>
    %267 = tpu.concatenate %266, %174 in 1 : vector<1x32xf32>, vector<1x32xf32> -> vector<1x64xf32>
    %cst_47 = arith.constant dense<0.000000e+00> : vector<1x128xf32>
    %268 = tpu.matmul %267, %6, %cst_47 {dimension_numbers = #tpu.dot_dimension_numbers<[1], [0], [0], [1], [0, 0, 1, 1], [], []>} : vector<1x64xf32>, vector<64x128xf32>, vector<1x128xf32> -> vector<1x128xf32>
    %269 = arith.addf %268, %15 : vector<1x128xf32>
    %270 = arith.negf %269 : vector<1x128xf32>
    %271 = math.exp %270 : vector<1x128xf32>
    %cst_48 = arith.constant 1.000000e+00 : f32
    %272 = vector.broadcast %cst_48 : f32 to vector<1x128xf32>
    %273 = arith.addf %272, %271 : vector<1x128xf32>
    %274 = arith.divf %272, %273 : vector<1x128xf32>
    %275 = math.tanh %269 : vector<1x128xf32>
    %276 = vector.extract_strided_slice %274 {offsets = [0, 0], sizes = [1, 32], strides = [1, 1]} : vector<1x128xf32> to vector<1x32xf32>
    %277 = vector.extract_strided_slice %274 {offsets = [0, 32], sizes = [1, 32], strides = [1, 1]} : vector<1x128xf32> to vector<1x32xf32>
    %278 = vector.extract_strided_slice %275 {offsets = [0, 64], sizes = [1, 32], strides = [1, 1]} : vector<1x128xf32> to vector<1x32xf32>
    %279 = vector.extract_strided_slice %274 {offsets = [0, 96], sizes = [1, 32], strides = [1, 1]} : vector<1x128xf32> to vector<1x32xf32>
    %280 = arith.mulf %277, %172 : vector<1x32xf32>
    %281 = arith.mulf %276, %278 : vector<1x32xf32>
    %282 = arith.addf %280, %281 : vector<1x32xf32>
    %283 = math.tanh %282 : vector<1x32xf32>
    %284 = arith.mulf %279, %283 : vector<1x32xf32>
    %cst_49 = arith.constant dense<0.000000e+00> : vector<1x32xf32>
    %285 = tpu.matmul %284, %4, %cst_49 {dimension_numbers = #tpu.dot_dimension_numbers<[1], [0], [0], [1], [0, 0, 1, 1], [], []>} : vector<1x32xf32>, vector<32x32xf32>, vector<1x32xf32> -> vector<1x32xf32>
    %286 = vector.broadcast %285 : vector<1x32xf32> to vector<8x32xf32>
    %287 = arith.addf %21, %286 : vector<8x32xf32>
    %288 = math.tanh %287 : vector<8x32xf32>
    %289 = vector.broadcast %8 : vector<1x32xf32> to vector<8x32xf32>
    %290 = arith.mulf %288, %289 : vector<8x32xf32>
    %cst_50 = arith.constant dense<0.000000e+00> : vector<8xf32>
    %291 = vector.multi_reduction <add>, %290, %cst_50 [1] : vector<8x32xf32> to vector<8xf32>
    %292 = vector.shape_cast %291 : vector<8xf32> to vector<8x1xf32>
    %cst_51 = arith.constant dense<0xFF800000> : vector<1xf32>
    %293 = vector.multi_reduction <maximumf>, %292, %cst_51 [0] : vector<8x1xf32> to vector<1xf32>
    %294 = vector.shape_cast %293 : vector<1xf32> to vector<1x1xf32>
    %295 = vector.broadcast %294 : vector<1x1xf32> to vector<8x1xf32>
    %296 = arith.subf %292, %295 : vector<8x1xf32>
    %297 = math.exp %296 : vector<8x1xf32>
    %cst_52 = arith.constant dense<0.000000e+00> : vector<1xf32>
    %298 = vector.multi_reduction <add>, %297, %cst_52 [0] : vector<8x1xf32> to vector<1xf32>
    %299 = vector.shape_cast %298 : vector<1xf32> to vector<1x1xf32>
    %300 = tpu.reciprocal %299 {approx = true} : vector<1x1xf32> -> vector<1x1xf32>
    %301 = vector.broadcast %300 : vector<1x1xf32> to vector<8x1xf32>
    %302 = arith.mulf %297, %301 : vector<8x1xf32>
    %303 = vector.broadcast %302 : vector<8x1xf32> to vector<8x32xf32>
    %304 = arith.mulf %303, %21 : vector<8x32xf32>
    %cst_53 = arith.constant dense<0.000000e+00> : vector<32xf32>
    %305 = vector.multi_reduction <add>, %304, %cst_53 [0] : vector<8x32xf32> to vector<32xf32>
    %306 = vector.shape_cast %305 : vector<32xf32> to vector<1x32xf32>
    %cst_54 = arith.constant dense<0.000000e+00> : vector<1x32xf32>
    %307 = tpu.matmul %306, %4, %cst_54 {dimension_numbers = #tpu.dot_dimension_numbers<[1], [0], [0], [1], [0, 0, 1, 1], [], []>} : vector<1x32xf32>, vector<32x32xf32>, vector<1x32xf32> -> vector<1x32xf32>
    %308 = vector.broadcast %307 : vector<1x32xf32> to vector<8x32xf32>
    %309 = arith.addf %21, %308 : vector<8x32xf32>
    %310 = math.tanh %309 : vector<8x32xf32>
    %311 = vector.broadcast %8 : vector<1x32xf32> to vector<8x32xf32>
    %312 = arith.mulf %310, %311 : vector<8x32xf32>
    %cst_55 = arith.constant dense<0.000000e+00> : vector<8xf32>
    %313 = vector.multi_reduction <add>, %312, %cst_55 [1] : vector<8x32xf32> to vector<8xf32>
    %314 = vector.shape_cast %313 : vector<8xf32> to vector<8x1xf32>
    %cst_56 = arith.constant dense<0xFF800000> : vector<1xf32>
    %315 = vector.multi_reduction <maximumf>, %314, %cst_56 [0] : vector<8x1xf32> to vector<1xf32>
    %316 = vector.shape_cast %315 : vector<1xf32> to vector<1x1xf32>
    %317 = vector.broadcast %316 : vector<1x1xf32> to vector<8x1xf32>
    %318 = arith.subf %314, %317 : vector<8x1xf32>
    %319 = math.exp %318 : vector<8x1xf32>
    %cst_57 = arith.constant dense<0.000000e+00> : vector<1xf32>
    %320 = vector.multi_reduction <add>, %319, %cst_57 [0] : vector<8x1xf32> to vector<1xf32>
    %321 = vector.shape_cast %320 : vector<1xf32> to vector<1x1xf32>
    %322 = tpu.reciprocal %321 {approx = true} : vector<1x1xf32> -> vector<1x1xf32>
    %323 = vector.broadcast %322 : vector<1x1xf32> to vector<8x1xf32>
    %324 = arith.mulf %319, %323 : vector<8x1xf32>
    %325 = vector.broadcast %324 : vector<8x1xf32> to vector<8x32xf32>
    %326 = arith.mulf %325, %21 : vector<8x32xf32>
    %cst_58 = arith.constant dense<0.000000e+00> : vector<32xf32>
    %327 = vector.multi_reduction <add>, %326, %cst_58 [0] : vector<8x32xf32> to vector<32xf32>
    %328 = vector.shape_cast %327 : vector<32xf32> to vector<1x32xf32>
    %cst_59 = arith.constant dense<0.000000e+00> : vector<1x32xf32>
    %329 = tpu.matmul %328, %3, %cst_59 {dimension_numbers = #tpu.dot_dimension_numbers<[1], [0], [0], [1], [0, 0, 1, 1], [], []>} : vector<1x32xf32>, vector<32x32xf32>, vector<1x32xf32> -> vector<1x32xf32>
    %330 = vector.broadcast %329 : vector<1x32xf32> to vector<8x32xf32>
    %331 = arith.addf %20, %330 : vector<8x32xf32>
    %332 = math.tanh %331 : vector<8x32xf32>
    %333 = vector.broadcast %7 : vector<1x32xf32> to vector<8x32xf32>
    %334 = arith.mulf %332, %333 : vector<8x32xf32>
    %cst_60 = arith.constant dense<0.000000e+00> : vector<8xf32>
    %335 = vector.multi_reduction <add>, %334, %cst_60 [1] : vector<8x32xf32> to vector<8xf32>
    %336 = vector.shape_cast %335 : vector<8xf32> to vector<8x1xf32>
    %cst_61 = arith.constant dense<0xFF800000> : vector<1xf32>
    %337 = vector.multi_reduction <maximumf>, %336, %cst_61 [0] : vector<8x1xf32> to vector<1xf32>
    %338 = vector.shape_cast %337 : vector<1xf32> to vector<1x1xf32>
    %339 = vector.broadcast %338 : vector<1x1xf32> to vector<8x1xf32>
    %340 = arith.subf %336, %339 : vector<8x1xf32>
    %341 = math.exp %340 : vector<8x1xf32>
    %cst_62 = arith.constant dense<0.000000e+00> : vector<1xf32>
    %342 = vector.multi_reduction <add>, %341, %cst_62 [0] : vector<8x1xf32> to vector<1xf32>
    %343 = vector.shape_cast %342 : vector<1xf32> to vector<1x1xf32>
    %344 = tpu.reciprocal %343 {approx = true} : vector<1x1xf32> -> vector<1x1xf32>
    %345 = vector.broadcast %344 : vector<1x1xf32> to vector<8x1xf32>
    %346 = arith.mulf %341, %345 : vector<8x1xf32>
    %347 = vector.broadcast %346 : vector<8x1xf32> to vector<8x33xf32>
    %348 = arith.mulf %347, %26 : vector<8x33xf32>
    %cst_63 = arith.constant dense<0.000000e+00> : vector<33xf32>
    %349 = vector.multi_reduction <add>, %348, %cst_63 [0] : vector<8x33xf32> to vector<33xf32>
    %350 = vector.shape_cast %349 : vector<33xf32> to vector<1x33xf32>
    %351 = vector.extract_strided_slice %350 {offsets = [0, 0], sizes = [1, 32], strides = [1, 1]} : vector<1x33xf32> to vector<1x32xf32>
    %352 = vector.extract_strided_slice %350 {offsets = [0, 32], sizes = [1, 1], strides = [1, 1]} : vector<1x33xf32> to vector<1x1xf32>
    %353 = arith.addf %352, %17 : vector<1x1xf32>
    %c2_i32 = arith.constant 2 : i32
    %354 = vector.broadcast %c2_i32 : i32 to vector<1x4xi32>
    %355 = arith.cmpi eq, %27, %354 : vector<1x4xi32>
    %356 = vector.shape_cast %353 : vector<1x1xf32> to vector<1x1xf32>
    %357 = vector.broadcast %356 : vector<1x1xf32> to vector<1x4xf32>
    %358 = arith.select %355, %357, %248 : vector<1x4xi1>, vector<1x4xf32>
    %359 = tpu.concatenate %351, %266 in 1 : vector<1x32xf32>, vector<1x32xf32> -> vector<1x64xf32>
    %cst_64 = arith.constant dense<0.000000e+00> : vector<1x128xf32>
    %360 = tpu.matmul %359, %5, %cst_64 {dimension_numbers = #tpu.dot_dimension_numbers<[1], [0], [0], [1], [0, 0, 1, 1], [], []>} : vector<1x64xf32>, vector<64x128xf32>, vector<1x128xf32> -> vector<1x128xf32>
    %361 = arith.addf %360, %14 : vector<1x128xf32>
    %362 = arith.negf %361 : vector<1x128xf32>
    %363 = math.exp %362 : vector<1x128xf32>
    %cst_65 = arith.constant 1.000000e+00 : f32
    %364 = vector.broadcast %cst_65 : f32 to vector<1x128xf32>
    %365 = arith.addf %364, %363 : vector<1x128xf32>
    %366 = arith.divf %364, %365 : vector<1x128xf32>
    %367 = math.tanh %361 : vector<1x128xf32>
    %368 = vector.extract_strided_slice %366 {offsets = [0, 0], sizes = [1, 32], strides = [1, 1]} : vector<1x128xf32> to vector<1x32xf32>
    %369 = vector.extract_strided_slice %366 {offsets = [0, 32], sizes = [1, 32], strides = [1, 1]} : vector<1x128xf32> to vector<1x32xf32>
    %370 = vector.extract_strided_slice %367 {offsets = [0, 64], sizes = [1, 32], strides = [1, 1]} : vector<1x128xf32> to vector<1x32xf32>
    %371 = vector.extract_strided_slice %366 {offsets = [0, 96], sizes = [1, 32], strides = [1, 1]} : vector<1x128xf32> to vector<1x32xf32>
    %372 = arith.mulf %369, %264 : vector<1x32xf32>
    %373 = arith.mulf %368, %370 : vector<1x32xf32>
    %374 = arith.addf %372, %373 : vector<1x32xf32>
    %375 = math.tanh %374 : vector<1x32xf32>
    %376 = arith.mulf %371, %375 : vector<1x32xf32>
    %377 = tpu.concatenate %376, %284 in 1 : vector<1x32xf32>, vector<1x32xf32> -> vector<1x64xf32>
    %cst_66 = arith.constant dense<0.000000e+00> : vector<1x128xf32>
    %378 = tpu.matmul %377, %6, %cst_66 {dimension_numbers = #tpu.dot_dimension_numbers<[1], [0], [0], [1], [0, 0, 1, 1], [], []>} : vector<1x64xf32>, vector<64x128xf32>, vector<1x128xf32> -> vector<1x128xf32>
    %379 = arith.addf %378, %15 : vector<1x128xf32>
    %380 = arith.negf %379 : vector<1x128xf32>
    %381 = math.exp %380 : vector<1x128xf32>
    %cst_67 = arith.constant 1.000000e+00 : f32
    %382 = vector.broadcast %cst_67 : f32 to vector<1x128xf32>
    %383 = arith.addf %382, %381 : vector<1x128xf32>
    %384 = arith.divf %382, %383 : vector<1x128xf32>
    %385 = math.tanh %379 : vector<1x128xf32>
    %386 = vector.extract_strided_slice %384 {offsets = [0, 0], sizes = [1, 32], strides = [1, 1]} : vector<1x128xf32> to vector<1x32xf32>
    %387 = vector.extract_strided_slice %384 {offsets = [0, 32], sizes = [1, 32], strides = [1, 1]} : vector<1x128xf32> to vector<1x32xf32>
    %388 = vector.extract_strided_slice %385 {offsets = [0, 64], sizes = [1, 32], strides = [1, 1]} : vector<1x128xf32> to vector<1x32xf32>
    %389 = vector.extract_strided_slice %384 {offsets = [0, 96], sizes = [1, 32], strides = [1, 1]} : vector<1x128xf32> to vector<1x32xf32>
    %390 = arith.mulf %387, %282 : vector<1x32xf32>
    %391 = arith.mulf %386, %388 : vector<1x32xf32>
    %392 = arith.addf %390, %391 : vector<1x32xf32>
    %393 = math.tanh %392 : vector<1x32xf32>
    %394 = arith.mulf %389, %393 : vector<1x32xf32>
    %cst_68 = arith.constant dense<0.000000e+00> : vector<1x32xf32>
    %395 = tpu.matmul %394, %4, %cst_68 {dimension_numbers = #tpu.dot_dimension_numbers<[1], [0], [0], [1], [0, 0, 1, 1], [], []>} : vector<1x32xf32>, vector<32x32xf32>, vector<1x32xf32> -> vector<1x32xf32>
    %396 = vector.broadcast %395 : vector<1x32xf32> to vector<8x32xf32>
    %397 = arith.addf %21, %396 : vector<8x32xf32>
    %398 = math.tanh %397 : vector<8x32xf32>
    %399 = vector.broadcast %8 : vector<1x32xf32> to vector<8x32xf32>
    %400 = arith.mulf %398, %399 : vector<8x32xf32>
    %cst_69 = arith.constant dense<0.000000e+00> : vector<8xf32>
    %401 = vector.multi_reduction <add>, %400, %cst_69 [1] : vector<8x32xf32> to vector<8xf32>
    %402 = vector.shape_cast %401 : vector<8xf32> to vector<8x1xf32>
    %cst_70 = arith.constant dense<0xFF800000> : vector<1xf32>
    %403 = vector.multi_reduction <maximumf>, %402, %cst_70 [0] : vector<8x1xf32> to vector<1xf32>
    %404 = vector.shape_cast %403 : vector<1xf32> to vector<1x1xf32>
    %405 = vector.broadcast %404 : vector<1x1xf32> to vector<8x1xf32>
    %406 = arith.subf %402, %405 : vector<8x1xf32>
    %407 = math.exp %406 : vector<8x1xf32>
    %cst_71 = arith.constant dense<0.000000e+00> : vector<1xf32>
    %408 = vector.multi_reduction <add>, %407, %cst_71 [0] : vector<8x1xf32> to vector<1xf32>
    %409 = vector.shape_cast %408 : vector<1xf32> to vector<1x1xf32>
    %410 = tpu.reciprocal %409 {approx = true} : vector<1x1xf32> -> vector<1x1xf32>
    %411 = vector.broadcast %410 : vector<1x1xf32> to vector<8x1xf32>
    %412 = arith.mulf %407, %411 : vector<8x1xf32>
    %413 = vector.broadcast %412 : vector<8x1xf32> to vector<8x32xf32>
    %414 = arith.mulf %413, %21 : vector<8x32xf32>
    %cst_72 = arith.constant dense<0.000000e+00> : vector<32xf32>
    %415 = vector.multi_reduction <add>, %414, %cst_72 [0] : vector<8x32xf32> to vector<32xf32>
    %416 = vector.shape_cast %415 : vector<32xf32> to vector<1x32xf32>
    %cst_73 = arith.constant dense<0.000000e+00> : vector<1x32xf32>
    %417 = tpu.matmul %416, %4, %cst_73 {dimension_numbers = #tpu.dot_dimension_numbers<[1], [0], [0], [1], [0, 0, 1, 1], [], []>} : vector<1x32xf32>, vector<32x32xf32>, vector<1x32xf32> -> vector<1x32xf32>
    %418 = vector.broadcast %417 : vector<1x32xf32> to vector<8x32xf32>
    %419 = arith.addf %21, %418 : vector<8x32xf32>
    %420 = math.tanh %419 : vector<8x32xf32>
    %421 = vector.broadcast %8 : vector<1x32xf32> to vector<8x32xf32>
    %422 = arith.mulf %420, %421 : vector<8x32xf32>
    %cst_74 = arith.constant dense<0.000000e+00> : vector<8xf32>
    %423 = vector.multi_reduction <add>, %422, %cst_74 [1] : vector<8x32xf32> to vector<8xf32>
    %424 = vector.shape_cast %423 : vector<8xf32> to vector<8x1xf32>
    %cst_75 = arith.constant dense<0xFF800000> : vector<1xf32>
    %425 = vector.multi_reduction <maximumf>, %424, %cst_75 [0] : vector<8x1xf32> to vector<1xf32>
    %426 = vector.shape_cast %425 : vector<1xf32> to vector<1x1xf32>
    %427 = vector.broadcast %426 : vector<1x1xf32> to vector<8x1xf32>
    %428 = arith.subf %424, %427 : vector<8x1xf32>
    %429 = math.exp %428 : vector<8x1xf32>
    %cst_76 = arith.constant dense<0.000000e+00> : vector<1xf32>
    %430 = vector.multi_reduction <add>, %429, %cst_76 [0] : vector<8x1xf32> to vector<1xf32>
    %431 = vector.shape_cast %430 : vector<1xf32> to vector<1x1xf32>
    %432 = tpu.reciprocal %431 {approx = true} : vector<1x1xf32> -> vector<1x1xf32>
    %433 = vector.broadcast %432 : vector<1x1xf32> to vector<8x1xf32>
    %434 = arith.mulf %429, %433 : vector<8x1xf32>
    %435 = vector.broadcast %434 : vector<8x1xf32> to vector<8x32xf32>
    %436 = arith.mulf %435, %21 : vector<8x32xf32>
    %cst_77 = arith.constant dense<0.000000e+00> : vector<32xf32>
    %437 = vector.multi_reduction <add>, %436, %cst_77 [0] : vector<8x32xf32> to vector<32xf32>
    %438 = vector.shape_cast %437 : vector<32xf32> to vector<1x32xf32>
    %cst_78 = arith.constant dense<0.000000e+00> : vector<1x32xf32>
    %439 = tpu.matmul %438, %3, %cst_78 {dimension_numbers = #tpu.dot_dimension_numbers<[1], [0], [0], [1], [0, 0, 1, 1], [], []>} : vector<1x32xf32>, vector<32x32xf32>, vector<1x32xf32> -> vector<1x32xf32>
    %440 = vector.broadcast %439 : vector<1x32xf32> to vector<8x32xf32>
    %441 = arith.addf %20, %440 : vector<8x32xf32>
    %442 = math.tanh %441 : vector<8x32xf32>
    %443 = vector.broadcast %7 : vector<1x32xf32> to vector<8x32xf32>
    %444 = arith.mulf %442, %443 : vector<8x32xf32>
    %cst_79 = arith.constant dense<0.000000e+00> : vector<8xf32>
    %445 = vector.multi_reduction <add>, %444, %cst_79 [1] : vector<8x32xf32> to vector<8xf32>
    %446 = vector.shape_cast %445 : vector<8xf32> to vector<8x1xf32>
    %cst_80 = arith.constant dense<0xFF800000> : vector<1xf32>
    %447 = vector.multi_reduction <maximumf>, %446, %cst_80 [0] : vector<8x1xf32> to vector<1xf32>
    %448 = vector.shape_cast %447 : vector<1xf32> to vector<1x1xf32>
    %449 = vector.broadcast %448 : vector<1x1xf32> to vector<8x1xf32>
    %450 = arith.subf %446, %449 : vector<8x1xf32>
    %451 = math.exp %450 : vector<8x1xf32>
    %cst_81 = arith.constant dense<0.000000e+00> : vector<1xf32>
    %452 = vector.multi_reduction <add>, %451, %cst_81 [0] : vector<8x1xf32> to vector<1xf32>
    %453 = vector.shape_cast %452 : vector<1xf32> to vector<1x1xf32>
    %454 = tpu.reciprocal %453 {approx = true} : vector<1x1xf32> -> vector<1x1xf32>
    %455 = vector.broadcast %454 : vector<1x1xf32> to vector<8x1xf32>
    %456 = arith.mulf %451, %455 : vector<8x1xf32>
    %457 = vector.broadcast %456 : vector<8x1xf32> to vector<8x33xf32>
    %458 = arith.mulf %457, %26 : vector<8x33xf32>
    %cst_82 = arith.constant dense<0.000000e+00> : vector<33xf32>
    %459 = vector.multi_reduction <add>, %458, %cst_82 [0] : vector<8x33xf32> to vector<33xf32>
    %460 = vector.shape_cast %459 : vector<33xf32> to vector<1x33xf32>
    %461 = vector.extract_strided_slice %460 {offsets = [0, 32], sizes = [1, 1], strides = [1, 1]} : vector<1x33xf32> to vector<1x1xf32>
    %462 = arith.addf %461, %17 : vector<1x1xf32>
    %c3_i32 = arith.constant 3 : i32
    %463 = vector.broadcast %c3_i32 : i32 to vector<1x4xi32>
    %464 = arith.cmpi eq, %27, %463 : vector<1x4xi32>
    %465 = vector.shape_cast %462 : vector<1x1xf32> to vector<1x1xf32>
    %466 = vector.broadcast %465 : vector<1x1xf32> to vector<1x4xf32>
    %467 = arith.select %464, %466, %358 : vector<1x4xi1>, vector<1x4xf32>
    %c0_83 = arith.constant 0 : index
    %c0_84 = arith.constant 0 : index
    %468 = vector.load %arg3[%c0_83, %c0_84] : memref<1x4xf32, #tpu.memory_space<vmem>>, vector<1x4xf32>
    tpu.vector_store %arg3[%c0_83, %c0_84], %467 {strides = array<i32>} : memref<1x4xf32, #tpu.memory_space<vmem>>, vector<1x4xf32>,
    return
  }
}

</mosaic_0001>

<llo_original>
// kernel: tpu_custom_call.1
$region0: #{tpu_custom_call.1}
  #allocation0 [shape = 'u32[]', space=smem, size = 0x4, offset = 0x4, fixed_abs, tag = 'smem constant byte address 0x4 - core index']
  #allocation1 [shape = 'u32[144,128]{1,0:T(1,128)}', space=vmem, size = 0x12000, scoped, tag = 'internal scratch']
  %s0 = inlined_call_operand.hbm [shape: f32[8,32], index: 0, kind: input, shape index: {}]
  %s1 = inlined_call_operand.hbm [shape: f32[224,128], index: 1, kind: input, shape index: {}]
  %s2 = inlined_call_operand.hbm [shape: f32[11,128], index: 2, kind: input, shape index: {}]
  %s3 = inlined_call_operand.hbm [shape: f32[1,4], index: 3, kind: output, shape index: {}]
  %s4 = sld [smem:[#allocation0]]
  $region34: #{tpu_custom_call.1} parent=0
    _
  %s6 = ssub.s32 1, %s4
  %s7 = scalar_select 0, %s6, %s4
  $region1: #{tpu_custom_call.1} parent=0
    #allocation2 [shape = 'u8[4096]{0}', space=vmem, size = 0x1000, scoped, tag = 'input window, operand 0, single buffered']
    #allocation3 [shape = 's32[1]{0}', space=sflag, size = 0x4, scoped, tag = 'scoped memory for tpu_custom_call.1']
    #allocation4 [shape = 's32[1]{0}', space=sflag, size = 0x4, scoped, tag = 'scoped memory for tpu_custom_call.1']
    #allocation5 [shape = 'u8[114688]{0}', space=vmem, size = 0x1c000, scoped, tag = 'input window, operand 1, single buffered']
    #allocation6 [shape = 's32[1]{0}', space=sflag, size = 0x4, scoped, tag = 'scoped memory for tpu_custom_call.1']
    #allocation7 [shape = 'u8[8192]{0}', space=vmem, size = 0x2000, scoped, tag = 'input window, operand 2, single buffered']
    #allocation8 [shape = 'u8[512]{0}', space=vmem, size = 0x400, scoped, tag = 'output window, operand 0, single buffered']
    %8 = vsyncpa [#allocation3], 0
    %9 = vsyncpa [#allocation6], 0
    %10 = vsyncpa [#allocation4], 0
    // Predicated region
    $region2: #{tpu_custom_call.1} parent=1 // pred_check
      _
    $region3: #{tpu_custom_call.1} parent=1 // pred_check_branch
      %12 = sbr.rel (0) target = $region5
    $region4: #{tpu_custom_call.1} parent=1 // pred_region
      %s14 = ssub.s32 128, 128
      %15 = vsyncadd [#allocation3], %s14
      %s17 = sshll.u32 [#allocation2], 4
      %s18 = int_to_ptr.vmem [resolvable:$true] %s17
      %20 = dma.hbm_to_vmem [thread:$0]  %s0, 128, %s18, [#allocation3]
    $region5: #{tpu_custom_call.1} parent=1 // pred_fallthru
      _
    // Predicated region
    $region6: #{tpu_custom_call.1} parent=1 // pred_check
      _
    $region7: #{tpu_custom_call.1} parent=1 // pred_check_branch
      %22 = sbr.rel (0) target = $region9
    $region8: #{tpu_custom_call.1} parent=1 // pred_region
      %s24 = ssub.s32 3584, 3584
      %25 = vsyncadd [#allocation6], %s24
      %s26 = sshll.u32 [#allocation5], 4
      %s27 = int_to_ptr.vmem [resolvable:$true] %s26
      %32 = dma.hbm_to_vmem [thread:$0]  %s1, 3584, %s27, [#allocation6], 128, 128, 8
    $region9: #{tpu_custom_call.1} parent=1 // pred_fallthru
      _
    // Predicated region
    $region10: #{tpu_custom_call.1} parent=1 // pred_check
      _
    $region11: #{tpu_custom_call.1} parent=1 // pred_check_branch
      %34 = sbr.rel (0) target = $region13
    $region12: #{tpu_custom_call.1} parent=1 // pred_region
      %s36 = ssub.s32 256, 256
      %37 = vsyncadd [#allocation6], %s36
      %s38 = sshll.u32 [#allocation7], 4
      %s39 = int_to_ptr.vmem [resolvable:$true] %s38
      %44 = dma.hbm_to_vmem [thread:$0]  %s2, 256, %s39, [#allocation6], 128, 128, 8
    $region13: #{tpu_custom_call.1} parent=1 // pred_fallthru
      _
    // Predicated region
    $region14: #{tpu_custom_call.1} parent=1 // pred_check
      _
    $region15: #{tpu_custom_call.1} parent=1 // pred_check_branch
      %46 = sbr.rel (0) target = $region17
    $region16: #{tpu_custom_call.1} parent=1 // pred_region
      %47 = dma.done [#allocation3], 128
    $region17: #{tpu_custom_call.1} parent=1 // pred_fallthru
      _
    // Predicated region
    $region18: #{tpu_custom_call.1} parent=1 // pred_check
      _
    $region19: #{tpu_custom_call.1} parent=1 // pred_check_branch
      %49 = sbr.rel (0) target = $region21
    $region20: #{tpu_custom_call.1} parent=1 // pred_region
      %50 = dma.done [#allocation6], 3584
    $region21: #{tpu_custom_call.1} parent=1 // pred_fallthru
      _
    // Predicated region
    $region22: #{tpu_custom_call.1} parent=1 // pred_check
      _
    $region23: #{tpu_custom_call.1} parent=1 // pred_check_branch
      %52 = sbr.rel (0) target = $region25
    $region24: #{tpu_custom_call.1} parent=1 // pred_region
      %53 = dma.done [#allocation6], 256
    $region25: #{tpu_custom_call.1} parent=1 // pred_fallthru
      _
    %v54 = vld [vmem:[#allocation5] sm:$0xff]
    %v55 = vld [vmem:[#allocation5 + $0x8] sm:$0xff]
    %v56 = vld [vmem:[#allocation5 + $0x10] sm:$0xff]
    %v57 = vld [vmem:[#allocation5 + $0x18] sm:$0xff]
    %v58 = vld [vmem:[#allocation5 + $0x20] sm:$0xff]
    %v59 = vld [vmem:[#allocation5 + $0x28] sm:$0xff]
    %v60 = vld [vmem:[#allocation5 + $0x30] sm:$0xff]
    %v61 = vld [vmem:[#allocation5 + $0x38] sm:$0xff]
    %v62 = vld [vmem:[#allocation5 + $0x40] sm:$0xff]
    %v63 = vld [vmem:[#allocation5 + $0x48] sm:$0xff]
    %v64 = vld [vmem:[#allocation5 + $0x50] sm:$0xff]
    %v65 = vld [vmem:[#allocation5 + $0x58] sm:$0xff]
    %v66 = vld [vmem:[#allocation5 + $0x60] sm:$0xff]
    %v67 = vld [vmem:[#allocation5 + $0x68] sm:$0xff]
    %v68 = vld [vmem:[#allocation5 + $0x70] sm:$0xff]
    %v69 = vld [vmem:[#allocation5 + $0x78] sm:$0xff]
    %v70 = vld [vmem:[#allocation5 + $0x80] sm:$0xff]
    %v71 = vld [vmem:[#allocation5 + $0x88] sm:$0xff]
    %v72 = vld [vmem:[#allocation5 + $0x90] sm:$0xff]
    %v73 = vld [vmem:[#allocation5 + $0x98] sm:$0xff]
    %v74 = vld [vmem:[#allocation5 + $0xa0] sm:$0xff]
    %v75 = vld [vmem:[#allocation5 + $0xa8] sm:$0xff]
    %v76 = vld [vmem:[#allocation5 + $0xb0] sm:$0xff]
    %v77 = vld [vmem:[#allocation5 + $0xb8] sm:$0xff]
    %v78 = vld [vmem:[#allocation5 + $0xc0] sm:$0xff]
    %v79 = vld [vmem:[#allocation5 + $0xc8] sm:$0xff]
    %v80 = vld [vmem:[#allocation5 + $0xd0] sm:$0xff]
    %v81 = vld [vmem:[#allocation5 + $0xd8] sm:$0xff]
    %v82 = vld [vmem:[#allocation7] sm:$0xff]
    %v83 = vld [vmem:[#allocation7 + $0x8] sm:$0x7]
    %v84 = vld [vmem:[#allocation2] sm:$0xff]
    %vm85 = vcmask 261120
    %v87 = vsel %vm85, %v84, 0
    %89 = vmatprep.subr.mxu0 0.0
    %90 = vmatpush1.msra.mxu0 %v54
    %91 = vmatprep.subr.mxu0 0.0
    %92 = vmatpush1.msra.mxu0 %v55
    %93 = vmatprep.subr.mxu0 0.0
    %94 = vmatpush1.msra.mxu0 %v56
    %95 = vmatprep.subr.mxu0 0.0
    %96 = vmatpush1.msra.mxu0 %v57
    %97 = vmatprep.subr.mxu0 0.0
    %98 = vmatpush1.msra.mxu0 0.0
    %99 = vmatprep.subr.mxu0 0.0
    %100 = vmatpush1.msra.mxu0 0.0
    %101 = vmatprep.subr.mxu0 0.0
    %102 = vmatpush1.msra.mxu0 0.0
    %103 = vmatprep.subr.mxu0 0.0
    %104 = vmatpush1.msra.mxu0 0.0
    %105 = vmatprep.subr.mxu0 0.0
    %106 = vmatpush1.msra.mxu0 0.0
    %107 = vmatprep.subr.mxu0 0.0
    %108 = vmatpush1.msra.mxu0 0.0
    %109 = vmatprep.subr.mxu0 0.0
    %110 = vmatpush1.msra.mxu0 0.0
    %111 = vmatprep.subr.mxu0 0.0
    %112 = vmatpush1.msra.mxu0 0.0
    %113 = vmatprep.subr.mxu0 0.0
    %114 = vmatpush1.msra.mxu0 0.0
    %115 = vmatprep.subr.mxu0 0.0
    %116 = vmatpush1.msra.mxu0 0.0
    %117 = vmatprep.subr.mxu0 0.0
    %118 = vmatpush1.msra.mxu0 0.0
    %119 = vmatprep.subr.mxu0 0.0
    %120 = vmatpush1.msra.mxu0 0.0
    %121 = vmatprep.subr.mxu0 0.0
    %122 = vmatpush1.msra.mxu0 0.0
    %123 = vmatprep.subr.mxu0 0.0
    %124 = vmatpush1.msra.mxu0 0.0
    %125 = vmatprep.subr.mxu0 0.0
    %126 = vmatpush1.msra.mxu0 0.0
    %127 = vmatprep.subr.mxu0 0.0
    %128 = vmatpush1.msra.mxu0 0.0
    %129 = vmatprep.subr.mxu0 0.0
    %130 = vmatpush1.msra.mxu0 0.0
    %131 = vmatprep.subr.mxu0 0.0
    %132 = vmatpush1.msra.mxu0 0.0
    %133 = vmatprep.subr.mxu0 0.0
    %134 = vmatpush1.msra.mxu0 0.0
    %135 = vmatprep.subr.mxu0 0.0
    %136 = vmatpush1.msra.mxu0 0.0
    %137 = vmatprep.subr.mxu0 0.0
    %138 = vmatpush1.msra.mxu0 0.0
    %139 = vmatprep.subr.mxu0 0.0
    %140 = vmatpush1.msra.mxu0 0.0
    %141 = vmatprep.subr.mxu0 0.0
    %142 = vmatpush1.msra.mxu0 0.0
    %143 = vmatprep.subr.mxu0 0.0
    %144 = vmatpush1.msra.mxu0 0.0
    %145 = vmatprep.subr.mxu0 0.0
    %146 = vmatpush1.msra.mxu0 0.0
    %147 = vmatprep.subr.mxu0 0.0
    %148 = vmatpush1.msra.mxu0 0.0
    %149 = vmatprep.subr.mxu0 0.0
    %150 = vmatpush1.msra.mxu0 0.0
    %151 = vmatprep.subr.mxu0 0.0
    %152 = vmatpush1.msra.mxu0 0.0
    %153 = vmatprep.mubr.f32.mxu0 0.0
    %154 = vmatmul.mubr.f32.gmra.mrb[0].mxu0 %v87
    %v155 = vpop.f32.mrb[0].mxu0
    %v156 = vadd.f32 0.0, %v155
    %v157 = vpop.f32.mrb[0].mxu0
    %158 = vdwg.mxu0
    %v159 = vlaneseq
    %v160 = vshrl.u32 %v159, 7
    %v161 = vsub.s32 1, %v160
    %v162 = vrot.slane %v83, %v161
    %v163 = vmul.f32 %v84, %v162
    %v164 = vsel %vm85, %v163, 0.0
    %165 = vadd.xlane.f32.xlu0 %v164
    %v166 = vpop.xlane.xlu0 %165
    %v167 = vsel %vm85, %v84, %v166
    %v168 = vlaneseq
    %v169 = vand.u32 %v168, 127
    %v171 = vrot.slane %v82, 1
    %172 = vrot.lane.b32.xlu0 %v171, 32
    %v173 = vpop.permute.xlu0 %172
    %v175 = vsel %vm85, %v82, %v173
    %v177 = vrot.slane %v175, 2
    %v178 = vrot.slane %v82, 7
    %vm180 = vcmask 523264
    %v181 = vsel %vm180, %v177, 0
    %183 = vmatprep.subr.mxu0 0.0
    %184 = vmatpush1.msra.mxu0 %v66
    %185 = vmatprep.subr.mxu0 0.0
    %186 = vmatpush1.msra.mxu0 %v67
    %187 = vmatprep.subr.mxu0 0.0
    %188 = vmatpush1.msra.mxu0 %v68
    %189 = vmatprep.subr.mxu0 0.0
    %190 = vmatpush1.msra.mxu0 %v69
    %191 = vmatprep.subr.mxu0 0.0
    %192 = vmatpush1.msra.mxu0 %v70
    %193 = vmatprep.subr.mxu0 0.0
    %194 = vmatpush1.msra.mxu0 %v71
    %195 = vmatprep.subr.mxu0 0.0
    %196 = vmatpush1.msra.mxu0 %v72
    %197 = vmatprep.subr.mxu0 0.0
    %198 = vmatpush1.msra.mxu0 %v73
    %199 = vmatprep.subr.mxu0 0.0
    %200 = vmatpush1.msra.mxu0 0.0
    %201 = vmatprep.subr.mxu0 0.0
    %202 = vmatpush1.msra.mxu0 0.0
    %203 = vmatprep.subr.mxu0 0.0
    %204 = vmatpush1.msra.mxu0 0.0
    %205 = vmatprep.subr.mxu0 0.0
    %206 = vmatpush1.msra.mxu0 0.0
    %207 = vmatprep.subr.mxu0 0.0
    %208 = vmatpush1.msra.mxu0 0.0
    %209 = vmatprep.subr.mxu0 0.0
    %210 = vmatpush1.msra.mxu0 0.0
    %211 = vmatprep.subr.mxu0 0.0
    %212 = vmatpush1.msra.mxu0 0.0
    %213 = vmatprep.subr.mxu0 0.0
    %214 = vmatpush1.msra.mxu0 0.0
    %215 = vmatprep.subr.mxu0 0.0
    %216 = vmatpush1.msra.mxu0 0.0
    %217 = vmatprep.subr.mxu0 0.0
    %218 = vmatpush1.msra.mxu0 0.0
    %219 = vmatprep.subr.mxu0 0.0
    %220 = vmatpush1.msra.mxu0 0.0
    %221 = vmatprep.subr.mxu0 0.0
    %222 = vmatpush1.msra.mxu0 0.0
    %223 = vmatprep.subr.mxu0 0.0
    %224 = vmatpush1.msra.mxu0 0.0
    %225 = vmatprep.subr.mxu0 0.0
    %226 = vmatpush1.msra.mxu0 0.0
    %227 = vmatprep.subr.mxu0 0.0
    %228 = vmatpush1.msra.mxu0 0.0
    %229 = vmatprep.subr.mxu0 0.0
    %230 = vmatpush1.msra.mxu0 0.0
    %231 = vmatprep.subr.mxu0 0.0
    %232 = vmatpush1.msra.mxu0 0.0
    %233 = vmatprep.subr.mxu0 0.0
    %234 = vmatpush1.msra.mxu0 0.0
    %235 = vmatprep.subr.mxu0 0.0
    %236 = vmatpush1.msra.mxu0 0.0
    %237 = vmatprep.subr.mxu0 0.0
    %238 = vmatpush1.msra.mxu0 0.0
    %239 = vmatprep.subr.mxu0 0.0
    %240 = vmatpush1.msra.mxu0 0.0
    %241 = vmatprep.subr.mxu0 0.0
    %242 = vmatpush1.msra.mxu0 0.0
    %243 = vmatprep.subr.mxu0 0.0
    %244 = vmatpush1.msra.mxu0 0.0
    %245 = vmatprep.subr.mxu0 0.0
    %246 = vmatpush1.msra.mxu0 0.0
    %247 = vmatprep.mubr.f32.mxu0 0.0
    %248 = vmatmul.mubr.f32.gmra.mrb[0].mxu0 %v181
    %v249 = vpop.f32.mrb[0].mxu0
    %v250 = vadd.f32 %v178, %v249
    %v251 = vpop.f32.mrb[0].mxu0
    %252 = vdwg.mxu0
    %v253 = vxor.u32 %v250, 2147483648
    %v254 = vmul.f32 %v253, 1.442695
    %v255 = vpow.pop %v254
    %v256 = vadd.f32 %v255, 1.0
    %v257 = vrcp.pop %v256
    %v258 = vmul.f32 1.0, %v257
    %v259 = vtanh.pop %v250
    %v260 = vrot.slane %v82, 5
    %261 = vrot.lane.b32.xlu0 %v260, 32
    %v262 = vpop.permute.xlu0 %261
    %v264 = vmul.f32 %v258, %v262
    %266 = vrot.lane.b32.xlu0 %v259, 64
    %v267 = vpop.permute.xlu0 %266
    %v269 = vmul.f32 %v258, %v267
    %271 = vrot.lane.b32.xlu0 %v269, 32
    %v272 = vpop.permute.xlu0 %271
    %v274 = vadd.f32 %v264, %v272
    %v275 = vtanh.pop %v274
    %277 = vrot.lane.b32.xlu0 %v275, 64
    %v278 = vpop.permute.xlu0 %277
    %v280 = vmul.f32 %v258, %v278
    %282 = vrot.lane.b32.xlu0 %v280, 32
    %v283 = vpop.permute.xlu0 %282
    %v285 = vrot.slane %v82, 4
    %286 = vrot.lane.b32.xlu0 %v285, 32
    %v287 = vpop.permute.xlu0 %286
    %v289 = vsel %vm85, %v283, %v287
    %v291 = vsel %vm180, %v289, 0
    %293 = vmatprep.subr.mxu0 0.0
    %294 = vmatpush1.msra.mxu0 %v74
    %295 = vmatprep.subr.mxu0 0.0
    %296 = vmatpush1.msra.mxu0 %v75
    %297 = vmatprep.subr.mxu0 0.0
    %298 = vmatpush1.msra.mxu0 %v76
    %299 = vmatprep.subr.mxu0 0.0
    %300 = vmatpush1.msra.mxu0 %v77
    %301 = vmatprep.subr.mxu0 0.0
    %302 = vmatpush1.msra.mxu0 %v78
    %303 = vmatprep.subr.mxu0 0.0
    %304 = vmatpush1.msra.mxu0 %v79
    %305 = vmatprep.subr.mxu0 0.0
    %306 = vmatpush1.msra.mxu0 %v80
    %307 = vmatprep.subr.mxu0 0.0
    %308 = vmatpush1.msra.mxu0 %v81
    %309 = vmatprep.subr.mxu0 0.0
    %310 = vmatpush1.msra.mxu0 0.0
    %311 = vmatprep.subr.mxu0 0.0
    %312 = vmatpush1.msra.mxu0 0.0
    %313 = vmatprep.subr.mxu0 0.0
    %314 = vmatpush1.msra.mxu0 0.0
    %315 = vmatprep.subr.mxu0 0.0
    %316 = vmatpush1.msra.mxu0 0.0
    %317 = vmatprep.subr.mxu0 0.0
    %318 = vmatpush1.msra.mxu0 0.0
    %319 = vmatprep.subr.mxu0 0.0
    %320 = vmatpush1.msra.mxu0 0.0
    %321 = vmatprep.subr.mxu0 0.0
    %322 = vmatpush1.msra.mxu0 0.0
    %323 = vmatprep.subr.mxu0 0.0
    %324 = vmatpush1.msra.mxu0 0.0
    %325 = vmatprep.subr.mxu0 0.0
    %326 = vmatpush1.msra.mxu0 0.0
    %327 = vmatprep.subr.mxu0 0.0
    %328 = vmatpush1.msra.mxu0 0.0
    %329 = vmatprep.subr.mxu0 0.0
    %330 = vmatpush1.msra.mxu0 0.0
    %331 = vmatprep.subr.mxu0 0.0
    %332 = vmatpush1.msra.mxu0 0.0
    %333 = vmatprep.subr.mxu0 0.0
    %334 = vmatpush1.msra.mxu0 0.0
    %335 = vmatprep.subr.mxu0 0.0
    %336 = vmatpush1.msra.mxu0 0.0
    %337 = vmatprep.subr.mxu0 0.0
    %338 = vmatpush1.msra.mxu0 0.0
    %339 = vmatprep.subr.mxu0 0.0
    %340 = vmatpush1.msra.mxu0 0.0
    %341 = vmatprep.subr.mxu0 0.0
    %342 = vmatpush1.msra.mxu0 0.0
    %343 = vmatprep.subr.mxu0 0.0
    %344 = vmatpush1.msra.mxu0 0.0
    %345 = vmatprep.subr.mxu0 0.0
    %346 = vmatpush1.msra.mxu0 0.0
    %347 = vmatprep.subr.mxu0 0.0
    %348 = vmatpush1.msra.mxu0 0.0
    %349 = vmatprep.subr.mxu0 0.0
    %350 = vmatpush1.msra.mxu0 0.0
    %351 = vmatprep.subr.mxu0 0.0
    %352 = vmatpush1.msra.mxu0 0.0
    %353 = vmatprep.subr.mxu0 0.0
    %354 = vmatpush1.msra.mxu0 0.0
    %355 = vmatprep.subr.mxu0 0.0
    %356 = vmatpush1.msra.mxu0 0.0
    %357 = vmatprep.mubr.f32.mxu0 0.0
    %358 = vmatmul.mubr.f32.gmra.mrb[0].mxu0 %v291
    %v359 = vpop.f32.mrb[0].mxu0
    %v360 = vadd.f32 %v83, %v359
    %v361 = vpop.f32.mrb[0].mxu0
    %362 = vdwg.mxu0
    %v363 = vxor.u32 %v360, 2147483648
    %v364 = vmul.f32 %v363, 1.442695
    %v365 = vpow.pop %v364
    %v366 = vadd.f32 %v365, 1.0
    %v367 = vrcp.pop %v366
    %v368 = vmul.f32 1.0, %v367
    %v369 = vtanh.pop %v360
    %v370 = vrot.slane %v82, 6
    %371 = vrot.lane.b32.xlu0 %v370, 32
    %v372 = vpop.permute.xlu0 %371
    %v374 = vmul.f32 %v368, %v372
    %376 = vrot.lane.b32.xlu0 %v369, 64
    %v377 = vpop.permute.xlu0 %376
    %v379 = vmul.f32 %v368, %v377
    %381 = vrot.lane.b32.xlu0 %v379, 32
    %v382 = vpop.permute.xlu0 %381
    %v384 = vadd.f32 %v374, %v382
    %v385 = vtanh.pop %v384
    %387 = vrot.lane.b32.xlu0 %v385, 64
    %v388 = vpop.permute.xlu0 %387
    %v390 = vmul.f32 %v368, %v388
    %392 = vrot.lane.b32.xlu0 %v390, 32
    %v393 = vpop.permute.xlu0 %392
    %v394 = vsel %vm85, %v393, 0
    %396 = vmatprep.subr.mxu0 0.0
    %397 = vmatpush1.msra.mxu0 %v62
    %398 = vmatprep.subr.mxu0 0.0
    %399 = vmatpush1.msra.mxu0 %v63
    %400 = vmatprep.subr.mxu0 0.0
    %401 = vmatpush1.msra.mxu0 %v64
    %402 = vmatprep.subr.mxu0 0.0
    %403 = vmatpush1.msra.mxu0 %v65
    %404 = vmatprep.subr.mxu0 0.0
    %405 = vmatpush1.msra.mxu0 0.0
    %406 = vmatprep.subr.mxu0 0.0
    %407 = vmatpush1.msra.mxu0 0.0
    %408 = vmatprep.subr.mxu0 0.0
    %409 = vmatpush1.msra.mxu0 0.0
    %410 = vmatprep.subr.mxu0 0.0
    %411 = vmatpush1.msra.mxu0 0.0
    %412 = vmatprep.subr.mxu0 0.0
    %413 = vmatpush1.msra.mxu0 0.0
    %414 = vmatprep.subr.mxu0 0.0
    %415 = vmatpush1.msra.mxu0 0.0
    %416 = vmatprep.subr.mxu0 0.0
    %417 = vmatpush1.msra.mxu0 0.0
    %418 = vmatprep.subr.mxu0 0.0
    %419 = vmatpush1.msra.mxu0 0.0
    %420 = vmatprep.subr.mxu0 0.0
    %421 = vmatpush1.msra.mxu0 0.0
    %422 = vmatprep.subr.mxu0 0.0
    %423 = vmatpush1.msra.mxu0 0.0
    %424 = vmatprep.subr.mxu0 0.0
    %425 = vmatpush1.msra.mxu0 0.0
    %426 = vmatprep.subr.mxu0 0.0
    %427 = vmatpush1.msra.mxu0 0.0
    %428 = vmatprep.subr.mxu0 0.0
    %429 = vmatpush1.msra.mxu0 0.0
    %430 = vmatprep.subr.mxu0 0.0
    %431 = vmatpush1.msra.mxu0 0.0
    %432 = vmatprep.subr.mxu0 0.0
    %433 = vmatpush1.msra.mxu0 0.0
    %434 = vmatprep.subr.mxu0 0.0
    %435 = vmatpush1.msra.mxu0 0.0
    %436 = vmatprep.subr.mxu0 0.0
    %437 = vmatpush1.msra.mxu0 0.0
    %438 = vmatprep.subr.mxu0 0.0
    %439 = vmatpush1.msra.mxu0 0.0
    %440 = vmatprep.subr.mxu0 0.0
    %441 = vmatpush1.msra.mxu0 0.0
    %442 = vmatprep.subr.mxu0 0.0
    %443 = vmatpush1.msra.mxu0 0.0
    %444 = vmatprep.subr.mxu0 0.0
    %445 = vmatpush1.msra.mxu0 0.0
    %446 = vmatprep.subr.mxu0 0.0
    %447 = vmatpush1.msra.mxu0 0.0
    %448 = vmatprep.subr.mxu0 0.0
    %449 = vmatpush1.msra.mxu0 0.0
    %450 = vmatprep.subr.mxu0 0.0
    %451 = vmatpush1.msra.mxu0 0.0
    %452 = vmatprep.subr.mxu0 0.0
    %453 = vmatpush1.msra.mxu0 0.0
    %454 = vmatprep.subr.mxu0 0.0
    %455 = vmatpush1.msra.mxu0 0.0
    %456 = vmatprep.subr.mxu0 0.0
    %457 = vmatpush1.msra.mxu0 0.0
    %458 = vmatprep.subr.mxu0 0.0
    %459 = vmatpush1.msra.mxu0 0.0
    %460 = vmatprep.mubr.f32.mxu0 0.0
    %461 = vmatmul.mubr.f32.gmra.mrb[0].mxu0 %v394
    %v462 = vpop.f32.mrb[0].mxu0
    %v463 = vadd.f32 0.0, %v462
    %v464 = vpop.f32.mrb[0].mxu0
    %465 = vdwg.mxu0
    %v466 = vlaneseq
    %v467 = vshrl.u32 %v466, 7
    %v468 = vsub.s32 0, %v467
    %v469 = vrot.slane %v463, %v468
    %471 = vrot.lane.b32.xlu0 %v469, 32
    %v472 = vpop.permute.xlu0 %471
    %v474 = vadd.f32 %v156, %v472
    %v475 = vtanh.pop %v474
    %v476 = vlaneseq
    %v477 = vshrl.u32 %v476, 7
    %v478 = vsub.s32 1, %v477
    %v479 = vrot.slane %v82, %v478
    %481 = vrot.lane.b32.xlu0 %v479, 32
    %v482 = vpop.permute.xlu0 %481
    %v484 = vmul.f32 %v475, %v482
    %486 = vrot.lane.b32.xlu0 %v484, 96
    %v487 = vpop.permute.xlu0 %486
    %v489 = vsel %vm85, %v487, 0.0
    %490 = vadd.xlane.f32.xlu0 %v489
    %v491 = vpop.xlane.xlu0 %490
    %v492 = vrot.slane %v491, 4
    %v493 = vmax.f32 %v491, %v492
    %v494 = vrot.slane %v493, 2
    %v495 = vmax.f32 %v493, %v494
    %v496 = vrot.slane %v495, 1
    %v497 = vmax.f32 %v495, %v496
    %v498 = vsub.f32 %v491, %v497
    %v499 = vmul.f32 %v498, 1.442695
    %v500 = vpow.pop %v499
    %v501 = vrot.slane %v500, 4
    %v502 = vadd.f32 %v500, %v501
    %v503 = vrot.slane %v502, 2
    %v504 = vadd.f32 %v502, %v503
    %v505 = vrot.slane %v504, 1
    %v506 = vadd.f32 %v504, %v505
    %v507 = vrcp.pop %v506
    %v508 = vmul.f32 %v500, %v507
    %v509 = vmul.f32 %v508, %v156
    %vm510 = vcmask 523520
    %v511 = vsel %vm510, %v509, 0.0
    %v512 = vrot.slane %v511, 4
    %v513 = vadd.f32 %v511, %v512
    %v514 = vrot.slane %v513, 2
    %v515 = vadd.f32 %v513, %v514
    %v516 = vrot.slane %v515, 1
    %v517 = vadd.f32 %v515, %v516
    %519 = vrot.lane.b32.xlu0 %v517, 96
    %v520 = vpop.permute.xlu0 %519
    %v521 = vsel %vm85, %v520, 0
    %523 = vmatprep.subr.mxu0 0.0
    %524 = vmatpush1.msra.mxu0 %v62
    %525 = vmatprep.subr.mxu0 0.0
    %526 = vmatpush1.msra.mxu0 %v63
    %527 = vmatprep.subr.mxu0 0.0
    %528 = vmatpush1.msra.mxu0 %v64
    %529 = vmatprep.subr.mxu0 0.0
    %530 = vmatpush1.msra.mxu0 %v65
    %531 = vmatprep.subr.mxu0 0.0
    %532 = vmatpush1.msra.mxu0 0.0
    %533 = vmatprep.subr.mxu0 0.0
    %534 = vmatpush1.msra.mxu0 0.0
    %535 = vmatprep.subr.mxu0 0.0
    %536 = vmatpush1.msra.mxu0 0.0
    %537 = vmatprep.subr.mxu0 0.0
    %538 = vmatpush1.msra.mxu0 0.0
    %539 = vmatprep.subr.mxu0 0.0
    %540 = vmatpush1.msra.mxu0 0.0
    %541 = vmatprep.subr.mxu0 0.0
    %542 = vmatpush1.msra.mxu0 0.0
    %543 = vmatprep.subr.mxu0 0.0
    %544 = vmatpush1.msra.mxu0 0.0
    %545 = vmatprep.subr.mxu0 0.0
    %546 = vmatpush1.msra.mxu0 0.0
    %547 = vmatprep.subr.mxu0 0.0
    %548 = vmatpush1.msra.mxu0 0.0
    %549 = vmatprep.subr.mxu0 0.0
    %550 = vmatpush1.msra.mxu0 0.0
    %551 = vmatprep.subr.mxu0 0.0
    %552 = vmatpush1.msra.mxu0 0.0
    %553 = vmatprep.subr.mxu0 0.0
    %554 = vmatpush1.msra.mxu0 0.0
    %555 = vmatprep.subr.mxu0 0.0
    %556 = vmatpush1.msra.mxu0 0.0
    %557 = vmatprep.subr.mxu0 0.0
    %558 = vmatpush1.msra.mxu0 0.0
    %559 = vmatprep.subr.mxu0 0.0
    %560 = vmatpush1.msra.mxu0 0.0
    %561 = vmatprep.subr.mxu0 0.0
    %562 = vmatpush1.msra.mxu0 0.0
    %563 = vmatprep.subr.mxu0 0.0
    %564 = vmatpush1.msra.mxu0 0.0
    %565 = vmatprep.subr.mxu0 0.0
    %566 = vmatpush1.msra.mxu0 0.0
    %567 = vmatprep.subr.mxu0 0.0
    %568 = vmatpush1.msra.mxu0 0.0
    %569 = vmatprep.subr.mxu0 0.0
    %570 = vmatpush1.msra.mxu0 0.0
    %571 = vmatprep.subr.mxu0 0.0
    %572 = vmatpush1.msra.mxu0 0.0
    %573 = vmatprep.subr.mxu0 0.0
    %574 = vmatpush1.msra.mxu0 0.0
    %575 = vmatprep.subr.mxu0 0.0
    %576 = vmatpush1.msra.mxu0 0.0
    %577 = vmatprep.subr.mxu0 0.0
    %578 = vmatpush1.msra.mxu0 0.0
    %579 = vmatprep.subr.mxu0 0.0
    %580 = vmatpush1.msra.mxu0 0.0
    %581 = vmatprep.subr.mxu0 0.0
    %582 = vmatpush1.msra.mxu0 0.0
    %583 = vmatprep.subr.mxu0 0.0
    %584 = vmatpush1.msra.mxu0 0.0
    %585 = vmatprep.subr.mxu0 0.0
    %586 = vmatpush1.msra.mxu0 0.0
    %587 = vmatprep.mubr.f32.mxu0 0.0
    %588 = vmatmul.mubr.f32.gmra.mrb[0].mxu0 %v521
    %v589 = vpop.f32.mrb[0].mxu0
    %v590 = vadd.f32 0.0, %v589
    %v591 = vpop.f32.mrb[0].mxu0
    %592 = vdwg.mxu0
    %v593 = vlaneseq
    %v594 = vshrl.u32 %v593, 7
    %v595 = vsub.s32 0, %v594
    %v596 = vrot.slane %v590, %v595
    %598 = vrot.lane.b32.xlu0 %v596, 32
    %v599 = vpop.permute.xlu0 %598
    %v601 = vadd.f32 %v156, %v599
    %v602 = vtanh.pop %v601
    %v603 = vmul.f32 %v602, %v482
    %605 = vrot.lane.b32.xlu0 %v603, 96
    %v606 = vpop.permute.xlu0 %605
    %v608 = vsel %vm85, %v606, 0.0
    %609 = vadd.xlane.f32.xlu0 %v608
    %v610 = vpop.xlane.xlu0 %609
    %v611 = vrot.slane %v610, 4
    %v612 = vmax.f32 %v610, %v611
    %v613 = vrot.slane %v612, 2
    %v614 = vmax.f32 %v612, %v613
    %v615 = vrot.slane %v614, 1
    %v616 = vmax.f32 %v614, %v615
    %v617 = vsub.f32 %v610, %v616
    %v618 = vmul.f32 %v617, 1.442695
    %v619 = vpow.pop %v618
    %v620 = vrot.slane %v619, 4
    %v621 = vadd.f32 %v619, %v620
    %v622 = vrot.slane %v621, 2
    %v623 = vadd.f32 %v621, %v622
    %v624 = vrot.slane %v623, 1
    %v625 = vadd.f32 %v623, %v624
    %v626 = vrcp.pop %v625
    %v627 = vmul.f32 %v619, %v626
    %v628 = vmul.f32 %v627, %v156
    %v629 = vsel %vm510, %v628, 0.0
    %v630 = vrot.slane %v629, 4
    %v631 = vadd.f32 %v629, %v630
    %v632 = vrot.slane %v631, 2
    %v633 = vadd.f32 %v631, %v632
    %v634 = vrot.slane %v633, 1
    %v635 = vadd.f32 %v633, %v634
    %637 = vrot.lane.b32.xlu0 %v635, 96
    %v638 = vpop.permute.xlu0 %637
    %v639 = vsel %vm85, %v638, 0
    %641 = vmatprep.subr.mxu0 0.0
    %642 = vmatpush1.msra.mxu0 %v58
    %643 = vmatprep.subr.mxu0 0.0
    %644 = vmatpush1.msra.mxu0 %v59
    %645 = vmatprep.subr.mxu0 0.0
    %646 = vmatpush1.msra.mxu0 %v60
    %647 = vmatprep.subr.mxu0 0.0
    %648 = vmatpush1.msra.mxu0 %v61
    %649 = vmatprep.subr.mxu0 0.0
    %650 = vmatpush1.msra.mxu0 0.0
    %651 = vmatprep.subr.mxu0 0.0
    %652 = vmatpush1.msra.mxu0 0.0
    %653 = vmatprep.subr.mxu0 0.0
    %654 = vmatpush1.msra.mxu0 0.0
    %655 = vmatprep.subr.mxu0 0.0
    %656 = vmatpush1.msra.mxu0 0.0
    %657 = vmatprep.subr.mxu0 0.0
    %658 = vmatpush1.msra.mxu0 0.0
    %659 = vmatprep.subr.mxu0 0.0
    %660 = vmatpush1.msra.mxu0 0.0
    %661 = vmatprep.subr.mxu0 0.0
    %662 = vmatpush1.msra.mxu0 0.0
    %663 = vmatprep.subr.mxu0 0.0
    %664 = vmatpush1.msra.mxu0 0.0
    %665 = vmatprep.subr.mxu0 0.0
    %666 = vmatpush1.msra.mxu0 0.0
    %667 = vmatprep.subr.mxu0 0.0
    %668 = vmatpush1.msra.mxu0 0.0
    %669 = vmatprep.subr.mxu0 0.0
    %670 = vmatpush1.msra.mxu0 0.0
    %671 = vmatprep.subr.mxu0 0.0
    %672 = vmatpush1.msra.mxu0 0.0
    %673 = vmatprep.subr.mxu0 0.0
    %674 = vmatpush1.msra.mxu0 0.0
    %675 = vmatprep.subr.mxu0 0.0
    %676 = vmatpush1.msra.mxu0 0.0
    %677 = vmatprep.subr.mxu0 0.0
    %678 = vmatpush1.msra.mxu0 0.0
    %679 = vmatprep.subr.mxu0 0.0
    %680 = vmatpush1.msra.mxu0 0.0
    %681 = vmatprep.subr.mxu0 0.0
    %682 = vmatpush1.msra.mxu0 0.0
    %683 = vmatprep.subr.mxu0 0.0
    %684 = vmatpush1.msra.mxu0 0.0
    %685 = vmatprep.subr.mxu0 0.0
    %686 = vmatpush1.msra.mxu0 0.0
    %687 = vmatprep.subr.mxu0 0.0
    %688 = vmatpush1.msra.mxu0 0.0
    %689 = vmatprep.subr.mxu0 0.0
    %690 = vmatpush1.msra.mxu0 0.0
    %691 = vmatprep.subr.mxu0 0.0
    %692 = vmatpush1.msra.mxu0 0.0
    %693 = vmatprep.subr.mxu0 0.0
    %694 = vmatpush1.msra.mxu0 0.0
    %695 = vmatprep.subr.mxu0 0.0
    %696 = vmatpush1.msra.mxu0 0.0
    %697 = vmatprep.subr.mxu0 0.0
    %698 = vmatpush1.msra.mxu0 0.0
    %699 = vmatprep.subr.mxu0 0.0
    %700 = vmatpush1.msra.mxu0 0.0
    %701 = vmatprep.subr.mxu0 0.0
    %702 = vmatpush1.msra.mxu0 0.0
    %703 = vmatprep.subr.mxu0 0.0
    %704 = vmatpush1.msra.mxu0 0.0
    %705 = vmatprep.mubr.f32.mxu0 0.0
    %706 = vmatmul.mubr.f32.gmra.mrb[0].mxu0 %v639
    %v707 = vpop.f32.mrb[0].mxu0
    %v708 = vadd.f32 0.0, %v707
    %v709 = vpop.f32.mrb[0].mxu0
    %710 = vdwg.mxu0
    %v711 = vlaneseq
    %v712 = vshrl.u32 %v711, 7
    %v713 = vsub.s32 0, %v712
    %v714 = vrot.slane %v708, %v713
    %v715 = vadd.f32 %v156, %v714
    %v716 = vtanh.pop %v715
    %v717 = vlaneseq
    %v718 = vshrl.u32 %v717, 7
    %v719 = vsub.s32 0, %v718
    %v720 = vrot.slane %v82, %v719
    %v721 = vmul.f32 %v716, %v720
    %v722 = vsel %vm85, %v721, 0.0
    %723 = vadd.xlane.f32.xlu0 %v722
    %v724 = vpop.xlane.xlu0 %723
    %v725 = vrot.slane %v724, 4
    %v726 = vmax.f32 %v724, %v725
    %v727 = vrot.slane %v726, 2
    %v728 = vmax.f32 %v726, %v727
    %v729 = vrot.slane %v728, 1
    %v730 = vmax.f32 %v728, %v729
    %v731 = vsub.f32 %v724, %v730
    %v732 = vmul.f32 %v731, 1.442695
    %v733 = vpow.pop %v732
    %v734 = vrot.slane %v733, 4
    %v735 = vadd.f32 %v733, %v734
    %v736 = vrot.slane %v735, 2
    %v737 = vadd.f32 %v735, %v736
    %v738 = vrot.slane %v737, 1
    %v739 = vadd.f32 %v737, %v738
    %v740 = vrcp.pop %v739
    %v741 = vmul.f32 %v733, %v740
    %v742 = vmul.f32 %v741, %v167
    %vm743 = vcmask 269312
    %v744 = vsel %vm743, %v742, 0.0
    %v745 = vrot.slane %v744, 4
    %v746 = vadd.f32 %v744, %v745
    %v747 = vrot.slane %v746, 2
    %v748 = vadd.f32 %v746, %v747
    %v749 = vrot.slane %v748, 1
    %v750 = vadd.f32 %v748, %v749
    %v752 = vrot.slane %v83, 2
    %753 = vrot.lane.b32.xlu0 %v752, 32
    %v754 = vpop.permute.xlu0 %753
    %v756 = vadd.f32 %v750, %v754
    %vm757 = vcmp.eq.s32.totalorder %v169, 0
    %759 = vset.pattern.permute.xlu0 32
    %760 = vperm.xlu0 %759, %v756
    %v761 = vpop.permute.xlu0 %760
    %v763 = vsel %vm757, %v761, 0.0
    %764 = vrot.lane.b32.xlu0 %v280, 64
    %v765 = vpop.permute.xlu0 %764
    %v767 = vsel %vm85, %v750, %v765
    %v769 = vsel %vm180, %v767, 0
    %771 = vmatprep.subr.mxu0 0.0
    %772 = vmatpush1.msra.mxu0 %v66
    %773 = vmatprep.subr.mxu0 0.0
    %774 = vmatpush1.msra.mxu0 %v67
    %775 = vmatprep.subr.mxu0 0.0
    %776 = vmatpush1.msra.mxu0 %v68
    %777 = vmatprep.subr.mxu0 0.0
    %778 = vmatpush1.msra.mxu0 %v69
    %779 = vmatprep.subr.mxu0 0.0
    %780 = vmatpush1.msra.mxu0 %v70
    %781 = vmatprep.subr.mxu0 0.0
    %782 = vmatpush1.msra.mxu0 %v71
    %783 = vmatprep.subr.mxu0 0.0
    %784 = vmatpush1.msra.mxu0 %v72
    %785 = vmatprep.subr.mxu0 0.0
    %786 = vmatpush1.msra.mxu0 %v73
    %787 = vmatprep.subr.mxu0 0.0
    %788 = vmatpush1.msra.mxu0 0.0
    %789 = vmatprep.subr.mxu0 0.0
    %790 = vmatpush1.msra.mxu0 0.0
    %791 = vmatprep.subr.mxu0 0.0
    %792 = vmatpush1.msra.mxu0 0.0
    %793 = vmatprep.subr.mxu0 0.0
    %794 = vmatpush1.msra.mxu0 0.0
    %795 = vmatprep.subr.mxu0 0.0
    %796 = vmatpush1.msra.mxu0 0.0
    %797 = vmatprep.subr.mxu0 0.0
    %798 = vmatpush1.msra.mxu0 0.0
    %799 = vmatprep.subr.mxu0 0.0
    %800 = vmatpush1.msra.mxu0 0.0
    %801 = vmatprep.subr.mxu0 0.0
    %802 = vmatpush1.msra.mxu0 0.0
    %803 = vmatprep.subr.mxu0 0.0
    %804 = vmatpush1.msra.mxu0 0.0
    %805 = vmatprep.subr.mxu0 0.0
    %806 = vmatpush1.msra.mxu0 0.0
    %807 = vmatprep.subr.mxu0 0.0
    %808 = vmatpush1.msra.mxu0 0.0
    %809 = vmatprep.subr.mxu0 0.0
    %810 = vmatpush1.msra.mxu0 0.0
    %811 = vmatprep.subr.mxu0 0.0
    %812 = vmatpush1.msra.mxu0 0.0
    %813 = vmatprep.subr.mxu0 0.0
    %814 = vmatpush1.msra.mxu0 0.0
    %815 = vmatprep.subr.mxu0 0.0
    %816 = vmatpush1.msra.mxu0 0.0
    %817 = vmatprep.subr.mxu0 0.0
    %818 = vmatpush1.msra.mxu0 0.0
    %819 = vmatprep.subr.mxu0 0.0
    %820 = vmatpush1.msra.mxu0 0.0
    %821 = vmatprep.subr.mxu0 0.0
    %822 = vmatpush1.msra.mxu0 0.0
    %823 = vmatprep.subr.mxu0 0.0
    %824 = vmatpush1.msra.mxu0 0.0
    %825 = vmatprep.subr.mxu0 0.0
    %826 = vmatpush1.msra.mxu0 0.0
    %827 = vmatprep.subr.mxu0 0.0
    %828 = vmatpush1.msra.mxu0 0.0
    %829 = vmatprep.subr.mxu0 0.0
    %830 = vmatpush1.msra.mxu0 0.0
    %831 = vmatprep.subr.mxu0 0.0
    %832 = vmatpush1.msra.mxu0 0.0
    %833 = vmatprep.subr.mxu0 0.0
    %834 = vmatpush1.msra.mxu0 0.0
    %835 = vmatprep.mubr.f32.mxu0 0.0
    %836 = vmatmul.mubr.f32.gmra.mrb[0].mxu0 %v769
    %v837 = vpop.f32.mrb[0].mxu0
    %v838 = vadd.f32 %v178, %v837
    %v839 = vpop.f32.mrb[0].mxu0
    %840 = vdwg.mxu0
    %v841 = vxor.u32 %v838, 2147483648
    %v842 = vmul.f32 %v841, 1.442695
    %v843 = vpow.pop %v842
    %v844 = vadd.f32 %v843, 1.0
    %v845 = vrcp.pop %v844
    %v846 = vmul.f32 1.0, %v845
    %v847 = vtanh.pop %v838
    %v848 = vmul.f32 %v846, %v274
    %850 = vrot.lane.b32.xlu0 %v847, 64
    %v851 = vpop.permute.xlu0 %850
    %v853 = vmul.f32 %v846, %v851
    %855 = vrot.lane.b32.xlu0 %v853, 32
    %v856 = vpop.permute.xlu0 %855
    %v858 = vadd.f32 %v848, %v856
    %v859 = vtanh.pop %v858
    %861 = vrot.lane.b32.xlu0 %v859, 64
    %v862 = vpop.permute.xlu0 %861
    %v864 = vmul.f32 %v846, %v862
    %866 = vrot.lane.b32.xlu0 %v864, 32
    %v867 = vpop.permute.xlu0 %866
    %869 = vrot.lane.b32.xlu0 %v390, 64
    %v870 = vpop.permute.xlu0 %869
    %v872 = vsel %vm85, %v867, %v870
    %v874 = vsel %vm180, %v872, 0
    %876 = vmatprep.subr.mxu0 0.0
    %877 = vmatpush1.msra.mxu0 %v74
    %878 = vmatprep.subr.mxu0 0.0
    %879 = vmatpush1.msra.mxu0 %v75
    %880 = vmatprep.subr.mxu0 0.0
    %881 = vmatpush1.msra.mxu0 %v76
    %882 = vmatprep.subr.mxu0 0.0
    %883 = vmatpush1.msra.mxu0 %v77
    %884 = vmatprep.subr.mxu0 0.0
    %885 = vmatpush1.msra.mxu0 %v78
    %886 = vmatprep.subr.mxu0 0.0
    %887 = vmatpush1.msra.mxu0 %v79
    %888 = vmatprep.subr.mxu0 0.0
    %889 = vmatpush1.msra.mxu0 %v80
    %890 = vmatprep.subr.mxu0 0.0
    %891 = vmatpush1.msra.mxu0 %v81
    %892 = vmatprep.subr.mxu0 0.0
    %893 = vmatpush1.msra.mxu0 0.0
    %894 = vmatprep.subr.mxu0 0.0
    %895 = vmatpush1.msra.mxu0 0.0
    %896 = vmatprep.subr.mxu0 0.0
    %897 = vmatpush1.msra.mxu0 0.0
    %898 = vmatprep.subr.mxu0 0.0
    %899 = vmatpush1.msra.mxu0 0.0
    %900 = vmatprep.subr.mxu0 0.0
    %901 = vmatpush1.msra.mxu0 0.0
    %902 = vmatprep.subr.mxu0 0.0
    %903 = vmatpush1.msra.mxu0 0.0
    %904 = vmatprep.subr.mxu0 0.0
    %905 = vmatpush1.msra.mxu0 0.0
    %906 = vmatprep.subr.mxu0 0.0
    %907 = vmatpush1.msra.mxu0 0.0
    %908 = vmatprep.subr.mxu0 0.0
    %909 = vmatpush1.msra.mxu0 0.0
    %910 = vmatprep.subr.mxu0 0.0
    %911 = vmatpush1.msra.mxu0 0.0
    %912 = vmatprep.subr.mxu0 0.0
    %913 = vmatpush1.msra.mxu0 0.0
    %914 = vmatprep.subr.mxu0 0.0
    %915 = vmatpush1.msra.mxu0 0.0
    %916 = vmatprep.subr.mxu0 0.0
    %917 = vmatpush1.msra.mxu0 0.0
    %918 = vmatprep.subr.mxu0 0.0
    %919 = vmatpush1.msra.mxu0 0.0
    %920 = vmatprep.subr.mxu0 0.0
    %921 = vmatpush1.msra.mxu0 0.0
    %922 = vmatprep.subr.mxu0 0.0
    %923 = vmatpush1.msra.mxu0 0.0
    %924 = vmatprep.subr.mxu0 0.0
    %925 = vmatpush1.msra.mxu0 0.0
    %926 = vmatprep.subr.mxu0 0.0
    %927 = vmatpush1.msra.mxu0 0.0
    %928 = vmatprep.subr.mxu0 0.0
    %929 = vmatpush1.msra.mxu0 0.0
    %930 = vmatprep.subr.mxu0 0.0
    %931 = vmatpush1.msra.mxu0 0.0
    %932 = vmatprep.subr.mxu0 0.0
    %933 = vmatpush1.msra.mxu0 0.0
    %934 = vmatprep.subr.mxu0 0.0
    %935 = vmatpush1.msra.mxu0 0.0
    %936 = vmatprep.subr.mxu0 0.0
    %937 = vmatpush1.msra.mxu0 0.0
    %938 = vmatprep.subr.mxu0 0.0
    %939 = vmatpush1.msra.mxu0 0.0
    %940 = vmatprep.mubr.f32.mxu0 0.0
    %941 = vmatmul.mubr.f32.gmra.mrb[0].mxu0 %v874
    %v942 = vpop.f32.mrb[0].mxu0
    %v943 = vadd.f32 %v83, %v942
    %v944 = vpop.f32.mrb[0].mxu0
    %945 = vdwg.mxu0
    %v946 = vxor.u32 %v943, 2147483648
    %v947 = vmul.f32 %v946, 1.442695
    %v948 = vpow.pop %v947
    %v949 = vadd.f32 %v948, 1.0
    %v950 = vrcp.pop %v949
    %v951 = vmul.f32 1.0, %v950
    %v952 = vtanh.pop %v943
    %v953 = vmul.f32 %v951, %v384
    %955 = vrot.lane.b32.xlu0 %v952, 64
    %v956 = vpop.permute.xlu0 %955
    %v958 = vmul.f32 %v951, %v956
    %960 = vrot.lane.b32.xlu0 %v958, 32
    %v961 = vpop.permute.xlu0 %960
    %v963 = vadd.f32 %v953, %v961
    %v964 = vtanh.pop %v963
    %966 = vrot.lane.b32.xlu0 %v964, 64
    %v967 = vpop.permute.xlu0 %966
    %v969 = vmul.f32 %v951, %v967
    %971 = vrot.lane.b32.xlu0 %v969, 32
    %v972 = vpop.permute.xlu0 %971
    %v973 = vsel %vm85, %v972, 0
    %975 = vmatprep.subr.mxu0 0.0
    %976 = vmatpush1.msra.mxu0 %v62
    %977 = vmatprep.subr.mxu0 0.0
    %978 = vmatpush1.msra.mxu0 %v63
    %979 = vmatprep.subr.mxu0 0.0
    %980 = vmatpush1.msra.mxu0 %v64
    %981 = vmatprep.subr.mxu0 0.0
    %982 = vmatpush1.msra.mxu0 %v65
    %983 = vmatprep.subr.mxu0 0.0
    %984 = vmatpush1.msra.mxu0 0.0
    %985 = vmatprep.subr.mxu0 0.0
    %986 = vmatpush1.msra.mxu0 0.0
    %987 = vmatprep.subr.mxu0 0.0
    %988 = vmatpush1.msra.mxu0 0.0
    %989 = vmatprep.subr.mxu0 0.0
    %990 = vmatpush1.msra.mxu0 0.0
    %991 = vmatprep.subr.mxu0 0.0
    %992 = vmatpush1.msra.mxu0 0.0
    %993 = vmatprep.subr.mxu0 0.0
    %994 = vmatpush1.msra.mxu0 0.0
    %995 = vmatprep.subr.mxu0 0.0
    %996 = vmatpush1.msra.mxu0 0.0
    %997 = vmatprep.subr.mxu0 0.0
    %998 = vmatpush1.msra.mxu0 0.0
    %999 = vmatprep.subr.mxu0 0.0
    %1000 = vmatpush1.msra.mxu0 0.0
    %1001 = vmatprep.subr.mxu0 0.0
    %1002 = vmatpush1.msra.mxu0 0.0
    %1003 = vmatprep.subr.mxu0 0.0
    %1004 = vmatpush1.msra.mxu0 0.0
    %1005 = vmatprep.subr.mxu0 0.0
    %1006 = vmatpush1.msra.mxu0 0.0
    %1007 = vmatprep.subr.mxu0 0.0
    %1008 = vmatpush1.msra.mxu0 0.0
    %1009 = vmatprep.subr.mxu0 0.0
    %1010 = vmatpush1.msra.mxu0 0.0
    %1011 = vmatprep.subr.mxu0 0.0
    %1012 = vmatpush1.msra.mxu0 0.0
    %1013 = vmatprep.subr.mxu0 0.0
    %1014 = vmatpush1.msra.mxu0 0.0
    %1015 = vmatprep.subr.mxu0 0.0
    %1016 = vmatpush1.msra.mxu0 0.0
    %1017 = vmatprep.subr.mxu0 0.0
    %1018 = vmatpush1.msra.mxu0 0.0
    %1019 = vmatprep.subr.mxu0 0.0
    %1020 = vmatpush1.msra.mxu0 0.0
    %1021 = vmatprep.subr.mxu0 0.0
    %1022 = vmatpush1.msra.mxu0 0.0
    %1023 = vmatprep.subr.mxu0 0.0
    %1024 = vmatpush1.msra.mxu0 0.0
    %1025 = vmatprep.subr.mxu0 0.0
    %1026 = vmatpush1.msra.mxu0 0.0
    %1027 = vmatprep.subr.mxu0 0.0
    %1028 = vmatpush1.msra.mxu0 0.0
    %1029 = vmatprep.subr.mxu0 0.0
    %1030 = vmatpush1.msra.mxu0 0.0
    %1031 = vmatprep.subr.mxu0 0.0
    %1032 = vmatpush1.msra.mxu0 0.0
    %1033 = vmatprep.subr.mxu0 0.0
    %1034 = vmatpush1.msra.mxu0 0.0
    %1035 = vmatprep.subr.mxu0 0.0
    %1036 = vmatpush1.msra.mxu0 0.0
    %1037 = vmatprep.subr.mxu0 0.0
    %1038 = vmatpush1.msra.mxu0 0.0
    %1039 = vmatprep.mubr.f32.mxu0 0.0
    %1040 = vmatmul.mubr.f32.gmra.mrb[0].mxu0 %v973
    %v1041 = vpop.f32.mrb[0].mxu0
    %v1042 = vadd.f32 0.0, %v1041
    %v1043 = vpop.f32.mrb[0].mxu0
    %1044 = vdwg.mxu0
    %v1045 = vlaneseq
    %v1046 = vshrl.u32 %v1045, 7
    %v1047 = vsub.s32 0, %v1046
    %v1048 = vrot.slane %v1042, %v1047
    %1050 = vrot.lane.b32.xlu0 %v1048, 32
    %v1051 = vpop.permute.xlu0 %1050
    %v1053 = vadd.f32 %v156, %v1051
    %v1054 = vtanh.pop %v1053
    %v1055 = vmul.f32 %v1054, %v482
    %1057 = vrot.lane.b32.xlu0 %v1055, 96
    %v1058 = vpop.permute.xlu0 %1057
    %v1060 = vsel %vm85, %v1058, 0.0
    %1061 = vadd.xlane.f32.xlu0 %v1060
    %v1062 = vpop.xlane.xlu0 %1061
    %v1063 = vrot.slane %v1062, 4
    %v1064 = vmax.f32 %v1062, %v1063
    %v1065 = vrot.slane %v1064, 2
    %v1066 = vmax.f32 %v1064, %v1065
    %v1067 = vrot.slane %v1066, 1
    %v1068 = vmax.f32 %v1066, %v1067
    %v1069 = vsub.f32 %v1062, %v1068
    %v1070 = vmul.f32 %v1069, 1.442695
    %v1071 = vpow.pop %v1070
    %v1072 = vrot.slane %v1071, 4
    %v1073 = vadd.f32 %v1071, %v1072
    %v1074 = vrot.slane %v1073, 2
    %v1075 = vadd.f32 %v1073, %v1074
    %v1076 = vrot.slane %v1075, 1
    %v1077 = vadd.f32 %v1075, %v1076
    %v1078 = vrcp.pop %v1077
    %v1079 = vmul.f32 %v1071, %v1078
    %v1080 = vmul.f32 %v1079, %v156
    %v1081 = vsel %vm510, %v1080, 0.0
    %v1082 = vrot.slane %v1081, 4
    %v1083 = vadd.f32 %v1081, %v1082
    %v1084 = vrot.slane %v1083, 2
    %v1085 = vadd.f32 %v1083, %v1084
    %v1086 = vrot.slane %v1085, 1
    %v1087 = vadd.f32 %v1085, %v1086
    %1089 = vrot.lane.b32.xlu0 %v1087, 96
    %v1090 = vpop.permute.xlu0 %1089
    %v1091 = vsel %vm85, %v1090, 0
    %1093 = vmatprep.subr.mxu0 0.0
    %1094 = vmatpush1.msra.mxu0 %v62
    %1095 = vmatprep.subr.mxu0 0.0
    %1096 = vmatpush1.msra.mxu0 %v63
    %1097 = vmatprep.subr.mxu0 0.0
    %1098 = vmatpush1.msra.mxu0 %v64
    %1099 = vmatprep.subr.mxu0 0.0
    %1100 = vmatpush1.msra.mxu0 %v65
    %1101 = vmatprep.subr.mxu0 0.0
    %1102 = vmatpush1.msra.mxu0 0.0
    %1103 = vmatprep.subr.mxu0 0.0
    %1104 = vmatpush1.msra.mxu0 0.0
    %1105 = vmatprep.subr.mxu0 0.0
    %1106 = vmatpush1.msra.mxu0 0.0
    %1107 = vmatprep.subr.mxu0 0.0
    %1108 = vmatpush1.msra.mxu0 0.0
    %1109 = vmatprep.subr.mxu0 0.0
    %1110 = vmatpush1.msra.mxu0 0.0
    %1111 = vmatprep.subr.mxu0 0.0
    %1112 = vmatpush1.msra.mxu0 0.0
    %1113 = vmatprep.subr.mxu0 0.0
    %1114 = vmatpush1.msra.mxu0 0.0
    %1115 = vmatprep.subr.mxu0 0.0
    %1116 = vmatpush1.msra.mxu0 0.0
    %1117 = vmatprep.subr.mxu0 0.0
    %1118 = vmatpush1.msra.mxu0 0.0
    %1119 = vmatprep.subr.mxu0 0.0
    %1120 = vmatpush1.msra.mxu0 0.0
    %1121 = vmatprep.subr.mxu0 0.0
    %1122 = vmatpush1.msra.mxu0 0.0
    %1123 = vmatprep.subr.mxu0 0.0
    %1124 = vmatpush1.msra.mxu0 0.0
    %1125 = vmatprep.subr.mxu0 0.0
    %1126 = vmatpush1.msra.mxu0 0.0
    %1127 = vmatprep.subr.mxu0 0.0
    %1128 = vmatpush1.msra.mxu0 0.0
    %1129 = vmatprep.subr.mxu0 0.0
    %1130 = vmatpush1.msra.mxu0 0.0
    %1131 = vmatprep.subr.mxu0 0.0
    %1132 = vmatpush1.msra.mxu0 0.0
    %1133 = vmatprep.subr.mxu0 0.0
    %1134 = vmatpush1.msra.mxu0 0.0
    %1135 = vmatprep.subr.mxu0 0.0
    %1136 = vmatpush1.msra.mxu0 0.0
    %1137 = vmatprep.subr.mxu0 0.0
    %1138 = vmatpush1.msra.mxu0 0.0
    %1139 = vmatprep.subr.mxu0 0.0
    %1140 = vmatpush1.msra.mxu0 0.0
    %1141 = vmatprep.subr.mxu0 0.0
    %1142 = vmatpush1.msra.mxu0 0.0
    %1143 = vmatprep.subr.mxu0 0.0
    %1144 = vmatpush1.msra.mxu0 0.0
    %1145 = vmatprep.subr.mxu0 0.0
    %1146 = vmatpush1.msra.mxu0 0.0
    %1147 = vmatprep.subr.mxu0 0.0
    %1148 = vmatpush1.msra.mxu0 0.0
    %1149 = vmatprep.subr.mxu0 0.0
    %1150 = vmatpush1.msra.mxu0 0.0
    %1151 = vmatprep.subr.mxu0 0.0
    %1152 = vmatpush1.msra.mxu0 0.0
    %1153 = vmatprep.subr.mxu0 0.0
    %1154 = vmatpush1.msra.mxu0 0.0
    %1155 = vmatprep.subr.mxu0 0.0
    %1156 = vmatpush1.msra.mxu0 0.0
    %1157 = vmatprep.mubr.f32.mxu0 0.0
    %1158 = vmatmul.mubr.f32.gmra.mrb[0].mxu0 %v1091
    %v1159 = vpop.f32.mrb[0].mxu0
    %v1160 = vadd.f32 0.0, %v1159
    %v1161 = vpop.f32.mrb[0].mxu0
    %1162 = vdwg.mxu0
    %v1163 = vlaneseq
    %v1164 = vshrl.u32 %v1163, 7
    %v1165 = vsub.s32 0, %v1164
    %v1166 = vrot.slane %v1160, %v1165
    %1168 = vrot.lane.b32.xlu0 %v1166, 32
    %v1169 = vpop.permute.xlu0 %1168
    %v1171 = vadd.f32 %v156, %v1169
    %v1172 = vtanh.pop %v1171
    %v1173 = vmul.f32 %v1172, %v482
    %1175 = vrot.lane.b32.xlu0 %v1173, 96
    %v1176 = vpop.permute.xlu0 %1175
    %v1178 = vsel %vm85, %v1176, 0.0
    %1179 = vadd.xlane.f32.xlu0 %v1178
    %v1180 = vpop.xlane.xlu0 %1179
    %v1181 = vrot.slane %v1180, 4
    %v1182 = vmax.f32 %v1180, %v1181
    %v1183 = vrot.slane %v1182, 2
    %v1184 = vmax.f32 %v1182, %v1183
    %v1185 = vrot.slane %v1184, 1
    %v1186 = vmax.f32 %v1184, %v1185
    %v1187 = vsub.f32 %v1180, %v1186
    %v1188 = vmul.f32 %v1187, 1.442695
    %v1189 = vpow.pop %v1188
    %v1190 = vrot.slane %v1189, 4
    %v1191 = vadd.f32 %v1189, %v1190
    %v1192 = vrot.slane %v1191, 2
    %v1193 = vadd.f32 %v1191, %v1192
    %v1194 = vrot.slane %v1193, 1
    %v1195 = vadd.f32 %v1193, %v1194
    %v1196 = vrcp.pop %v1195
    %v1197 = vmul.f32 %v1189, %v1196
    %v1198 = vmul.f32 %v1197, %v156
    %v1199 = vsel %vm510, %v1198, 0.0
    %v1200 = vrot.slane %v1199, 4
    %v1201 = vadd.f32 %v1199, %v1200
    %v1202 = vrot.slane %v1201, 2
    %v1203 = vadd.f32 %v1201, %v1202
    %v1204 = vrot.slane %v1203, 1
    %v1205 = vadd.f32 %v1203, %v1204
    %1207 = vrot.lane.b32.xlu0 %v1205, 96
    %v1208 = vpop.permute.xlu0 %1207
    %v1209 = vsel %vm85, %v1208, 0
    %1211 = vmatprep.subr.mxu0 0.0
    %1212 = vmatpush1.msra.mxu0 %v58
    %1213 = vmatprep.subr.mxu0 0.0
    %1214 = vmatpush1.msra.mxu0 %v59
    %1215 = vmatprep.subr.mxu0 0.0
    %1216 = vmatpush1.msra.mxu0 %v60
    %1217 = vmatprep.subr.mxu0 0.0
    %1218 = vmatpush1.msra.mxu0 %v61
    %1219 = vmatprep.subr.mxu0 0.0
    %1220 = vmatpush1.msra.mxu0 0.0
    %1221 = vmatprep.subr.mxu0 0.0
    %1222 = vmatpush1.msra.mxu0 0.0
    %1223 = vmatprep.subr.mxu0 0.0
    %1224 = vmatpush1.msra.mxu0 0.0
    %1225 = vmatprep.subr.mxu0 0.0
    %1226 = vmatpush1.msra.mxu0 0.0
    %1227 = vmatprep.subr.mxu0 0.0
    %1228 = vmatpush1.msra.mxu0 0.0
    %1229 = vmatprep.subr.mxu0 0.0
    %1230 = vmatpush1.msra.mxu0 0.0
    %1231 = vmatprep.subr.mxu0 0.0
    %1232 = vmatpush1.msra.mxu0 0.0
    %1233 = vmatprep.subr.mxu0 0.0
    %1234 = vmatpush1.msra.mxu0 0.0
    %1235 = vmatprep.subr.mxu0 0.0
    %1236 = vmatpush1.msra.mxu0 0.0
    %1237 = vmatprep.subr.mxu0 0.0
    %1238 = vmatpush1.msra.mxu0 0.0
    %1239 = vmatprep.subr.mxu0 0.0
    %1240 = vmatpush1.msra.mxu0 0.0
    %1241 = vmatprep.subr.mxu0 0.0
    %1242 = vmatpush1.msra.mxu0 0.0
    %1243 = vmatprep.subr.mxu0 0.0
    %1244 = vmatpush1.msra.mxu0 0.0
    %1245 = vmatprep.subr.mxu0 0.0
    %1246 = vmatpush1.msra.mxu0 0.0
    %1247 = vmatprep.subr.mxu0 0.0
    %1248 = vmatpush1.msra.mxu0 0.0
    %1249 = vmatprep.subr.mxu0 0.0
    %1250 = vmatpush1.msra.mxu0 0.0
    %1251 = vmatprep.subr.mxu0 0.0
    %1252 = vmatpush1.msra.mxu0 0.0
    %1253 = vmatprep.subr.mxu0 0.0
    %1254 = vmatpush1.msra.mxu0 0.0
    %1255 = vmatprep.subr.mxu0 0.0
    %1256 = vmatpush1.msra.mxu0 0.0
    %1257 = vmatprep.subr.mxu0 0.0
    %1258 = vmatpush1.msra.mxu0 0.0
    %1259 = vmatprep.subr.mxu0 0.0
    %1260 = vmatpush1.msra.mxu0 0.0
    %1261 = vmatprep.subr.mxu0 0.0
    %1262 = vmatpush1.msra.mxu0 0.0
    %1263 = vmatprep.subr.mxu0 0.0
    %1264 = vmatpush1.msra.mxu0 0.0
    %1265 = vmatprep.subr.mxu0 0.0
    %1266 = vmatpush1.msra.mxu0 0.0
    %1267 = vmatprep.subr.mxu0 0.0
    %1268 = vmatpush1.msra.mxu0 0.0
    %1269 = vmatprep.subr.mxu0 0.0
    %1270 = vmatpush1.msra.mxu0 0.0
    %1271 = vmatprep.subr.mxu0 0.0
    %1272 = vmatpush1.msra.mxu0 0.0
    %1273 = vmatprep.subr.mxu0 0.0
    %1274 = vmatpush1.msra.mxu0 0.0
    %1275 = vmatprep.mubr.f32.mxu0 0.0
    %1276 = vmatmul.mubr.f32.gmra.mrb[0].mxu0 %v1209
    %v1277 = vpop.f32.mrb[0].mxu0
    %v1278 = vadd.f32 0.0, %v1277
    %v1279 = vpop.f32.mrb[0].mxu0
    %1280 = vdwg.mxu0
    %v1281 = vlaneseq
    %v1282 = vshrl.u32 %v1281, 7
    %v1283 = vsub.s32 0, %v1282
    %v1284 = vrot.slane %v1278, %v1283
    %v1285 = vadd.f32 %v156, %v1284
    %v1286 = vtanh.pop %v1285
    %v1287 = vmul.f32 %v1286, %v720
    %v1288 = vsel %vm85, %v1287, 0.0
    %1289 = vadd.xlane.f32.xlu0 %v1288
    %v1290 = vpop.xlane.xlu0 %1289
    %v1291 = vrot.slane %v1290, 4
    %v1292 = vmax.f32 %v1290, %v1291
    %v1293 = vrot.slane %v1292, 2
    %v1294 = vmax.f32 %v1292, %v1293
    %v1295 = vrot.slane %v1294, 1
    %v1296 = vmax.f32 %v1294, %v1295
    %v1297 = vsub.f32 %v1290, %v1296
    %v1298 = vmul.f32 %v1297, 1.442695
    %v1299 = vpow.pop %v1298
    %v1300 = vrot.slane %v1299, 4
    %v1301 = vadd.f32 %v1299, %v1300
    %v1302 = vrot.slane %v1301, 2
    %v1303 = vadd.f32 %v1301, %v1302
    %v1304 = vrot.slane %v1303, 1
    %v1305 = vadd.f32 %v1303, %v1304
    %v1306 = vrcp.pop %v1305
    %v1307 = vmul.f32 %v1299, %v1306
    %v1308 = vmul.f32 %v1307, %v167
    %v1309 = vsel %vm743, %v1308, 0.0
    %v1310 = vrot.slane %v1309, 4
    %v1311 = vadd.f32 %v1309, %v1310
    %v1312 = vrot.slane %v1311, 2
    %v1313 = vadd.f32 %v1311, %v1312
    %v1314 = vrot.slane %v1313, 1
    %v1315 = vadd.f32 %v1313, %v1314
    %v1316 = vadd.f32 %v1315, %v754
    %vm1317 = vcmp.eq.s32.totalorder %v169, 1
    %1319 = vset.pattern.permute.xlu0 32
    %1320 = vperm.xlu0 %1319, %v1316
    %v1321 = vpop.permute.xlu0 %1320
    %v1323 = vsel %vm1317, %v1321, %v763
    %1324 = vrot.lane.b32.xlu0 %v864, 64
    %v1325 = vpop.permute.xlu0 %1324
    %v1327 = vsel %vm85, %v1315, %v1325
    %v1329 = vsel %vm180, %v1327, 0
    %1331 = vmatprep.subr.mxu0 0.0
    %1332 = vmatpush1.msra.mxu0 %v66
    %1333 = vmatprep.subr.mxu0 0.0
    %1334 = vmatpush1.msra.mxu0 %v67
    %1335 = vmatprep.subr.mxu0 0.0
    %1336 = vmatpush1.msra.mxu0 %v68
    %1337 = vmatprep.subr.mxu0 0.0
    %1338 = vmatpush1.msra.mxu0 %v69
    %1339 = vmatprep.subr.mxu0 0.0
    %1340 = vmatpush1.msra.mxu0 %v70
    %1341 = vmatprep.subr.mxu0 0.0
    %1342 = vmatpush1.msra.mxu0 %v71
    %1343 = vmatprep.subr.mxu0 0.0
    %1344 = vmatpush1.msra.mxu0 %v72
    %1345 = vmatprep.subr.mxu0 0.0
    %1346 = vmatpush1.msra.mxu0 %v73
    %1347 = vmatprep.subr.mxu0 0.0
    %1348 = vmatpush1.msra.mxu0 0.0
    %1349 = vmatprep.subr.mxu0 0.0
    %1350 = vmatpush1.msra.mxu0 0.0
    %1351 = vmatprep.subr.mxu0 0.0
    %1352 = vmatpush1.msra.mxu0 0.0
    %1353 = vmatprep.subr.mxu0 0.0
    %1354 = vmatpush1.msra.mxu0 0.0
    %1355 = vmatprep.subr.mxu0 0.0
    %1356 = vmatpush1.msra.mxu0 0.0
    %1357 = vmatprep.subr.mxu0 0.0
    %1358 = vmatpush1.msra.mxu0 0.0
    %1359 = vmatprep.subr.mxu0 0.0
    %1360 = vmatpush1.msra.mxu0 0.0
    %1361 = vmatprep.subr.mxu0 0.0
    %1362 = vmatpush1.msra.mxu0 0.0
    %1363 = vmatprep.subr.mxu0 0.0
    %1364 = vmatpush1.msra.mxu0 0.0
    %1365 = vmatprep.subr.mxu0 0.0
    %1366 = vmatpush1.msra.mxu0 0.0
    %1367 = vmatprep.subr.mxu0 0.0
    %1368 = vmatpush1.msra.mxu0 0.0
    %1369 = vmatprep.subr.mxu0 0.0
    %1370 = vmatpush1.msra.mxu0 0.0
    %1371 = vmatprep.subr.mxu0 0.0
    %1372 = vmatpush1.msra.mxu0 0.0
    %1373 = vmatprep.subr.mxu0 0.0
    %1374 = vmatpush1.msra.mxu0 0.0
    %1375 = vmatprep.subr.mxu0 0.0
    %1376 = vmatpush1.msra.mxu0 0.0
    %1377 = vmatprep.subr.mxu0 0.0
    %1378 = vmatpush1.msra.mxu0 0.0
    %1379 = vmatprep.subr.mxu0 0.0
    %1380 = vmatpush1.msra.mxu0 0.0
    %1381 = vmatprep.subr.mxu0 0.0
    %1382 = vmatpush1.msra.mxu0 0.0
    %1383 = vmatprep.subr.mxu0 0.0
    %1384 = vmatpush1.msra.mxu0 0.0
    %1385 = vmatprep.subr.mxu0 0.0
    %1386 = vmatpush1.msra.mxu0 0.0
    %1387 = vmatprep.subr.mxu0 0.0
    %1388 = vmatpush1.msra.mxu0 0.0
    %1389 = vmatprep.subr.mxu0 0.0
    %1390 = vmatpush1.msra.mxu0 0.0
    %1391 = vmatprep.subr.mxu0 0.0
    %1392 = vmatpush1.msra.mxu0 0.0
    %1393 = vmatprep.subr.mxu0 0.0
    %1394 = vmatpush1.msra.mxu0 0.0
    %1395 = vmatprep.mubr.f32.mxu0 0.0
    %1396 = vmatmul.mubr.f32.gmra.mrb[0].mxu0 %v1329
    %v1397 = vpop.f32.mrb[0].mxu0
    %v1398 = vadd.f32 %v178, %v1397
    %v1399 = vpop.f32.mrb[0].mxu0
    %1400 = vdwg.mxu0
    %v1401 = vxor.u32 %v1398, 2147483648
    %v1402 = vmul.f32 %v1401, 1.442695
    %v1403 = vpow.pop %v1402
    %v1404 = vadd.f32 %v1403, 1.0
    %v1405 = vrcp.pop %v1404
    %v1406 = vmul.f32 1.0, %v1405
    %v1407 = vtanh.pop %v1398
    %v1408 = vmul.f32 %v1406, %v858
    %1410 = vrot.lane.b32.xlu0 %v1407, 64
    %v1411 = vpop.permute.xlu0 %1410
    %v1413 = vmul.f32 %v1406, %v1411
    %1415 = vrot.lane.b32.xlu0 %v1413, 32
    %v1416 = vpop.permute.xlu0 %1415
    %v1418 = vadd.f32 %v1408, %v1416
    %v1419 = vtanh.pop %v1418
    %1421 = vrot.lane.b32.xlu0 %v1419, 64
    %v1422 = vpop.permute.xlu0 %1421
    %v1424 = vmul.f32 %v1406, %v1422
    %1426 = vrot.lane.b32.xlu0 %v1424, 32
    %v1427 = vpop.permute.xlu0 %1426
    %1429 = vrot.lane.b32.xlu0 %v969, 64
    %v1430 = vpop.permute.xlu0 %1429
    %v1432 = vsel %vm85, %v1427, %v1430
    %v1434 = vsel %vm180, %v1432, 0
    %1436 = vmatprep.subr.mxu0 0.0
    %1437 = vmatpush1.msra.mxu0 %v74
    %1438 = vmatprep.subr.mxu0 0.0
    %1439 = vmatpush1.msra.mxu0 %v75
    %1440 = vmatprep.subr.mxu0 0.0
    %1441 = vmatpush1.msra.mxu0 %v76
    %1442 = vmatprep.subr.mxu0 0.0
    %1443 = vmatpush1.msra.mxu0 %v77
    %1444 = vmatprep.subr.mxu0 0.0
    %1445 = vmatpush1.msra.mxu0 %v78
    %1446 = vmatprep.subr.mxu0 0.0
    %1447 = vmatpush1.msra.mxu0 %v79
    %1448 = vmatprep.subr.mxu0 0.0
    %1449 = vmatpush1.msra.mxu0 %v80
    %1450 = vmatprep.subr.mxu0 0.0
    %1451 = vmatpush1.msra.mxu0 %v81
    %1452 = vmatprep.subr.mxu0 0.0
    %1453 = vmatpush1.msra.mxu0 0.0
    %1454 = vmatprep.subr.mxu0 0.0
    %1455 = vmatpush1.msra.mxu0 0.0
    %1456 = vmatprep.subr.mxu0 0.0
    %1457 = vmatpush1.msra.mxu0 0.0
    %1458 = vmatprep.subr.mxu0 0.0
    %1459 = vmatpush1.msra.mxu0 0.0
    %1460 = vmatprep.subr.mxu0 0.0
    %1461 = vmatpush1.msra.mxu0 0.0
    %1462 = vmatprep.subr.mxu0 0.0
    %1463 = vmatpush1.msra.mxu0 0.0
    %1464 = vmatprep.subr.mxu0 0.0
    %1465 = vmatpush1.msra.mxu0 0.0
    %1466 = vmatprep.subr.mxu0 0.0
    %1467 = vmatpush1.msra.mxu0 0.0
    %1468 = vmatprep.subr.mxu0 0.0
    %1469 = vmatpush1.msra.mxu0 0.0
    %1470 = vmatprep.subr.mxu0 0.0
    %1471 = vmatpush1.msra.mxu0 0.0
    %1472 = vmatprep.subr.mxu0 0.0
    %1473 = vmatpush1.msra.mxu0 0.0
    %1474 = vmatprep.subr.mxu0 0.0
    %1475 = vmatpush1.msra.mxu0 0.0
    %1476 = vmatprep.subr.mxu0 0.0
    %1477 = vmatpush1.msra.mxu0 0.0
    %1478 = vmatprep.subr.mxu0 0.0
    %1479 = vmatpush1.msra.mxu0 0.0
    %1480 = vmatprep.subr.mxu0 0.0
    %1481 = vmatpush1.msra.mxu0 0.0
    %1482 = vmatprep.subr.mxu0 0.0
    %1483 = vmatpush1.msra.mxu0 0.0
    %1484 = vmatprep.subr.mxu0 0.0
    %1485 = vmatpush1.msra.mxu0 0.0
    %1486 = vmatprep.subr.mxu0 0.0
    %1487 = vmatpush1.msra.mxu0 0.0
    %1488 = vmatprep.subr.mxu0 0.0
    %1489 = vmatpush1.msra.mxu0 0.0
    %1490 = vmatprep.subr.mxu0 0.0
    %1491 = vmatpush1.msra.mxu0 0.0
    %1492 = vmatprep.subr.mxu0 0.0
    %1493 = vmatpush1.msra.mxu0 0.0
    %1494 = vmatprep.subr.mxu0 0.0
    %1495 = vmatpush1.msra.mxu0 0.0
    %1496 = vmatprep.subr.mxu0 0.0
    %1497 = vmatpush1.msra.mxu0 0.0
    %1498 = vmatprep.subr.mxu0 0.0
    %1499 = vmatpush1.msra.mxu0 0.0
    %1500 = vmatprep.mubr.f32.mxu0 0.0
    %1501 = vmatmul.mubr.f32.gmra.mrb[0].mxu0 %v1434
    %v1502 = vpop.f32.mrb[0].mxu0
    %v1503 = vadd.f32 %v83, %v1502
    %v1504 = vpop.f32.mrb[0].mxu0
    %1505 = vdwg.mxu0
    %v1506 = vxor.u32 %v1503, 2147483648
    %v1507 = vmul.f32 %v1506, 1.442695
    %v1508 = vpow.pop %v1507
    %v1509 = vadd.f32 %v1508, 1.0
    %v1510 = vrcp.pop %v1509
    %v1511 = vmul.f32 1.0, %v1510
    %v1512 = vtanh.pop %v1503
    %v1513 = vmul.f32 %v1511, %v963
    %1515 = vrot.lane.b32.xlu0 %v1512, 64
    %v1516 = vpop.permute.xlu0 %1515
    %v1518 = vmul.f32 %v1511, %v1516
    %1520 = vrot.lane.b32.xlu0 %v1518, 32
    %v1521 = vpop.permute.xlu0 %1520
    %v1523 = vadd.f32 %v1513, %v1521
    %v1524 = vtanh.pop %v1523
    %1526 = vrot.lane.b32.xlu0 %v1524, 64
    %v1527 = vpop.permute.xlu0 %1526
    %v1529 = vmul.f32 %v1511, %v1527
    %1531 = vrot.lane.b32.xlu0 %v1529, 32
    %v1532 = vpop.permute.xlu0 %1531
    %v1533 = vsel %vm85, %v1532, 0
    %1535 = vmatprep.subr.mxu0 0.0
    %1536 = vmatpush1.msra.mxu0 %v62
    %1537 = vmatprep.subr.mxu0 0.0
    %1538 = vmatpush1.msra.mxu0 %v63
    %1539 = vmatprep.subr.mxu0 0.0
    %1540 = vmatpush1.msra.mxu0 %v64
    %1541 = vmatprep.subr.mxu0 0.0
    %1542 = vmatpush1.msra.mxu0 %v65
    %1543 = vmatprep.subr.mxu0 0.0
    %1544 = vmatpush1.msra.mxu0 0.0
    %1545 = vmatprep.subr.mxu0 0.0
    %1546 = vmatpush1.msra.mxu0 0.0
    %1547 = vmatprep.subr.mxu0 0.0
    %1548 = vmatpush1.msra.mxu0 0.0
    %1549 = vmatprep.subr.mxu0 0.0
    %1550 = vmatpush1.msra.mxu0 0.0
    %1551 = vmatprep.subr.mxu0 0.0
    %1552 = vmatpush1.msra.mxu0 0.0
    %1553 = vmatprep.subr.mxu0 0.0
    %1554 = vmatpush1.msra.mxu0 0.0
    %1555 = vmatprep.subr.mxu0 0.0
    %1556 = vmatpush1.msra.mxu0 0.0
    %1557 = vmatprep.subr.mxu0 0.0
    %1558 = vmatpush1.msra.mxu0 0.0
    %1559 = vmatprep.subr.mxu0 0.0
    %1560 = vmatpush1.msra.mxu0 0.0
    %1561 = vmatprep.subr.mxu0 0.0
    %1562 = vmatpush1.msra.mxu0 0.0
    %1563 = vmatprep.subr.mxu0 0.0
    %1564 = vmatpush1.msra.mxu0 0.0
    %1565 = vmatprep.subr.mxu0 0.0
    %1566 = vmatpush1.msra.mxu0 0.0
    %1567 = vmatprep.subr.mxu0 0.0
    %1568 = vmatpush1.msra.mxu0 0.0
    %1569 = vmatprep.subr.mxu0 0.0
    %1570 = vmatpush1.msra.mxu0 0.0
    %1571 = vmatprep.subr.mxu0 0.0
    %1572 = vmatpush1.msra.mxu0 0.0
    %1573 = vmatprep.subr.mxu0 0.0
    %1574 = vmatpush1.msra.mxu0 0.0
    %1575 = vmatprep.subr.mxu0 0.0
    %1576 = vmatpush1.msra.mxu0 0.0
    %1577 = vmatprep.subr.mxu0 0.0
    %1578 = vmatpush1.msra.mxu0 0.0
    %1579 = vmatprep.subr.mxu0 0.0
    %1580 = vmatpush1.msra.mxu0 0.0
    %1581 = vmatprep.subr.mxu0 0.0
    %1582 = vmatpush1.msra.mxu0 0.0
    %1583 = vmatprep.subr.mxu0 0.0
    %1584 = vmatpush1.msra.mxu0 0.0
    %1585 = vmatprep.subr.mxu0 0.0
    %1586 = vmatpush1.msra.mxu0 0.0
    %1587 = vmatprep.subr.mxu0 0.0
    %1588 = vmatpush1.msra.mxu0 0.0
    %1589 = vmatprep.subr.mxu0 0.0
    %1590 = vmatpush1.msra.mxu0 0.0
    %1591 = vmatprep.subr.mxu0 0.0
    %1592 = vmatpush1.msra.mxu0 0.0
    %1593 = vmatprep.subr.mxu0 0.0
    %1594 = vmatpush1.msra.mxu0 0.0
    %1595 = vmatprep.subr.mxu0 0.0
    %1596 = vmatpush1.msra.mxu0 0.0
    %1597 = vmatprep.subr.mxu0 0.0
    %1598 = vmatpush1.msra.mxu0 0.0
    %1599 = vmatprep.mubr.f32.mxu0 0.0
    %1600 = vmatmul.mubr.f32.gmra.mrb[0].mxu0 %v1533
    %v1601 = vpop.f32.mrb[0].mxu0
    %v1602 = vadd.f32 0.0, %v1601
    %v1603 = vpop.f32.mrb[0].mxu0
    %1604 = vdwg.mxu0
    %v1605 = vlaneseq
    %v1606 = vshrl.u32 %v1605, 7
    %v1607 = vsub.s32 0, %v1606
    %v1608 = vrot.slane %v1602, %v1607
    %1610 = vrot.lane.b32.xlu0 %v1608, 32
    %v1611 = vpop.permute.xlu0 %1610
    %v1613 = vadd.f32 %v156, %v1611
    %v1614 = vtanh.pop %v1613
    %v1615 = vmul.f32 %v1614, %v482
    %1617 = vrot.lane.b32.xlu0 %v1615, 96
    %v1618 = vpop.permute.xlu0 %1617
    %v1620 = vsel %vm85, %v1618, 0.0
    %1621 = vadd.xlane.f32.xlu0 %v1620
    %v1622 = vpop.xlane.xlu0 %1621
    %v1623 = vrot.slane %v1622, 4
    %v1624 = vmax.f32 %v1622, %v1623
    %v1625 = vrot.slane %v1624, 2
    %v1626 = vmax.f32 %v1624, %v1625
    %v1627 = vrot.slane %v1626, 1
    %v1628 = vmax.f32 %v1626, %v1627
    %v1629 = vsub.f32 %v1622, %v1628
    %v1630 = vmul.f32 %v1629, 1.442695
    %v1631 = vpow.pop %v1630
    %v1632 = vrot.slane %v1631, 4
    %v1633 = vadd.f32 %v1631, %v1632
    %v1634 = vrot.slane %v1633, 2
    %v1635 = vadd.f32 %v1633, %v1634
    %v1636 = vrot.slane %v1635, 1
    %v1637 = vadd.f32 %v1635, %v1636
    %v1638 = vrcp.pop %v1637
    %v1639 = vmul.f32 %v1631, %v1638
    %v1640 = vmul.f32 %v1639, %v156
    %v1641 = vsel %vm510, %v1640, 0.0
    %v1642 = vrot.slane %v1641, 4
    %v1643 = vadd.f32 %v1641, %v1642
    %v1644 = vrot.slane %v1643, 2
    %v1645 = vadd.f32 %v1643, %v1644
    %v1646 = vrot.slane %v1645, 1
    %v1647 = vadd.f32 %v1645, %v1646
    %1649 = vrot.lane.b32.xlu0 %v1647, 96
    %v1650 = vpop.permute.xlu0 %1649
    %v1651 = vsel %vm85, %v1650, 0
    %1653 = vmatprep.subr.mxu0 0.0
    %1654 = vmatpush1.msra.mxu0 %v62
    %1655 = vmatprep.subr.mxu0 0.0
    %1656 = vmatpush1.msra.mxu0 %v63
    %1657 = vmatprep.subr.mxu0 0.0
    %1658 = vmatpush1.msra.mxu0 %v64
    %1659 = vmatprep.subr.mxu0 0.0
    %1660 = vmatpush1.msra.mxu0 %v65
    %1661 = vmatprep.subr.mxu0 0.0
    %1662 = vmatpush1.msra.mxu0 0.0
    %1663 = vmatprep.subr.mxu0 0.0
    %1664 = vmatpush1.msra.mxu0 0.0
    %1665 = vmatprep.subr.mxu0 0.0
    %1666 = vmatpush1.msra.mxu0 0.0
    %1667 = vmatprep.subr.mxu0 0.0
    %1668 = vmatpush1.msra.mxu0 0.0
    %1669 = vmatprep.subr.mxu0 0.0
    %1670 = vmatpush1.msra.mxu0 0.0
    %1671 = vmatprep.subr.mxu0 0.0
    %1672 = vmatpush1.msra.mxu0 0.0
    %1673 = vmatprep.subr.mxu0 0.0
    %1674 = vmatpush1.msra.mxu0 0.0
    %1675 = vmatprep.subr.mxu0 0.0
    %1676 = vmatpush1.msra.mxu0 0.0
    %1677 = vmatprep.subr.mxu0 0.0
    %1678 = vmatpush1.msra.mxu0 0.0
    %1679 = vmatprep.subr.mxu0 0.0
    %1680 = vmatpush1.msra.mxu0 0.0
    %1681 = vmatprep.subr.mxu0 0.0
    %1682 = vmatpush1.msra.mxu0 0.0
    %1683 = vmatprep.subr.mxu0 0.0
    %1684 = vmatpush1.msra.mxu0 0.0
    %1685 = vmatprep.subr.mxu0 0.0
    %1686 = vmatpush1.msra.mxu0 0.0
    %1687 = vmatprep.subr.mxu0 0.0
    %1688 = vmatpush1.msra.mxu0 0.0
    %1689 = vmatprep.subr.mxu0 0.0
    %1690 = vmatpush1.msra.mxu0 0.0
    %1691 = vmatprep.subr.mxu0 0.0
    %1692 = vmatpush1.msra.mxu0 0.0
    %1693 = vmatprep.subr.mxu0 0.0
    %1694 = vmatpush1.msra.mxu0 0.0
    %1695 = vmatprep.subr.mxu0 0.0
    %1696 = vmatpush1.msra.mxu0 0.0
    %1697 = vmatprep.subr.mxu0 0.0
    %1698 = vmatpush1.msra.mxu0 0.0
    %1699 = vmatprep.subr.mxu0 0.0
    %1700 = vmatpush1.msra.mxu0 0.0
    %1701 = vmatprep.subr.mxu0 0.0
    %1702 = vmatpush1.msra.mxu0 0.0
    %1703 = vmatprep.subr.mxu0 0.0
    %1704 = vmatpush1.msra.mxu0 0.0
    %1705 = vmatprep.subr.mxu0 0.0
    %1706 = vmatpush1.msra.mxu0 0.0
    %1707 = vmatprep.subr.mxu0 0.0
    %1708 = vmatpush1.msra.mxu0 0.0
    %1709 = vmatprep.subr.mxu0 0.0
    %1710 = vmatpush1.msra.mxu0 0.0
    %1711 = vmatprep.subr.mxu0 0.0
    %1712 = vmatpush1.msra.mxu0 0.0
    %1713 = vmatprep.subr.mxu0 0.0
    %1714 = vmatpush1.msra.mxu0 0.0
    %1715 = vmatprep.subr.mxu0 0.0
    %1716 = vmatpush1.msra.mxu0 0.0
    %1717 = vmatprep.mubr.f32.mxu0 0.0
    %1718 = vmatmul.mubr.f32.gmra.mrb[0].mxu0 %v1651
    %v1719 = vpop.f32.mrb[0].mxu0
    %v1720 = vadd.f32 0.0, %v1719
    %v1721 = vpop.f32.mrb[0].mxu0
    %1722 = vdwg.mxu0
    %v1723 = vlaneseq
    %v1724 = vshrl.u32 %v1723, 7
    %v1725 = vsub.s32 0, %v1724
    %v1726 = vrot.slane %v1720, %v1725
    %1728 = vrot.lane.b32.xlu0 %v1726, 32
    %v1729 = vpop.permute.xlu0 %1728
    %v1731 = vadd.f32 %v156, %v1729
    %v1732 = vtanh.pop %v1731
    %v1733 = vmul.f32 %v1732, %v482
    %1735 = vrot.lane.b32.xlu0 %v1733, 96
    %v1736 = vpop.permute.xlu0 %1735
    %v1738 = vsel %vm85, %v1736, 0.0
    %1739 = vadd.xlane.f32.xlu0 %v1738
    %v1740 = vpop.xlane.xlu0 %1739
    %v1741 = vrot.slane %v1740, 4
    %v1742 = vmax.f32 %v1740, %v1741
    %v1743 = vrot.slane %v1742, 2
    %v1744 = vmax.f32 %v1742, %v1743
    %v1745 = vrot.slane %v1744, 1
    %v1746 = vmax.f32 %v1744, %v1745
    %v1747 = vsub.f32 %v1740, %v1746
    %v1748 = vmul.f32 %v1747, 1.442695
    %v1749 = vpow.pop %v1748
    %v1750 = vrot.slane %v1749, 4
    %v1751 = vadd.f32 %v1749, %v1750
    %v1752 = vrot.slane %v1751, 2
    %v1753 = vadd.f32 %v1751, %v1752
    %v1754 = vrot.slane %v1753, 1
    %v1755 = vadd.f32 %v1753, %v1754
    %v1756 = vrcp.pop %v1755
    %v1757 = vmul.f32 %v1749, %v1756
    %v1758 = vmul.f32 %v1757, %v156
    %v1759 = vsel %vm510, %v1758, 0.0
    %v1760 = vrot.slane %v1759, 4
    %v1761 = vadd.f32 %v1759, %v1760
    %v1762 = vrot.slane %v1761, 2
    %v1763 = vadd.f32 %v1761, %v1762
    %v1764 = vrot.slane %v1763, 1
    %v1765 = vadd.f32 %v1763, %v1764
    %1767 = vrot.lane.b32.xlu0 %v1765, 96
    %v1768 = vpop.permute.xlu0 %1767
    %v1769 = vsel %vm85, %v1768, 0
    %1771 = vmatprep.subr.mxu0 0.0
    %1772 = vmatpush1.msra.mxu0 %v58
    %1773 = vmatprep.subr.mxu0 0.0
    %1774 = vmatpush1.msra.mxu0 %v59
    %1775 = vmatprep.subr.mxu0 0.0
    %1776 = vmatpush1.msra.mxu0 %v60
    %1777 = vmatprep.subr.mxu0 0.0
    %1778 = vmatpush1.msra.mxu0 %v61
    %1779 = vmatprep.subr.mxu0 0.0
    %1780 = vmatpush1.msra.mxu0 0.0
    %1781 = vmatprep.subr.mxu0 0.0
    %1782 = vmatpush1.msra.mxu0 0.0
    %1783 = vmatprep.subr.mxu0 0.0
    %1784 = vmatpush1.msra.mxu0 0.0
    %1785 = vmatprep.subr.mxu0 0.0
    %1786 = vmatpush1.msra.mxu0 0.0
    %1787 = vmatprep.subr.mxu0 0.0
    %1788 = vmatpush1.msra.mxu0 0.0
    %1789 = vmatprep.subr.mxu0 0.0
    %1790 = vmatpush1.msra.mxu0 0.0
    %1791 = vmatprep.subr.mxu0 0.0
    %1792 = vmatpush1.msra.mxu0 0.0
    %1793 = vmatprep.subr.mxu0 0.0
    %1794 = vmatpush1.msra.mxu0 0.0
    %1795 = vmatprep.subr.mxu0 0.0
    %1796 = vmatpush1.msra.mxu0 0.0
    %1797 = vmatprep.subr.mxu0 0.0
    %1798 = vmatpush1.msra.mxu0 0.0
    %1799 = vmatprep.subr.mxu0 0.0
    %1800 = vmatpush1.msra.mxu0 0.0
    %1801 = vmatprep.subr.mxu0 0.0
    %1802 = vmatpush1.msra.mxu0 0.0
    %1803 = vmatprep.subr.mxu0 0.0
    %1804 = vmatpush1.msra.mxu0 0.0
    %1805 = vmatprep.subr.mxu0 0.0
    %1806 = vmatpush1.msra.mxu0 0.0
    %1807 = vmatprep.subr.mxu0 0.0
    %1808 = vmatpush1.msra.mxu0 0.0
    %1809 = vmatprep.subr.mxu0 0.0
    %1810 = vmatpush1.msra.mxu0 0.0
    %1811 = vmatprep.subr.mxu0 0.0
    %1812 = vmatpush1.msra.mxu0 0.0
    %1813 = vmatprep.subr.mxu0 0.0
    %1814 = vmatpush1.msra.mxu0 0.0
    %1815 = vmatprep.subr.mxu0 0.0
    %1816 = vmatpush1.msra.mxu0 0.0
    %1817 = vmatprep.subr.mxu0 0.0
    %1818 = vmatpush1.msra.mxu0 0.0
    %1819 = vmatprep.subr.mxu0 0.0
    %1820 = vmatpush1.msra.mxu0 0.0
    %1821 = vmatprep.subr.mxu0 0.0
    %1822 = vmatpush1.msra.mxu0 0.0
    %1823 = vmatprep.subr.mxu0 0.0
    %1824 = vmatpush1.msra.mxu0 0.0
    %1825 = vmatprep.subr.mxu0 0.0
    %1826 = vmatpush1.msra.mxu0 0.0
    %1827 = vmatprep.subr.mxu0 0.0
    %1828 = vmatpush1.msra.mxu0 0.0
    %1829 = vmatprep.subr.mxu0 0.0
    %1830 = vmatpush1.msra.mxu0 0.0
    %1831 = vmatprep.subr.mxu0 0.0
    %1832 = vmatpush1.msra.mxu0 0.0
    %1833 = vmatprep.subr.mxu0 0.0
    %1834 = vmatpush1.msra.mxu0 0.0
    %1835 = vmatprep.mubr.f32.mxu0 0.0
    %1836 = vmatmul.mubr.f32.gmra.mrb[0].mxu0 %v1769
    %v1837 = vpop.f32.mrb[0].mxu0
    %v1838 = vadd.f32 0.0, %v1837
    %v1839 = vpop.f32.mrb[0].mxu0
    %1840 = vdwg.mxu0
    %v1841 = vlaneseq
    %v1842 = vshrl.u32 %v1841, 7
    %v1843 = vsub.s32 0, %v1842
    %v1844 = vrot.slane %v1838, %v1843
    %v1845 = vadd.f32 %v156, %v1844
    %v1846 = vtanh.pop %v1845
    %v1847 = vmul.f32 %v1846, %v720
    %v1848 = vsel %vm85, %v1847, 0.0
    %1849 = vadd.xlane.f32.xlu0 %v1848
    %v1850 = vpop.xlane.xlu0 %1849
    %v1851 = vrot.slane %v1850, 4
    %v1852 = vmax.f32 %v1850, %v1851
    %v1853 = vrot.slane %v1852, 2
    %v1854 = vmax.f32 %v1852, %v1853
    %v1855 = vrot.slane %v1854, 1
    %v1856 = vmax.f32 %v1854, %v1855
    %v1857 = vsub.f32 %v1850, %v1856
    %v1858 = vmul.f32 %v1857, 1.442695
    %v1859 = vpow.pop %v1858
    %v1860 = vrot.slane %v1859, 4
    %v1861 = vadd.f32 %v1859, %v1860
    %v1862 = vrot.slane %v1861, 2
    %v1863 = vadd.f32 %v1861, %v1862
    %v1864 = vrot.slane %v1863, 1
    %v1865 = vadd.f32 %v1863, %v1864
    %v1866 = vrcp.pop %v1865
    %v1867 = vmul.f32 %v1859, %v1866
    %v1868 = vmul.f32 %v1867, %v167
    %v1869 = vsel %vm743, %v1868, 0.0
    %v1870 = vrot.slane %v1869, 4
    %v1871 = vadd.f32 %v1869, %v1870
    %v1872 = vrot.slane %v1871, 2
    %v1873 = vadd.f32 %v1871, %v1872
    %v1874 = vrot.slane %v1873, 1
    %v1875 = vadd.f32 %v1873, %v1874
    %v1876 = vadd.f32 %v1875, %v754
    %vm1877 = vcmp.eq.s32.totalorder %v169, 2
    %1879 = vset.pattern.permute.xlu0 32
    %1880 = vperm.xlu0 %1879, %v1876
    %v1881 = vpop.permute.xlu0 %1880
    %v1883 = vsel %vm1877, %v1881, %v1323
    %1884 = vrot.lane.b32.xlu0 %v1424, 64
    %v1885 = vpop.permute.xlu0 %1884
    %v1887 = vsel %vm85, %v1875, %v1885
    %v1889 = vsel %vm180, %v1887, 0
    %1891 = vmatprep.subr.mxu0 0.0
    %1892 = vmatpush1.msra.mxu0 %v66
    %1893 = vmatprep.subr.mxu0 0.0
    %1894 = vmatpush1.msra.mxu0 %v67
    %1895 = vmatprep.subr.mxu0 0.0
    %1896 = vmatpush1.msra.mxu0 %v68
    %1897 = vmatprep.subr.mxu0 0.0
    %1898 = vmatpush1.msra.mxu0 %v69
    %1899 = vmatprep.subr.mxu0 0.0
    %1900 = vmatpush1.msra.mxu0 %v70
    %1901 = vmatprep.subr.mxu0 0.0
    %1902 = vmatpush1.msra.mxu0 %v71
    %1903 = vmatprep.subr.mxu0 0.0
    %1904 = vmatpush1.msra.mxu0 %v72
    %1905 = vmatprep.subr.mxu0 0.0
    %1906 = vmatpush1.msra.mxu0 %v73
    %1907 = vmatprep.subr.mxu0 0.0
    %1908 = vmatpush1.msra.mxu0 0.0
    %1909 = vmatprep.subr.mxu0 0.0
    %1910 = vmatpush1.msra.mxu0 0.0
    %1911 = vmatprep.subr.mxu0 0.0
    %1912 = vmatpush1.msra.mxu0 0.0
    %1913 = vmatprep.subr.mxu0 0.0
    %1914 = vmatpush1.msra.mxu0 0.0
    %1915 = vmatprep.subr.mxu0 0.0
    %1916 = vmatpush1.msra.mxu0 0.0
    %1917 = vmatprep.subr.mxu0 0.0
    %1918 = vmatpush1.msra.mxu0 0.0
    %1919 = vmatprep.subr.mxu0 0.0
    %1920 = vmatpush1.msra.mxu0 0.0
    %1921 = vmatprep.subr.mxu0 0.0
    %1922 = vmatpush1.msra.mxu0 0.0
    %1923 = vmatprep.subr.mxu0 0.0
    %1924 = vmatpush1.msra.mxu0 0.0
    %1925 = vmatprep.subr.mxu0 0.0
    %1926 = vmatpush1.msra.mxu0 0.0
    %1927 = vmatprep.subr.mxu0 0.0
    %1928 = vmatpush1.msra.mxu0 0.0
    %1929 = vmatprep.subr.mxu0 0.0
    %1930 = vmatpush1.msra.mxu0 0.0
    %1931 = vmatprep.subr.mxu0 0.0
    %1932 = vmatpush1.msra.mxu0 0.0
    %1933 = vmatprep.subr.mxu0 0.0
    %1934 = vmatpush1.msra.mxu0 0.0
    %1935 = vmatprep.subr.mxu0 0.0
    %1936 = vmatpush1.msra.mxu0 0.0
    %1937 = vmatprep.subr.mxu0 0.0
    %1938 = vmatpush1.msra.mxu0 0.0
    %1939 = vmatprep.subr.mxu0 0.0
    %1940 = vmatpush1.msra.mxu0 0.0
    %1941 = vmatprep.subr.mxu0 0.0
    %1942 = vmatpush1.msra.mxu0 0.0
    %1943 = vmatprep.subr.mxu0 0.0
    %1944 = vmatpush1.msra.mxu0 0.0
    %1945 = vmatprep.subr.mxu0 0.0
    %1946 = vmatpush1.msra.mxu0 0.0
    %1947 = vmatprep.subr.mxu0 0.0
    %1948 = vmatpush1.msra.mxu0 0.0
    %1949 = vmatprep.subr.mxu0 0.0
    %1950 = vmatpush1.msra.mxu0 0.0
    %1951 = vmatprep.subr.mxu0 0.0
    %1952 = vmatpush1.msra.mxu0 0.0
    %1953 = vmatprep.subr.mxu0 0.0
    %1954 = vmatpush1.msra.mxu0 0.0
    %1955 = vmatprep.mubr.f32.mxu0 0.0
    %1956 = vmatmul.mubr.f32.gmra.mrb[0].mxu0 %v1889
    %v1957 = vpop.f32.mrb[0].mxu0
    %v1958 = vadd.f32 %v178, %v1957
    %v1959 = vpop.f32.mrb[0].mxu0
    %1960 = vdwg.mxu0
    %v1961 = vxor.u32 %v1958, 2147483648
    %v1962 = vmul.f32 %v1961, 1.442695
    %v1963 = vpow.pop %v1962
    %v1964 = vadd.f32 %v1963, 1.0
    %v1965 = vrcp.pop %v1964
    %v1966 = vmul.f32 1.0, %v1965
    %v1967 = vtanh.pop %v1958
    %v1968 = vmul.f32 %v1966, %v1418
    %1970 = vrot.lane.b32.xlu0 %v1967, 64
    %v1971 = vpop.permute.xlu0 %1970
    %v1973 = vmul.f32 %v1966, %v1971
    %1975 = vrot.lane.b32.xlu0 %v1973, 32
    %v1976 = vpop.permute.xlu0 %1975
    %v1978 = vadd.f32 %v1968, %v1976
    %v1979 = vtanh.pop %v1978
    %1981 = vrot.lane.b32.xlu0 %v1979, 64
    %v1982 = vpop.permute.xlu0 %1981
    %v1984 = vmul.f32 %v1966, %v1982
    %1986 = vrot.lane.b32.xlu0 %v1984, 32
    %v1987 = vpop.permute.xlu0 %1986
    %1989 = vrot.lane.b32.xlu0 %v1529, 64
    %v1990 = vpop.permute.xlu0 %1989
    %v1992 = vsel %vm85, %v1987, %v1990
    %v1994 = vsel %vm180, %v1992, 0
    %1996 = vmatprep.subr.mxu0 0.0
    %1997 = vmatpush1.msra.mxu0 %v74
    %1998 = vmatprep.subr.mxu0 0.0
    %1999 = vmatpush1.msra.mxu0 %v75
    %2000 = vmatprep.subr.mxu0 0.0
    %2001 = vmatpush1.msra.mxu0 %v76
    %2002 = vmatprep.subr.mxu0 0.0
    %2003 = vmatpush1.msra.mxu0 %v77
    %2004 = vmatprep.subr.mxu0 0.0
    %2005 = vmatpush1.msra.mxu0 %v78
    %2006 = vmatprep.subr.mxu0 0.0
    %2007 = vmatpush1.msra.mxu0 %v79
    %2008 = vmatprep.subr.mxu0 0.0
    %2009 = vmatpush1.msra.mxu0 %v80
    %2010 = vmatprep.subr.mxu0 0.0
    %2011 = vmatpush1.msra.mxu0 %v81
    %2012 = vmatprep.subr.mxu0 0.0
    %2013 = vmatpush1.msra.mxu0 0.0
    %2014 = vmatprep.subr.mxu0 0.0
    %2015 = vmatpush1.msra.mxu0 0.0
    %2016 = vmatprep.subr.mxu0 0.0
    %2017 = vmatpush1.msra.mxu0 0.0
    %2018 = vmatprep.subr.mxu0 0.0
    %2019 = vmatpush1.msra.mxu0 0.0
    %2020 = vmatprep.subr.mxu0 0.0
    %2021 = vmatpush1.msra.mxu0 0.0
    %2022 = vmatprep.subr.mxu0 0.0
    %2023 = vmatpush1.msra.mxu0 0.0
    %2024 = vmatprep.subr.mxu0 0.0
    %2025 = vmatpush1.msra.mxu0 0.0
    %2026 = vmatprep.subr.mxu0 0.0
    %2027 = vmatpush1.msra.mxu0 0.0
    %2028 = vmatprep.subr.mxu0 0.0
    %2029 = vmatpush1.msra.mxu0 0.0
    %2030 = vmatprep.subr.mxu0 0.0
    %2031 = vmatpush1.msra.mxu0 0.0
    %2032 = vmatprep.subr.mxu0 0.0
    %2033 = vmatpush1.msra.mxu0 0.0
    %2034 = vmatprep.subr.mxu0 0.0
    %2035 = vmatpush1.msra.mxu0 0.0
    %2036 = vmatprep.subr.mxu0 0.0
    %2037 = vmatpush1.msra.mxu0 0.0
    %2038 = vmatprep.subr.mxu0 0.0
    %2039 = vmatpush1.msra.mxu0 0.0
    %2040 = vmatprep.subr.mxu0 0.0
    %2041 = vmatpush1.msra.mxu0 0.0
    %2042 = vmatprep.subr.mxu0 0.0
    %2043 = vmatpush1.msra.mxu0 0.0
    %2044 = vmatprep.subr.mxu0 0.0
    %2045 = vmatpush1.msra.mxu0 0.0
    %2046 = vmatprep.subr.mxu0 0.0
    %2047 = vmatpush1.msra.mxu0 0.0
    %2048 = vmatprep.subr.mxu0 0.0
    %2049 = vmatpush1.msra.mxu0 0.0
    %2050 = vmatprep.subr.mxu0 0.0
    %2051 = vmatpush1.msra.mxu0 0.0
    %2052 = vmatprep.subr.mxu0 0.0
    %2053 = vmatpush1.msra.mxu0 0.0
    %2054 = vmatprep.subr.mxu0 0.0
    %2055 = vmatpush1.msra.mxu0 0.0
    %2056 = vmatprep.subr.mxu0 0.0
    %2057 = vmatpush1.msra.mxu0 0.0
    %2058 = vmatprep.subr.mxu0 0.0
    %2059 = vmatpush1.msra.mxu0 0.0
    %2060 = vmatprep.mubr.f32.mxu0 0.0
    %2061 = vmatmul.mubr.f32.gmra.mrb[0].mxu0 %v1994
    %v2062 = vpop.f32.mrb[0].mxu0
    %v2063 = vadd.f32 %v83, %v2062
    %v2064 = vpop.f32.mrb[0].mxu0
    %2065 = vdwg.mxu0
    %v2066 = vxor.u32 %v2063, 2147483648
    %v2067 = vmul.f32 %v2066, 1.442695
    %v2068 = vpow.pop %v2067
    %v2069 = vadd.f32 %v2068, 1.0
    %v2070 = vrcp.pop %v2069
    %v2071 = vmul.f32 1.0, %v2070
    %v2072 = vtanh.pop %v2063
    %v2073 = vmul.f32 %v2071, %v1523
    %2075 = vrot.lane.b32.xlu0 %v2072, 64
    %v2076 = vpop.permute.xlu0 %2075
    %v2078 = vmul.f32 %v2071, %v2076
    %2080 = vrot.lane.b32.xlu0 %v2078, 32
    %v2081 = vpop.permute.xlu0 %2080
    %v2083 = vadd.f32 %v2073, %v2081
    %v2084 = vtanh.pop %v2083
    %2086 = vrot.lane.b32.xlu0 %v2084, 64
    %v2087 = vpop.permute.xlu0 %2086
    %v2089 = vmul.f32 %v2071, %v2087
    %2091 = vrot.lane.b32.xlu0 %v2089, 32
    %v2092 = vpop.permute.xlu0 %2091
    %v2093 = vsel %vm85, %v2092, 0
    %2095 = vmatprep.subr.mxu0 0.0
    %2096 = vmatpush1.msra.mxu0 %v62
    %2097 = vmatprep.subr.mxu0 0.0
    %2098 = vmatpush1.msra.mxu0 %v63
    %2099 = vmatprep.subr.mxu0 0.0
    %2100 = vmatpush1.msra.mxu0 %v64
    %2101 = vmatprep.subr.mxu0 0.0
    %2102 = vmatpush1.msra.mxu0 %v65
    %2103 = vmatprep.subr.mxu0 0.0
    %2104 = vmatpush1.msra.mxu0 0.0
    %2105 = vmatprep.subr.mxu0 0.0
    %2106 = vmatpush1.msra.mxu0 0.0
    %2107 = vmatprep.subr.mxu0 0.0
    %2108 = vmatpush1.msra.mxu0 0.0
    %2109 = vmatprep.subr.mxu0 0.0
    %2110 = vmatpush1.msra.mxu0 0.0
    %2111 = vmatprep.subr.mxu0 0.0
    %2112 = vmatpush1.msra.mxu0 0.0
    %2113 = vmatprep.subr.mxu0 0.0
    %2114 = vmatpush1.msra.mxu0 0.0
    %2115 = vmatprep.subr.mxu0 0.0
    %2116 = vmatpush1.msra.mxu0 0.0
    %2117 = vmatprep.subr.mxu0 0.0
    %2118 = vmatpush1.msra.mxu0 0.0
    %2119 = vmatprep.subr.mxu0 0.0
    %2120 = vmatpush1.msra.mxu0 0.0
    %2121 = vmatprep.subr.mxu0 0.0
    %2122 = vmatpush1.msra.mxu0 0.0
    %2123 = vmatprep.subr.mxu0 0.0
    %2124 = vmatpush1.msra.mxu0 0.0
    %2125 = vmatprep.subr.mxu0 0.0
    %2126 = vmatpush1.msra.mxu0 0.0
    %2127 = vmatprep.subr.mxu0 0.0
    %2128 = vmatpush1.msra.mxu0 0.0
    %2129 = vmatprep.subr.mxu0 0.0
    %2130 = vmatpush1.msra.mxu0 0.0
    %2131 = vmatprep.subr.mxu0 0.0
    %2132 = vmatpush1.msra.mxu0 0.0
    %2133 = vmatprep.subr.mxu0 0.0
    %2134 = vmatpush1.msra.mxu0 0.0
    %2135 = vmatprep.subr.mxu0 0.0
    %2136 = vmatpush1.msra.mxu0 0.0
    %2137 = vmatprep.subr.mxu0 0.0
    %2138 = vmatpush1.msra.mxu0 0.0
    %2139 = vmatprep.subr.mxu0 0.0
    %2140 = vmatpush1.msra.mxu0 0.0
    %2141 = vmatprep.subr.mxu0 0.0
    %2142 = vmatpush1.msra.mxu0 0.0
    %2143 = vmatprep.subr.mxu0 0.0
    %2144 = vmatpush1.msra.mxu0 0.0
    %2145 = vmatprep.subr.mxu0 0.0
    %2146 = vmatpush1.msra.mxu0 0.0
    %2147 = vmatprep.subr.mxu0 0.0
    %2148 = vmatpush1.msra.mxu0 0.0
    %2149 = vmatprep.subr.mxu0 0.0
    %2150 = vmatpush1.msra.mxu0 0.0
    %2151 = vmatprep.subr.mxu0 0.0
    %2152 = vmatpush1.msra.mxu0 0.0
    %2153 = vmatprep.subr.mxu0 0.0
    %2154 = vmatpush1.msra.mxu0 0.0
    %2155 = vmatprep.subr.mxu0 0.0
    %2156 = vmatpush1.msra.mxu0 0.0
    %2157 = vmatprep.subr.mxu0 0.0
    %2158 = vmatpush1.msra.mxu0 0.0
    %2159 = vmatprep.mubr.f32.mxu0 0.0
    %2160 = vmatmul.mubr.f32.gmra.mrb[0].mxu0 %v2093
    %v2161 = vpop.f32.mrb[0].mxu0
    %v2162 = vadd.f32 0.0, %v2161
    %v2163 = vpop.f32.mrb[0].mxu0
    %2164 = vdwg.mxu0
    %v2165 = vlaneseq
    %v2166 = vshrl.u32 %v2165, 7
    %v2167 = vsub.s32 0, %v2166
    %v2168 = vrot.slane %v2162, %v2167
    %2170 = vrot.lane.b32.xlu0 %v2168, 32
    %v2171 = vpop.permute.xlu0 %2170
    %v2173 = vadd.f32 %v156, %v2171
    %v2174 = vtanh.pop %v2173
    %v2175 = vmul.f32 %v2174, %v482
    %2177 = vrot.lane.b32.xlu0 %v2175, 96
    %v2178 = vpop.permute.xlu0 %2177
    %v2180 = vsel %vm85, %v2178, 0.0
    %2181 = vadd.xlane.f32.xlu0 %v2180
    %v2182 = vpop.xlane.xlu0 %2181
    %v2183 = vrot.slane %v2182, 4
    %v2184 = vmax.f32 %v2182, %v2183
    %v2185 = vrot.slane %v2184, 2
    %v2186 = vmax.f32 %v2184, %v2185
    %v2187 = vrot.slane %v2186, 1
    %v2188 = vmax.f32 %v2186, %v2187
    %v2189 = vsub.f32 %v2182, %v2188
    %v2190 = vmul.f32 %v2189, 1.442695
    %v2191 = vpow.pop %v2190
    %v2192 = vrot.slane %v2191, 4
    %v2193 = vadd.f32 %v2191, %v2192
    %v2194 = vrot.slane %v2193, 2
    %v2195 = vadd.f32 %v2193, %v2194
    %v2196 = vrot.slane %v2195, 1
    %v2197 = vadd.f32 %v2195, %v2196
    %v2198 = vrcp.pop %v2197
    %v2199 = vmul.f32 %v2191, %v2198
    %v2200 = vmul.f32 %v2199, %v156
    %v2201 = vsel %vm510, %v2200, 0.0
    %v2202 = vrot.slane %v2201, 4
    %v2203 = vadd.f32 %v2201, %v2202
    %v2204 = vrot.slane %v2203, 2
    %v2205 = vadd.f32 %v2203, %v2204
    %v2206 = vrot.slane %v2205, 1
    %v2207 = vadd.f32 %v2205, %v2206
    %2209 = vrot.lane.b32.xlu0 %v2207, 96
    %v2210 = vpop.permute.xlu0 %2209
    %v2211 = vsel %vm85, %v2210, 0
    %2213 = vmatprep.subr.mxu0 0.0
    %2214 = vmatpush1.msra.mxu0 %v62
    %2215 = vmatprep.subr.mxu0 0.0
    %2216 = vmatpush1.msra.mxu0 %v63
    %2217 = vmatprep.subr.mxu0 0.0
    %2218 = vmatpush1.msra.mxu0 %v64
    %2219 = vmatprep.subr.mxu0 0.0
    %2220 = vmatpush1.msra.mxu0 %v65
    %2221 = vmatprep.subr.mxu0 0.0
    %2222 = vmatpush1.msra.mxu0 0.0
    %2223 = vmatprep.subr.mxu0 0.0
    %2224 = vmatpush1.msra.mxu0 0.0
    %2225 = vmatprep.subr.mxu0 0.0
    %2226 = vmatpush1.msra.mxu0 0.0
    %2227 = vmatprep.subr.mxu0 0.0
    %2228 = vmatpush1.msra.mxu0 0.0
    %2229 = vmatprep.subr.mxu0 0.0
    %2230 = vmatpush1.msra.mxu0 0.0
    %2231 = vmatprep.subr.mxu0 0.0
    %2232 = vmatpush1.msra.mxu0 0.0
    %2233 = vmatprep.subr.mxu0 0.0
    %2234 = vmatpush1.msra.mxu0 0.0
    %2235 = vmatprep.subr.mxu0 0.0
    %2236 = vmatpush1.msra.mxu0 0.0
    %2237 = vmatprep.subr.mxu0 0.0
    %2238 = vmatpush1.msra.mxu0 0.0
    %2239 = vmatprep.subr.mxu0 0.0
    %2240 = vmatpush1.msra.mxu0 0.0
    %2241 = vmatprep.subr.mxu0 0.0
    %2242 = vmatpush1.msra.mxu0 0.0
    %2243 = vmatprep.subr.mxu0 0.0
    %2244 = vmatpush1.msra.mxu0 0.0
    %2245 = vmatprep.subr.mxu0 0.0
    %2246 = vmatpush1.msra.mxu0 0.0
    %2247 = vmatprep.subr.mxu0 0.0
    %2248 = vmatpush1.msra.mxu0 0.0
    %2249 = vmatprep.subr.mxu0 0.0
    %2250 = vmatpush1.msra.mxu0 0.0
    %2251 = vmatprep.subr.mxu0 0.0
    %2252 = vmatpush1.msra.mxu0 0.0
    %2253 = vmatprep.subr.mxu0 0.0
    %2254 = vmatpush1.msra.mxu0 0.0
    %2255 = vmatprep.subr.mxu0 0.0
    %2256 = vmatpush1.msra.mxu0 0.0
    %2257 = vmatprep.subr.mxu0 0.0
    %2258 = vmatpush1.msra.mxu0 0.0
    %2259 = vmatprep.subr.mxu0 0.0
    %2260 = vmatpush1.msra.mxu0 0.0
    %2261 = vmatprep.subr.mxu0 0.0
    %2262 = vmatpush1.msra.mxu0 0.0
    %2263 = vmatprep.subr.mxu0 0.0
    %2264 = vmatpush1.msra.mxu0 0.0
    %2265 = vmatprep.subr.mxu0 0.0
    %2266 = vmatpush1.msra.mxu0 0.0
    %2267 = vmatprep.subr.mxu0 0.0
    %2268 = vmatpush1.msra.mxu0 0.0
    %2269 = vmatprep.subr.mxu0 0.0
    %2270 = vmatpush1.msra.mxu0 0.0
    %2271 = vmatprep.subr.mxu0 0.0
    %2272 = vmatpush1.msra.mxu0 0.0
    %2273 = vmatprep.subr.mxu0 0.0
    %2274 = vmatpush1.msra.mxu0 0.0
    %2275 = vmatprep.subr.mxu0 0.0
    %2276 = vmatpush1.msra.mxu0 0.0
    %2277 = vmatprep.mubr.f32.mxu0 0.0
    %2278 = vmatmul.mubr.f32.gmra.mrb[0].mxu0 %v2211
    %v2279 = vpop.f32.mrb[0].mxu0
    %v2280 = vadd.f32 0.0, %v2279
    %v2281 = vpop.f32.mrb[0].mxu0
    %2282 = vdwg.mxu0
    %v2283 = vlaneseq
    %v2284 = vshrl.u32 %v2283, 7
    %v2285 = vsub.s32 0, %v2284
    %v2286 = vrot.slane %v2280, %v2285
    %2288 = vrot.lane.b32.xlu0 %v2286, 32
    %v2289 = vpop.permute.xlu0 %2288
    %v2291 = vadd.f32 %v156, %v2289
    %v2292 = vtanh.pop %v2291
    %v2293 = vmul.f32 %v2292, %v482
    %2295 = vrot.lane.b32.xlu0 %v2293, 96
    %v2296 = vpop.permute.xlu0 %2295
    %v2298 = vsel %vm85, %v2296, 0.0
    %2299 = vadd.xlane.f32.xlu0 %v2298
    %v2300 = vpop.xlane.xlu0 %2299
    %v2301 = vrot.slane %v2300, 4
    %v2302 = vmax.f32 %v2300, %v2301
    %v2303 = vrot.slane %v2302, 2
    %v2304 = vmax.f32 %v2302, %v2303
    %v2305 = vrot.slane %v2304, 1
    %v2306 = vmax.f32 %v2304, %v2305
    %v2307 = vsub.f32 %v2300, %v2306
    %v2308 = vmul.f32 %v2307, 1.442695
    %v2309 = vpow.pop %v2308
    %v2310 = vrot.slane %v2309, 4
    %v2311 = vadd.f32 %v2309, %v2310
    %v2312 = vrot.slane %v2311, 2
    %v2313 = vadd.f32 %v2311, %v2312
    %v2314 = vrot.slane %v2313, 1
    %v2315 = vadd.f32 %v2313, %v2314
    %v2316 = vrcp.pop %v2315
    %v2317 = vmul.f32 %v2309, %v2316
    %v2318 = vmul.f32 %v2317, %v156
    %v2319 = vsel %vm510, %v2318, 0.0
    %v2320 = vrot.slane %v2319, 4
    %v2321 = vadd.f32 %v2319, %v2320
    %v2322 = vrot.slane %v2321, 2
    %v2323 = vadd.f32 %v2321, %v2322
    %v2324 = vrot.slane %v2323, 1
    %v2325 = vadd.f32 %v2323, %v2324
    %2327 = vrot.lane.b32.xlu0 %v2325, 96
    %v2328 = vpop.permute.xlu0 %2327
    %v2329 = vsel %vm85, %v2328, 0
    %2331 = vmatprep.subr.mxu0 0.0
    %2332 = vmatpush1.msra.mxu0 %v58
    %2333 = vmatprep.subr.mxu0 0.0
    %2334 = vmatpush1.msra.mxu0 %v59
    %2335 = vmatprep.subr.mxu0 0.0
    %2336 = vmatpush1.msra.mxu0 %v60
    %2337 = vmatprep.subr.mxu0 0.0
    %2338 = vmatpush1.msra.mxu0 %v61
    %2339 = vmatprep.subr.mxu0 0.0
    %2340 = vmatpush1.msra.mxu0 0.0
    %2341 = vmatprep.subr.mxu0 0.0
    %2342 = vmatpush1.msra.mxu0 0.0
    %2343 = vmatprep.subr.mxu0 0.0
    %2344 = vmatpush1.msra.mxu0 0.0
    %2345 = vmatprep.subr.mxu0 0.0
    %2346 = vmatpush1.msra.mxu0 0.0
    %2347 = vmatprep.subr.mxu0 0.0
    %2348 = vmatpush1.msra.mxu0 0.0
    %2349 = vmatprep.subr.mxu0 0.0
    %2350 = vmatpush1.msra.mxu0 0.0
    %2351 = vmatprep.subr.mxu0 0.0
    %2352 = vmatpush1.msra.mxu0 0.0
    %2353 = vmatprep.subr.mxu0 0.0
    %2354 = vmatpush1.msra.mxu0 0.0
    %2355 = vmatprep.subr.mxu0 0.0
    %2356 = vmatpush1.msra.mxu0 0.0
    %2357 = vmatprep.subr.mxu0 0.0
    %2358 = vmatpush1.msra.mxu0 0.0
    %2359 = vmatprep.subr.mxu0 0.0
    %2360 = vmatpush1.msra.mxu0 0.0
    %2361 = vmatprep.subr.mxu0 0.0
    %2362 = vmatpush1.msra.mxu0 0.0
    %2363 = vmatprep.subr.mxu0 0.0
    %2364 = vmatpush1.msra.mxu0 0.0
    %2365 = vmatprep.subr.mxu0 0.0
    %2366 = vmatpush1.msra.mxu0 0.0
    %2367 = vmatprep.subr.mxu0 0.0
    %2368 = vmatpush1.msra.mxu0 0.0
    %2369 = vmatprep.subr.mxu0 0.0
    %2370 = vmatpush1.msra.mxu0 0.0
    %2371 = vmatprep.subr.mxu0 0.0
    %2372 = vmatpush1.msra.mxu0 0.0
    %2373 = vmatprep.subr.mxu0 0.0
    %2374 = vmatpush1.msra.mxu0 0.0
    %2375 = vmatprep.subr.mxu0 0.0
    %2376 = vmatpush1.msra.mxu0 0.0
    %2377 = vmatprep.subr.mxu0 0.0
    %2378 = vmatpush1.msra.mxu0 0.0
    %2379 = vmatprep.subr.mxu0 0.0
    %2380 = vmatpush1.msra.mxu0 0.0
    %2381 = vmatprep.subr.mxu0 0.0
    %2382 = vmatpush1.msra.mxu0 0.0
    %2383 = vmatprep.subr.mxu0 0.0
    %2384 = vmatpush1.msra.mxu0 0.0
    %2385 = vmatprep.subr.mxu0 0.0
    %2386 = vmatpush1.msra.mxu0 0.0
    %2387 = vmatprep.subr.mxu0 0.0
    %2388 = vmatpush1.msra.mxu0 0.0
    %2389 = vmatprep.subr.mxu0 0.0
    %2390 = vmatpush1.msra.mxu0 0.0
    %2391 = vmatprep.subr.mxu0 0.0
    %2392 = vmatpush1.msra.mxu0 0.0
    %2393 = vmatprep.subr.mxu0 0.0
    %2394 = vmatpush1.msra.mxu0 0.0
    %2395 = vmatprep.mubr.f32.mxu0 0.0
    %2396 = vmatmul.mubr.f32.gmra.mrb[0].mxu0 %v2329
    %v2397 = vpop.f32.mrb[0].mxu0
    %v2398 = vadd.f32 0.0, %v2397
    %v2399 = vpop.f32.mrb[0].mxu0
    %2400 = vdwg.mxu0
    %v2401 = vlaneseq
    %v2402 = vshrl.u32 %v2401, 7
    %v2403 = vsub.s32 0, %v2402
    %v2404 = vrot.slane %v2398, %v2403
    %v2405 = vadd.f32 %v156, %v2404
    %v2406 = vtanh.pop %v2405
    %v2407 = vmul.f32 %v2406, %v720
    %v2408 = vsel %vm85, %v2407, 0.0
    %2409 = vadd.xlane.f32.xlu0 %v2408
    %v2410 = vpop.xlane.xlu0 %2409
    %v2411 = vrot.slane %v2410, 4
    %v2412 = vmax.f32 %v2410, %v2411
    %v2413 = vrot.slane %v2412, 2
    %v2414 = vmax.f32 %v2412, %v2413
    %v2415 = vrot.slane %v2414, 1
    %v2416 = vmax.f32 %v2414, %v2415
    %v2417 = vsub.f32 %v2410, %v2416
    %v2418 = vmul.f32 %v2417, 1.442695
    %v2419 = vpow.pop %v2418
    %v2420 = vrot.slane %v2419, 4
    %v2421 = vadd.f32 %v2419, %v2420
    %v2422 = vrot.slane %v2421, 2
    %v2423 = vadd.f32 %v2421, %v2422
    %v2424 = vrot.slane %v2423, 1
    %v2425 = vadd.f32 %v2423, %v2424
    %v2426 = vrcp.pop %v2425
    %v2427 = vmul.f32 %v2419, %v2426
    %v2428 = vmul.f32 %v2427, %v167
    %v2429 = vsel %vm743, %v2428, 0.0
    %v2430 = vrot.slane %v2429, 4
    %v2431 = vadd.f32 %v2429, %v2430
    %v2432 = vrot.slane %v2431, 2
    %v2433 = vadd.f32 %v2431, %v2432
    %v2434 = vrot.slane %v2433, 1
    %v2435 = vadd.f32 %v2433, %v2434
    %v2436 = vadd.f32 %v2435, %v754
    %vm2437 = vcmp.eq.s32.totalorder %v169, 3
    %2439 = vset.pattern.permute.xlu0 32
    %2440 = vperm.xlu0 %2439, %v2436
    %v2441 = vpop.permute.xlu0 %2440
    %v2443 = vsel %vm2437, %v2441, %v1883
    %vm2444 = vcmask 24576
    %2445 = vst.msk [vmem:[#allocation8] sm:$0x1] %vm2444, %v2443
    // Predicated region
    $region26: #{tpu_custom_call.1} parent=1 // pred_check
      _
    $region27: #{tpu_custom_call.1} parent=1 // pred_check_branch
      %2447 = sbr.rel (0) target = $region29
    $region28: #{tpu_custom_call.1} parent=1 // pred_region
      %s2449 = ssub.s32 16, 16
      %2450 = vsyncadd [#allocation4], %s2449
      %s2452 = sshll.u32 [#allocation8], 4
      %s2453 = int_to_ptr.vmem [resolvable:$true] %s2452
      %2455 = dma.vmem_to_hbm [thread:$0]  %s2453, 16, %s3, [#allocation4]
    $region29: #{tpu_custom_call.1} parent=1 // pred_fallthru
      _
    // Predicated region
    $region30: #{tpu_custom_call.1} parent=1 // pred_check
      _
    $region31: #{tpu_custom_call.1} parent=1 // pred_check_branch
      %2457 = sbr.rel (0) target = $region33
    $region32: #{tpu_custom_call.1} parent=1 // pred_region
      %2458 = dma.done [#allocation4], 16
    $region33: #{tpu_custom_call.1} parent=1 // pred_fallthru
      _
    %2459 = vsyncpa [#allocation3], 1
    %2460 = vsyncpa [#allocation6], 1
    %2461 = vsyncpa [#allocation4], 1

</llo_original>
